<compile_context>
chip_gen: v7x
topology: tpu7x:2x2x1
jax: 0.10.0
libtpu: 0.0.40
codegen_flags: <defaults>
</compile_context>

<pallas_src>
import functools

import jax
import jax.numpy as jnp
from jax.experimental import pallas as pl
from jax.experimental.pallas import tpu as pltpu


# ----------------------------------------------------------------------------
# Pallas kernel: fused 3x3 conv (stride 1, pad 1) + bias + ReLU, one image.
# ----------------------------------------------------------------------------
def init_block_kernel(x_ref, w_ref, b_ref, out_ref, xpad_ref, *, H, W):
    """x_ref : (1, H, W, Cin)   unpadded NHWC input tile
       w_ref : (9, Cin, Cout)   weights, tap-major (k = dy*3 + dx)
       b_ref : (1, Cout)        bias
       out_ref: (1, H, W, Cout)
       xpad_ref: (H+3, Wp, Cin) VMEM scratch, Wp = W+2 rounded up to 8;
                 holds the zero-padded image with an 8-aligned row pitch.
    """
    Cin = x_ref.shape[3]
    Cout = w_ref.shape[2]
    Wp = xpad_ref.shape[1]          # padded row pitch (multiple of 8)
    M = H * Wp                      # rows of the flattened accumulator

    # Build the zero-padded image in VMEM (replaces wrapper-side jnp.pad).
    xpad_ref[...] = jnp.zeros(xpad_ref.shape, xpad_ref.dtype)
    xpad_ref[pl.ds(1, H), pl.ds(1, W), :] = x_ref[0]

    # Flatten ONCE (8-aligned middle dim -> layout-compatible collapse).
    # Each tap (dy, dx) then becomes a contiguous row-window slice: the value
    # for output pixel (h, w) of tap k sits at flat row h*Wp + w + dy*Wp + dx.
    x2 = xpad_ref[...].reshape((H + 3) * Wp, Cin)

    acc = jnp.zeros((M, Cout), jnp.float32)
    for k in range(9):                                   # 9 shifted MXU matmuls
        dy, dx = divmod(k, 3)
        s = dy * Wp + dx
        acc = acc + jnp.dot(x2[s:s + M, :], w_ref[k],
                            preferred_element_type=jnp.float32)

    acc = acc + b_ref[...]                               # (1, Cout) broadcast
    y = jnp.maximum(acc, 0.0)

    # Row r = h*Wp + w; columns w >= W are junk produced by the pad pitch.
    y = y.reshape(H, Wp, Cout)[:, :W, :]
    out_ref[0] = y.astype(out_ref.dtype)


# ----------------------------------------------------------------------------
# Wrapper (glue): NCHW <-> NHWC transposes + pallas_call.
# ----------------------------------------------------------------------------
def init_block_forward(x_nchw, w_tap, b):
    """x_nchw: (N, Cin, H, W); w_tap: (9, Cin, Cout) tap-major; b: (Cout,)."""
    N, Cin, H, W = x_nchw.shape
    Cout = w_tap.shape[2]
    Wp = ((W + 2 + 7) // 8) * 8                          # 8-aligned row pitch

    x = jnp.transpose(x_nchw, (0, 2, 3, 1))              # NCHW -> NHWC

    kernel = functools.partial(init_block_kernel, H=H, W=W)
    y = pl.pallas_call(
        kernel,
        out_shape=jax.ShapeDtypeStruct((N, H, W, Cout), x.dtype),
        grid=(N,),
        in_specs=[
            pl.BlockSpec((1, H, W, Cin), lambda n: (n, 0, 0, 0)),
            pl.BlockSpec((9, Cin, Cout), lambda n: (0, 0, 0)),
            pl.BlockSpec((1, Cout), lambda n: (0, 0)),
        ],
        out_specs=pl.BlockSpec((1, H, W, Cout), lambda n: (n, 0, 0, 0)),
        scratch_shapes=[pltpu.VMEM((H + 3, Wp, Cin), jnp.float32)],
        compiler_params=pltpu.CompilerParams(
            dimension_semantics=("parallel",)),          # megacore on v7x
    )(x, w_tap, b.reshape(1, Cout))

    return jnp.transpose(y, (0, 3, 1, 2))                # NHWC -> NCHW


def prepare_params(w_oihw, b):
    """Hoisted out of the forward: (Cout, Cin, 3, 3) -> (9, Cin, Cout),
    tap index k = dy*3 + dx (matches the kernel's shift order)."""
    cout, cin = w_oihw.shape[0], w_oihw.shape[1]
    w_tap = jnp.transpose(w_oihw, (2, 3, 1, 0)).reshape(9, cin, cout)
    return w_tap, b


# ----------------------------------------------------------------------------
# Pure-JAX reference (lax.conv) for correctness checking.
# ----------------------------------------------------------------------------
def init_block_ref(x_nchw, w_oihw, b):
    x = jnp.transpose(x_nchw, (0, 2, 3, 1))              # NHWC
    y = jax.lax.conv_general_dilated(
        x, jnp.transpose(w_oihw, (2, 3, 1, 0)),          # HWIO
        window_strides=(1, 1), padding=((1, 1), (1, 1)),
        dimension_numbers=("NHWC", "HWIO", "NHWC"))
    y = jnp.maximum(y + b[None, None, None, :], 0.0)
    return jnp.transpose(y, (0, 3, 1, 2))                # NCHW


# ----------------------------------------------------------------------------
if __name__ == "__main__":
    key = jax.random.PRNGKey(0)
    k_w, k_b, k_x = jax.random.split(key, 3)

    # InitBlock: Conv2d(in_channels=3, out_channels=32, kernel=3, pad=1) + ReLU
    N, Cin, H, W = 2, 3, 16, 16
    Cout = 32

    bound = 1.0 / (Cin * 9) ** 0.5                       # PyTorch-like init
    w_oihw = jax.random.uniform(k_w, (Cout, Cin, 3, 3), jnp.float32,
                                -bound, bound)
    b = jax.random.uniform(k_b, (Cout,), jnp.float32, -bound, bound)
    x = jax.random.normal(k_x, (N, Cin, H, W), jnp.float32)   # NCHW input

    w_tap, b_prep = prepare_params(w_oihw, b)            # done once, not per call

    out = init_block_forward(x, w_tap, b_prep)
    out = jax.block_until_ready(out)

    ref = init_block_ref(x, w_oihw, b)
    assert out.shape == (N, Cout, H, W)
    assert jnp.allclose(out, ref, atol=1e-5, rtol=1e-5), \
        float(jnp.max(jnp.abs(out - ref)))

    print("KERNEL_OK")
</pallas_src>

<mosaic_0001>
module attributes {stable_mosaic.version = 11 : i64} {
  func.func @init_block_kernel(%arg0: i32, %arg1: memref<1x16x16x3xf32, #tpu.memory_space<vmem>>, %arg2: memref<9x3x32xf32, #tpu.memory_space<vmem>>, %arg3: memref<1x32xf32, #tpu.memory_space<vmem>>, %arg4: memref<1x16x16x32xf32, #tpu.memory_space<vmem>>, %arg5: memref<19x24x3xf32, #tpu.memory_space<vmem>>) attributes {dimension_semantics = [#tpu.dimension_semantics<parallel>], iteration_bounds = array<i64: 2>, scalar_prefetch = 0 : i64, scratch_operands = 1 : i64, tpu.core_type = #tpu.core_type<tc>, window_params = [{transform_indices = @transform_0, window_bounds = array<i64: 1, 16, 16, 3>}, {pipeline_mode = #tpu.pipeline_mode<synchronous>, transform_indices = @transform_1, window_bounds = array<i64: 9, 3, 32>}, {pipeline_mode = #tpu.pipeline_mode<synchronous>, transform_indices = @transform_2, window_bounds = array<i64: 1, 32>}, {transform_indices = @transform_3, window_bounds = array<i64: 1, 16, 16, 32>}]} {
    %cst = arith.constant 0.000000e+00 : f32
    %0 = vector.broadcast %cst : f32 to vector<19x24x3xf32>
    %c0 = arith.constant 0 : index
    %c0_0 = arith.constant 0 : index
    %c0_1 = arith.constant 0 : index
    %1 = vector.load %arg5[%c0, %c0_0, %c0_1] : memref<19x24x3xf32, #tpu.memory_space<vmem>>, vector<19x24x3xf32>
    tpu.vector_store %arg5[%c0, %c0_0, %c0_1], %0 {strides = array<i32>} : memref<19x24x3xf32, #tpu.memory_space<vmem>>, vector<19x24x3xf32>,
    %c0_2 = arith.constant 0 : index
    %c0_3 = arith.constant 0 : index
    %c0_4 = arith.constant 0 : index
    %c0_5 = arith.constant 0 : index
    %2 = vector.load %arg1[%c0_2, %c0_3, %c0_4, %c0_5] : memref<1x16x16x3xf32, #tpu.memory_space<vmem>>, vector<1x16x16x3xf32>
    %3 = vector.shape_cast %2 : vector<1x16x16x3xf32> to vector<16x16x3xf32>
    %c1 = arith.constant 1 : index
    %c1_6 = arith.constant 1 : index
    %c0_7 = arith.constant 0 : index
    %4 = vector.load %arg5[%c1, %c1_6, %c0_7] : memref<19x24x3xf32, #tpu.memory_space<vmem>>, vector<16x16x3xf32>
    tpu.vector_store %arg5[%c1, %c1_6, %c0_7], %3 {strides = array<i32>} : memref<19x24x3xf32, #tpu.memory_space<vmem>>, vector<16x16x3xf32>,
    %c0_8 = arith.constant 0 : index
    %c0_9 = arith.constant 0 : index
    %c0_10 = arith.constant 0 : index
    %5 = vector.load %arg5[%c0_8, %c0_9, %c0_10] : memref<19x24x3xf32, #tpu.memory_space<vmem>>, vector<19x24x3xf32>
    %6 = vector.shape_cast %5 : vector<19x24x3xf32> to vector<456x3xf32>
    %cst_11 = arith.constant 0.000000e+00 : f32
    %7 = vector.broadcast %cst_11 : f32 to vector<384x32xf32>
    %8 = vector.extract_strided_slice %6 {offsets = [0, 0], sizes = [384, 3], strides = [1, 1]} : vector<456x3xf32> to vector<384x3xf32>
    %c0_12 = arith.constant 0 : index
    %c0_13 = arith.constant 0 : index
    %c0_14 = arith.constant 0 : index
    %9 = vector.load %arg2[%c0_12, %c0_13, %c0_14] : memref<9x3x32xf32, #tpu.memory_space<vmem>>, vector<1x3x32xf32>
    %10 = vector.shape_cast %9 : vector<1x3x32xf32> to vector<3x32xf32>
    %cst_15 = arith.constant dense<0.000000e+00> : vector<384x32xf32>
    %11 = tpu.matmul %8, %10, %cst_15 {dimension_numbers = #tpu.dot_dimension_numbers<[1], [0], [0], [1], [0, 0, 1, 1], [], []>} : vector<384x3xf32>, vector<3x32xf32>, vector<384x32xf32> -> vector<384x32xf32>
    %12 = arith.addf %7, %11 : vector<384x32xf32>
    %13 = vector.extract_strided_slice %6 {offsets = [1, 0], sizes = [384, 3], strides = [1, 1]} : vector<456x3xf32> to vector<384x3xf32>
    %c1_16 = arith.constant 1 : index
    %c0_17 = arith.constant 0 : index
    %c0_18 = arith.constant 0 : index
    %14 = vector.load %arg2[%c1_16, %c0_17, %c0_18] : memref<9x3x32xf32, #tpu.memory_space<vmem>>, vector<1x3x32xf32>
    %15 = vector.shape_cast %14 : vector<1x3x32xf32> to vector<3x32xf32>
    %cst_19 = arith.constant dense<0.000000e+00> : vector<384x32xf32>
    %16 = tpu.matmul %13, %15, %cst_19 {dimension_numbers = #tpu.dot_dimension_numbers<[1], [0], [0], [1], [0, 0, 1, 1], [], []>} : vector<384x3xf32>, vector<3x32xf32>, vector<384x32xf32> -> vector<384x32xf32>
    %17 = arith.addf %12, %16 : vector<384x32xf32>
    %18 = vector.extract_strided_slice %6 {offsets = [2, 0], sizes = [384, 3], strides = [1, 1]} : vector<456x3xf32> to vector<384x3xf32>
    %c2 = arith.constant 2 : index
    %c0_20 = arith.constant 0 : index
    %c0_21 = arith.constant 0 : index
    %19 = vector.load %arg2[%c2, %c0_20, %c0_21] : memref<9x3x32xf32, #tpu.memory_space<vmem>>, vector<1x3x32xf32>
    %20 = vector.shape_cast %19 : vector<1x3x32xf32> to vector<3x32xf32>
    %cst_22 = arith.constant dense<0.000000e+00> : vector<384x32xf32>
    %21 = tpu.matmul %18, %20, %cst_22 {dimension_numbers = #tpu.dot_dimension_numbers<[1], [0], [0], [1], [0, 0, 1, 1], [], []>} : vector<384x3xf32>, vector<3x32xf32>, vector<384x32xf32> -> vector<384x32xf32>
    %22 = arith.addf %17, %21 : vector<384x32xf32>
    %23 = vector.extract_strided_slice %6 {offsets = [24, 0], sizes = [384, 3], strides = [1, 1]} : vector<456x3xf32> to vector<384x3xf32>
    %c3 = arith.constant 3 : index
    %c0_23 = arith.constant 0 : index
    %c0_24 = arith.constant 0 : index
    %24 = vector.load %arg2[%c3, %c0_23, %c0_24] : memref<9x3x32xf32, #tpu.memory_space<vmem>>, vector<1x3x32xf32>
    %25 = vector.shape_cast %24 : vector<1x3x32xf32> to vector<3x32xf32>
    %cst_25 = arith.constant dense<0.000000e+00> : vector<384x32xf32>
    %26 = tpu.matmul %23, %25, %cst_25 {dimension_numbers = #tpu.dot_dimension_numbers<[1], [0], [0], [1], [0, 0, 1, 1], [], []>} : vector<384x3xf32>, vector<3x32xf32>, vector<384x32xf32> -> vector<384x32xf32>
    %27 = arith.addf %22, %26 : vector<384x32xf32>
    %28 = vector.extract_strided_slice %6 {offsets = [25, 0], sizes = [384, 3], strides = [1, 1]} : vector<456x3xf32> to vector<384x3xf32>
    %c4 = arith.constant 4 : index
    %c0_26 = arith.constant 0 : index
    %c0_27 = arith.constant 0 : index
    %29 = vector.load %arg2[%c4, %c0_26, %c0_27] : memref<9x3x32xf32, #tpu.memory_space<vmem>>, vector<1x3x32xf32>
    %30 = vector.shape_cast %29 : vector<1x3x32xf32> to vector<3x32xf32>
    %cst_28 = arith.constant dense<0.000000e+00> : vector<384x32xf32>
    %31 = tpu.matmul %28, %30, %cst_28 {dimension_numbers = #tpu.dot_dimension_numbers<[1], [0], [0], [1], [0, 0, 1, 1], [], []>} : vector<384x3xf32>, vector<3x32xf32>, vector<384x32xf32> -> vector<384x32xf32>
    %32 = arith.addf %27, %31 : vector<384x32xf32>
    %33 = vector.extract_strided_slice %6 {offsets = [26, 0], sizes = [384, 3], strides = [1, 1]} : vector<456x3xf32> to vector<384x3xf32>
    %c5 = arith.constant 5 : index
    %c0_29 = arith.constant 0 : index
    %c0_30 = arith.constant 0 : index
    %34 = vector.load %arg2[%c5, %c0_29, %c0_30] : memref<9x3x32xf32, #tpu.memory_space<vmem>>, vector<1x3x32xf32>
    %35 = vector.shape_cast %34 : vector<1x3x32xf32> to vector<3x32xf32>
    %cst_31 = arith.constant dense<0.000000e+00> : vector<384x32xf32>
    %36 = tpu.matmul %33, %35, %cst_31 {dimension_numbers = #tpu.dot_dimension_numbers<[1], [0], [0], [1], [0, 0, 1, 1], [], []>} : vector<384x3xf32>, vector<3x32xf32>, vector<384x32xf32> -> vector<384x32xf32>
    %37 = arith.addf %32, %36 : vector<384x32xf32>
    %38 = vector.extract_strided_slice %6 {offsets = [48, 0], sizes = [384, 3], strides = [1, 1]} : vector<456x3xf32> to vector<384x3xf32>
    %c6 = arith.constant 6 : index
    %c0_32 = arith.constant 0 : index
    %c0_33 = arith.constant 0 : index
    %39 = vector.load %arg2[%c6, %c0_32, %c0_33] : memref<9x3x32xf32, #tpu.memory_space<vmem>>, vector<1x3x32xf32>
    %40 = vector.shape_cast %39 : vector<1x3x32xf32> to vector<3x32xf32>
    %cst_34 = arith.constant dense<0.000000e+00> : vector<384x32xf32>
    %41 = tpu.matmul %38, %40, %cst_34 {dimension_numbers = #tpu.dot_dimension_numbers<[1], [0], [0], [1], [0, 0, 1, 1], [], []>} : vector<384x3xf32>, vector<3x32xf32>, vector<384x32xf32> -> vector<384x32xf32>
    %42 = arith.addf %37, %41 : vector<384x32xf32>
    %43 = vector.extract_strided_slice %6 {offsets = [49, 0], sizes = [384, 3], strides = [1, 1]} : vector<456x3xf32> to vector<384x3xf32>
    %c7 = arith.constant 7 : index
    %c0_35 = arith.constant 0 : index
    %c0_36 = arith.constant 0 : index
    %44 = vector.load %arg2[%c7, %c0_35, %c0_36] : memref<9x3x32xf32, #tpu.memory_space<vmem>>, vector<1x3x32xf32>
    %45 = vector.shape_cast %44 : vector<1x3x32xf32> to vector<3x32xf32>
    %cst_37 = arith.constant dense<0.000000e+00> : vector<384x32xf32>
    %46 = tpu.matmul %43, %45, %cst_37 {dimension_numbers = #tpu.dot_dimension_numbers<[1], [0], [0], [1], [0, 0, 1, 1], [], []>} : vector<384x3xf32>, vector<3x32xf32>, vector<384x32xf32> -> vector<384x32xf32>
    %47 = arith.addf %42, %46 : vector<384x32xf32>
    %48 = vector.extract_strided_slice %6 {offsets = [50, 0], sizes = [384, 3], strides = [1, 1]} : vector<456x3xf32> to vector<384x3xf32>
    %c8 = arith.constant 8 : index
    %c0_38 = arith.constant 0 : index
    %c0_39 = arith.constant 0 : index
    %49 = vector.load %arg2[%c8, %c0_38, %c0_39] : memref<9x3x32xf32, #tpu.memory_space<vmem>>, vector<1x3x32xf32>
    %50 = vector.shape_cast %49 : vector<1x3x32xf32> to vector<3x32xf32>
    %cst_40 = arith.constant dense<0.000000e+00> : vector<384x32xf32>
    %51 = tpu.matmul %48, %50, %cst_40 {dimension_numbers = #tpu.dot_dimension_numbers<[1], [0], [0], [1], [0, 0, 1, 1], [], []>} : vector<384x3xf32>, vector<3x32xf32>, vector<384x32xf32> -> vector<384x32xf32>
    %52 = arith.addf %47, %51 : vector<384x32xf32>
    %c0_41 = arith.constant 0 : index
    %c0_42 = arith.constant 0 : index
    %53 = vector.load %arg3[%c0_41, %c0_42] : memref<1x32xf32, #tpu.memory_space<vmem>>, vector<1x32xf32>
    %54 = vector.broadcast %53 : vector<1x32xf32> to vector<384x32xf32>
    %55 = arith.addf %52, %54 : vector<384x32xf32>
    %cst_43 = arith.constant 0.000000e+00 : f32
    %56 = vector.broadcast %cst_43 : f32 to vector<384x32xf32>
    %57 = arith.maximumf %55, %56 : vector<384x32xf32>
    %58 = vector.shape_cast %57 : vector<384x32xf32> to vector<16x24x32xf32>
    %59 = vector.extract_strided_slice %58 {offsets = [0, 0, 0], sizes = [16, 16, 32], strides = [1, 1, 1]} : vector<16x24x32xf32> to vector<16x16x32xf32>
    %c0_44 = arith.constant 0 : index
    %c0_45 = arith.constant 0 : index
    %c0_46 = arith.constant 0 : index
    %c0_47 = arith.constant 0 : index
    %60 = vector.load %arg4[%c0_44, %c0_45, %c0_46, %c0_47] : memref<1x16x16x32xf32, #tpu.memory_space<vmem>>, vector<1x16x16x32xf32>
    %61 = vector.shape_cast %60 : vector<1x16x16x32xf32> to vector<16x16x32xf32>
    %62 = vector.shape_cast %59 : vector<16x16x32xf32> to vector<1x16x16x32xf32>
    tpu.vector_store %arg4[%c0_44, %c0_45, %c0_46, %c0_47], %62 {strides = array<i32>} : memref<1x16x16x32xf32, #tpu.memory_space<vmem>>, vector<1x16x16x32xf32>,
    return
  }
  func.func @transform_0(%arg0: i32) -> (i32, i32, i32, i32) {
    %c0_i32 = arith.constant 0 : i32
    %c0_i32_0 = arith.constant 0 : i32
    %c0_i32_1 = arith.constant 0 : i32
    %c0_i32_2 = arith.constant 0 : i32
    return %arg0, %c0_i32, %c0_i32_0, %c0_i32_1 : i32, i32, i32, i32
  }
  func.func @transform_1(%arg0: i32) -> (i32, i32, i32) {
    %c0_i32 = arith.constant 0 : i32
    %c0_i32_0 = arith.constant 0 : i32
    %c0_i32_1 = arith.constant 0 : i32
    %c0_i32_2 = arith.constant 0 : i32
    return %c0_i32, %c0_i32_0, %c0_i32_1 : i32, i32, i32
  }
  func.func @transform_2(%arg0: i32) -> (i32, i32) {
    %c0_i32 = arith.constant 0 : i32
    %c0_i32_0 = arith.constant 0 : i32
    %c0_i32_1 = arith.constant 0 : i32
    return %c0_i32, %c0_i32_0 : i32, i32
  }
  func.func @transform_3(%arg0: i32) -> (i32, i32, i32, i32) {
    %c0_i32 = arith.constant 0 : i32
    %c0_i32_0 = arith.constant 0 : i32
    %c0_i32_1 = arith.constant 0 : i32
    %c0_i32_2 = arith.constant 0 : i32
    return %arg0, %c0_i32, %c0_i32_0, %c0_i32_1 : i32, i32, i32, i32
  }
}

</mosaic_0001>

<llo_original>
// kernel: tpu_custom_call.1
$region0: #{tpu_custom_call.1}
  #allocation0 [shape = 'u32[]', space=smem, size = 0x4, offset = 0x4, fixed_abs, tag = 'smem constant byte address 0x4 - core index']
  #allocation1 [shape = 'u32[144,128]{1,0:T(1,128)}', space=vmem, size = 0x12000, scoped, tag = 'internal scratch']
  #allocation2 [shape = 'f32[19,24,3]{2,1,0:T(8,128)}', space=vmem, size = 0x39000, scoped, tag = 'scratch operand']
  %s0 = inlined_call_operand.vmem [shape: f32[2,16,16,3], index: 0, kind: input, shape index: {}]
  %s1 = inlined_call_operand.vmem [shape: f32[9,3,32], index: 1, kind: input, shape index: {}]
  %s2 = inlined_call_operand.vmem [shape: f32[1,32], index: 2, kind: input, shape index: {}]
  %s3 = inlined_call_operand.hbm [shape: f32[2,16,16,32], index: 3, kind: output, shape index: {}]
  %s4 = sld [smem:[#allocation0]]
  $region45: #{tpu_custom_call.1} parent=0
    _
  %s6 = ssub.s32 1, %s4
  %s7 = scalar_select 0, %s6, %s4
  $region1: #{tpu_custom_call.1} parent=0
    #allocation3 [shape = 'u8[262144]{0}', space=vmem, size = 0x40000, scoped, tag = 'output window, operand 0']
    #allocation4 [shape = 's32[2]{0}', space=sflag, size = 0x8, scoped, tag = 'scoped memory for tpu_custom_call.1']
    %8 = vsyncpa [#allocation4], 0
    %s9 = scalar_lea.sflag [#allocation4], 1
    %10 = vsyncpa %s9, 0
    loop: start=0, step=1, limit=4
    $region2: #{tpu_custom_call.1} parent=1 // loop_pre_header
      _
    $region3: #{tpu_custom_call.1} parent=1 // loop_header
      %s12 = sphi 0, %s16
      %p13 = scmp.ge.s32.totalorder %s12, 4
      %s22 = sphi 0, %s24
      %s25 = sphi 0, %s22
      %s26 = sphi 0, %s25
      %s42 = sphi 0, %s26
      %s46 = sphi 0, %s46
      %s48 = sphi 0, %s46
      %s49 = sphi 0, %s48
      %s63 = sphi 0, %s49
      %s67 = sphi 0, %s67
      %s69 = sphi 0, %s67
      %s70 = sphi 0, %s69
      %s84 = sphi 0, %s70
      %s90 = sphi 0, %s92
      %s93 = sphi 0, %s90
      %s94 = sphi 0, %s93
      %s110 = sphi 0, %s94
    $region4: #{tpu_custom_call.1} parent=1 // loop_header_branch
      %15 = sbr.rel (%p13) target = $region8
    $region5: #{tpu_custom_call.1} parent=1 // loop_body
      %s17 = ssub.s32 %s12, 1
      %s18 = ssub.s32 %s12, 2
      %s19 = sadd.s32 %s12, 1
      %s20 = ssub.s32 %s12, %s19
      %p21 = scmp.eq.s32.totalorder %s20, 0
      %s23 = sadd.s32 %s22, 1
      %s24 = scalar_select %p21, %s22, %s23
      %p27 = pneg %p21
      %p28 = scmp.eq.s32.totalorder %s12, 1
      %p29 = por %p27, %p28
      %p30 = scmp.ne.s32.totalorder %s22, %s25
      %p31 = scmp.eq.s32.totalorder %s12, 0
      %p32 = por %p30, %p31
      %p33 = scmp.ne.s32.totalorder %s22, %s25
      %p34 = scmp.eq.s32.totalorder %s17, 1
      %p35 = por %p33, %p34
      %p36 = scmp.ne.s32.totalorder %s25, %s26
      %p37 = scmp.eq.s32.totalorder %s17, 0
      %p38 = por %p36, %p37
      %p39 = scmp.ne.s32.totalorder %s25, %s26
      %p40 = scmp.eq.s32.totalorder %s18, 1
      %p41 = por %p39, %p40
      %p43 = scmp.ne.s32.totalorder %s26, %s42
      %p44 = scmp.eq.s32.totalorder %s18, 0
      %p45 = por %p43, %p44
      %s47 = sadd.s32 %s46, 1
      %p50 = scmp.eq.s32.totalorder %s12, 1
      %p51 = scmp.ne.s32.totalorder %s46, %s48
      %p52 = scmp.eq.s32.totalorder %s12, 0
      %p53 = por %p51, %p52
      %p54 = scmp.ne.s32.totalorder %s46, %s48
      %p55 = scmp.eq.s32.totalorder %s17, 1
      %p56 = por %p54, %p55
      %p57 = scmp.ne.s32.totalorder %s48, %s49
      %p58 = scmp.eq.s32.totalorder %s17, 0
      %p59 = por %p57, %p58
      %p60 = scmp.ne.s32.totalorder %s48, %s49
      %p61 = scmp.eq.s32.totalorder %s18, 1
      %p62 = por %p60, %p61
      %p64 = scmp.ne.s32.totalorder %s49, %s63
      %p65 = scmp.eq.s32.totalorder %s18, 0
      %p66 = por %p64, %p65
      %s68 = sadd.s32 %s67, 1
      %p71 = scmp.eq.s32.totalorder %s12, 1
      %p72 = scmp.ne.s32.totalorder %s67, %s69
      %p73 = scmp.eq.s32.totalorder %s12, 0
      %p74 = por %p72, %p73
      %p75 = scmp.ne.s32.totalorder %s67, %s69
      %p76 = scmp.eq.s32.totalorder %s17, 1
      %p77 = por %p75, %p76
      %p78 = scmp.ne.s32.totalorder %s69, %s70
      %p79 = scmp.eq.s32.totalorder %s17, 0
      %p80 = por %p78, %p79
      %p81 = scmp.ne.s32.totalorder %s69, %s70
      %p82 = scmp.eq.s32.totalorder %s18, 1
      %p83 = por %p81, %p82
      %p85 = scmp.ne.s32.totalorder %s70, %s84
      %p86 = scmp.eq.s32.totalorder %s18, 0
      %p87 = por %p85, %p86
      %s88 = ssub.s32 %s12, %s19
      %p89 = scmp.eq.s32.totalorder %s88, 0
      %s91 = sadd.s32 %s90, 1
      %s92 = scalar_select %p89, %s90, %s91
      %p95 = pneg %p89
      %p96 = scmp.eq.s32.totalorder %s12, 1
      %p97 = por %p95, %p96
      %p98 = scmp.ne.s32.totalorder %s90, %s93
      %p99 = scmp.eq.s32.totalorder %s12, 0
      %p100 = por %p98, %p99
      %p101 = scmp.ne.s32.totalorder %s90, %s93
      %p102 = scmp.eq.s32.totalorder %s17, 1
      %p103 = por %p101, %p102
      %p104 = scmp.ne.s32.totalorder %s93, %s94
      %p105 = scmp.eq.s32.totalorder %s17, 0
      %p106 = por %p104, %p105
      %p107 = scmp.ne.s32.totalorder %s93, %s94
      %p108 = scmp.eq.s32.totalorder %s18, 1
      %p109 = por %p107, %p108
      %p111 = scmp.ne.s32.totalorder %s94, %s110
      %p112 = scmp.eq.s32.totalorder %s18, 0
      %p113 = por %p111, %p112
      %p114 = scmp.le.s32.totalorder 1, %s12
      %p115 = scmp.lt.s32.totalorder %s12, 3
      %p116 = pnand %p114, %p115
      %p117 = pneg %p116
      // Predicated region
      $region9: #{tpu_custom_call.1} parent=5 // pred_check
        _
      $region10: #{tpu_custom_call.1} parent=5 // pred_check_branch
        %119 = sbr.rel (%p116) target = $region12
      $region11: #{tpu_custom_call.1} parent=5 // pred_region
        %s120 = ssub.s32 %s12, 1
        // Predicated region
        $region13: #{tpu_custom_call.1} parent=11 // pred_check
          %p121 = pneg %p59
        $region14: #{tpu_custom_call.1} parent=11 // pred_check_branch
          %123 = sbr.rel (%p121) target = $region16
        $region15: #{tpu_custom_call.1} parent=11 // pred_region
          _
        $region16: #{tpu_custom_call.1} parent=11 // pred_fallthru
          _
        // Predicated region
        $region17: #{tpu_custom_call.1} parent=11 // pred_check
          %p124 = pneg %p80
        $region18: #{tpu_custom_call.1} parent=11 // pred_check_branch
          %126 = sbr.rel (%p124) target = $region20
        $region19: #{tpu_custom_call.1} parent=11 // pred_region
          _
        $region20: #{tpu_custom_call.1} parent=11 // pred_fallthru
          _
      $region12: #{tpu_custom_call.1} parent=5 // pred_fallthru
        _
      %p127 = scmp.lt.s32.totalorder %s12, 2
      // Predicated region
      $region21: #{tpu_custom_call.1} parent=5 // pred_check
        %p128 = pneg %p127
      $region22: #{tpu_custom_call.1} parent=5 // pred_check_branch
        %130 = sbr.rel (%p128) target = $region24
      $region23: #{tpu_custom_call.1} parent=5 // pred_region
        // Predicated region
        $region25: #{tpu_custom_call.1} parent=23 // pred_check
          %p131 = pneg %p32
        $region26: #{tpu_custom_call.1} parent=23 // pred_check_branch
          %133 = sbr.rel (%p131) target = $region28
        $region27: #{tpu_custom_call.1} parent=23 // pred_region
          %p134 = scmp.lt.s32.totalorder %s12, 1
          %s135 = scalar_select %p134, %s12, 1
          %s136 = smul.addr %s135, 32
          %s137 = smul.addr %s136, 8
          %s138 = scalar_lea.vmem %s0, %s137
        $region28: #{tpu_custom_call.1} parent=23 // pred_fallthru
          _
      $region24: #{tpu_custom_call.1} parent=5 // pred_fallthru
        _
      %p139 = scmp.le.s32.totalorder 1, %s12
      %p140 = scmp.lt.s32.totalorder %s12, 3
      %p141 = pnand %p139, %p140
      %p142 = pneg %p141
      // Predicated region
      $region29: #{tpu_custom_call.1} parent=5 // pred_check
        _
      $region30: #{tpu_custom_call.1} parent=5 // pred_check_branch
        %144 = sbr.rel (%p141) target = $region32
      $region31: #{tpu_custom_call.1} parent=5 // pred_region
        %s145 = ssub.s32 %s12, 1
        %p146 = scmp.lt.s32.totalorder %s17, 1
        %s147 = scalar_select %p146, %s17, 1
        %s148 = smul.addr %s147, 32
        %s149 = smul.addr %s148, 8
        %s150 = scalar_lea.vmem %s0, %s149
        %p151 = pneg %p38
        %p152 = pneg %p35
        %p153 = pneg %p59
        %p154 = pneg %p56
        %p155 = pneg %p80
        %p156 = pneg %p77
        %p157 = pneg %p106
        %p158 = pneg %p103
        %s159 = sand.u32 %s93, 1
        %s160 = scalar_lea.sflag [#allocation4], %s159
        %s161 = sand.u32 %s93, 1
        %s162 = smul.addr %s161, 256
        %s163 = scalar_lea.vmem [#allocation3], %s162
        %p164 = scmp.lt.s32.totalorder %s17, 1
        %s165 = scalar_select %p164, %s17, 1
        %s166 = smul.addr %s165, 32
        %s167 = smul.addr %s166, 8
        %s168 = scalar_lea.vmem %s0, %s167
        %vm169 = vcmask 23552
        %170 = vst.msk [vmem:[#allocation2] sm:$0xff] %vm169, 0.0
        %171 = vst.msk [vmem:[#allocation2 + $0x8] sm:$0xff] %vm169, 0.0
        %172 = vst.msk [vmem:[#allocation2 + $0x10] sm:$0xff] %vm169, 0.0
        %173 = vst.msk [vmem:[#allocation2 + $0x18] sm:$0xff] %vm169, 0.0
        %174 = vst.msk [vmem:[#allocation2 + $0x20] sm:$0xff] %vm169, 0.0
        %175 = vst.msk [vmem:[#allocation2 + $0x28] sm:$0xff] %vm169, 0.0
        %176 = vst.msk [vmem:[#allocation2 + $0x30] sm:$0xff] %vm169, 0.0
        %177 = vst.msk [vmem:[#allocation2 + $0x38] sm:$0xff] %vm169, 0.0
        %178 = vst.msk [vmem:[#allocation2 + $0x40] sm:$0xff] %vm169, 0.0
        %179 = vst.msk [vmem:[#allocation2 + $0x48] sm:$0xff] %vm169, 0.0
        %180 = vst.msk [vmem:[#allocation2 + $0x50] sm:$0xff] %vm169, 0.0
        %181 = vst.msk [vmem:[#allocation2 + $0x58] sm:$0xff] %vm169, 0.0
        %182 = vst.msk [vmem:[#allocation2 + $0x60] sm:$0xff] %vm169, 0.0
        %183 = vst.msk [vmem:[#allocation2 + $0x68] sm:$0xff] %vm169, 0.0
        %184 = vst.msk [vmem:[#allocation2 + $0x70] sm:$0xff] %vm169, 0.0
        %185 = vst.msk [vmem:[#allocation2 + $0x78] sm:$0xff] %vm169, 0.0
        %186 = vst.msk [vmem:[#allocation2 + $0x80] sm:$0xff] %vm169, 0.0
        %187 = vst.msk [vmem:[#allocation2 + $0x88] sm:$0xff] %vm169, 0.0
        %188 = vst.msk [vmem:[#allocation2 + $0x90] sm:$0xff] %vm169, 0.0
        %189 = vst.msk [vmem:[#allocation2 + $0x98] sm:$0xff] %vm169, 0.0
        %190 = vst.msk [vmem:[#allocation2 + $0xa0] sm:$0xff] %vm169, 0.0
        %191 = vst.msk [vmem:[#allocation2 + $0xa8] sm:$0xff] %vm169, 0.0
        %192 = vst.msk [vmem:[#allocation2 + $0xb0] sm:$0xff] %vm169, 0.0
        %193 = vst.msk [vmem:[#allocation2 + $0xb8] sm:$0xff] %vm169, 0.0
        %194 = vst.msk [vmem:[#allocation2 + $0xc0] sm:$0xff] %vm169, 0.0
        %195 = vst.msk [vmem:[#allocation2 + $0xc8] sm:$0xff] %vm169, 0.0
        %196 = vst.msk [vmem:[#allocation2 + $0xd0] sm:$0xff] %vm169, 0.0
        %197 = vst.msk [vmem:[#allocation2 + $0xd8] sm:$0xff] %vm169, 0.0
        %198 = vst.msk [vmem:[#allocation2 + $0xe0] sm:$0xff] %vm169, 0.0
        %199 = vst.msk [vmem:[#allocation2 + $0xe8] sm:$0xff] %vm169, 0.0
        %200 = vst.msk [vmem:[#allocation2 + $0xf0] sm:$0xff] %vm169, 0.0
        %201 = vst.msk [vmem:[#allocation2 + $0xf8] sm:$0xff] %vm169, 0.0
        %202 = vst.msk [vmem:[#allocation2 + $0x100] sm:$0xff] %vm169, 0.0
        %203 = vst.msk [vmem:[#allocation2 + $0x108] sm:$0xff] %vm169, 0.0
        %204 = vst.msk [vmem:[#allocation2 + $0x110] sm:$0xff] %vm169, 0.0
        %205 = vst.msk [vmem:[#allocation2 + $0x118] sm:$0xff] %vm169, 0.0
        %206 = vst.msk [vmem:[#allocation2 + $0x120] sm:$0xff] %vm169, 0.0
        %207 = vst.msk [vmem:[#allocation2 + $0x128] sm:$0xff] %vm169, 0.0
        %208 = vst.msk [vmem:[#allocation2 + $0x130] sm:$0xff] %vm169, 0.0
        %209 = vst.msk [vmem:[#allocation2 + $0x138] sm:$0xff] %vm169, 0.0
        %210 = vst.msk [vmem:[#allocation2 + $0x140] sm:$0xff] %vm169, 0.0
        %211 = vst.msk [vmem:[#allocation2 + $0x148] sm:$0xff] %vm169, 0.0
        %212 = vst.msk [vmem:[#allocation2 + $0x150] sm:$0xff] %vm169, 0.0
        %213 = vst.msk [vmem:[#allocation2 + $0x158] sm:$0xff] %vm169, 0.0
        %214 = vst.msk [vmem:[#allocation2 + $0x160] sm:$0xff] %vm169, 0.0
        %215 = vst.msk [vmem:[#allocation2 + $0x168] sm:$0xff] %vm169, 0.0
        %216 = vst.msk [vmem:[#allocation2 + $0x170] sm:$0xff] %vm169, 0.0
        %217 = vst.msk [vmem:[#allocation2 + $0x178] sm:$0xff] %vm169, 0.0
        %218 = vst.msk [vmem:[#allocation2 + $0x180] sm:$0xff] %vm169, 0.0
        %219 = vst.msk [vmem:[#allocation2 + $0x188] sm:$0xff] %vm169, 0.0
        %220 = vst.msk [vmem:[#allocation2 + $0x190] sm:$0xff] %vm169, 0.0
        %221 = vst.msk [vmem:[#allocation2 + $0x198] sm:$0xff] %vm169, 0.0
        %222 = vst.msk [vmem:[#allocation2 + $0x1a0] sm:$0xff] %vm169, 0.0
        %223 = vst.msk [vmem:[#allocation2 + $0x1a8] sm:$0xff] %vm169, 0.0
        %224 = vst.msk [vmem:[#allocation2 + $0x1b0] sm:$0xff] %vm169, 0.0
        %225 = vst.msk [vmem:[#allocation2 + $0x1b8] sm:$0xff] %vm169, 0.0
        %226 = vst.msk [vmem:[#allocation2 + $0x1c0] sm:$0xff] %vm169, 0.0
        %v227 = vld [vmem:[%s168] sm:$0xff]
        %v228 = vld [vmem:[%s168 + $0x8] sm:$0xff]
        %v229 = vld [vmem:[%s168 + $0x10] sm:$0xff]
        %v230 = vld [vmem:[%s168 + $0x18] sm:$0xff]
        %v231 = vld [vmem:[%s168 + $0x20] sm:$0xff]
        %v232 = vld [vmem:[%s168 + $0x28] sm:$0xff]
        %v233 = vld [vmem:[%s168 + $0x30] sm:$0xff]
        %v234 = vld [vmem:[%s168 + $0x38] sm:$0xff]
        %v235 = vld [vmem:[%s168 + $0x40] sm:$0xff]
        %v236 = vld [vmem:[%s168 + $0x48] sm:$0xff]
        %v237 = vld [vmem:[%s168 + $0x50] sm:$0xff]
        %v238 = vld [vmem:[%s168 + $0x58] sm:$0xff]
        %v239 = vld [vmem:[%s168 + $0x60] sm:$0xff]
        %v240 = vld [vmem:[%s168 + $0x68] sm:$0xff]
        %v241 = vld [vmem:[%s168 + $0x70] sm:$0xff]
        %v242 = vld [vmem:[%s168 + $0x78] sm:$0xff]
        %v243 = vld [vmem:[%s168 + $0x80] sm:$0xff]
        %v244 = vld [vmem:[%s168 + $0x88] sm:$0xff]
        %v245 = vld [vmem:[%s168 + $0x90] sm:$0xff]
        %v246 = vld [vmem:[%s168 + $0x98] sm:$0xff]
        %v247 = vld [vmem:[%s168 + $0xa0] sm:$0xff]
        %v248 = vld [vmem:[%s168 + $0xa8] sm:$0xff]
        %v249 = vld [vmem:[%s168 + $0xb0] sm:$0xff]
        %v250 = vld [vmem:[%s168 + $0xb8] sm:$0xff]
        %v251 = vld [vmem:[%s168 + $0xc0] sm:$0xff]
        %v252 = vld [vmem:[%s168 + $0xc8] sm:$0xff]
        %v253 = vld [vmem:[%s168 + $0xd0] sm:$0xff]
        %v254 = vld [vmem:[%s168 + $0xd8] sm:$0xff]
        %v255 = vld [vmem:[%s168 + $0xe0] sm:$0xff]
        %v256 = vld [vmem:[%s168 + $0xe8] sm:$0xff]
        %v257 = vld [vmem:[%s168 + $0xf0] sm:$0xff]
        %v258 = vld [vmem:[%s168 + $0xf8] sm:$0xff]
        %s259 = scalar_lea.vmem [#allocation2], 24
        %260 = vst.msk [vmem:[%s259 + $0x1] sm:$0xff] %vm169, %v227
        %261 = vst.msk [vmem:[%s259 + $0x9] sm:$0xff] %vm169, %v228
        %262 = vst.msk [vmem:[%s259 + $0x19] sm:$0xff] %vm169, %v229
        %263 = vst.msk [vmem:[%s259 + $0x21] sm:$0xff] %vm169, %v230
        %264 = vst.msk [vmem:[%s259 + $0x31] sm:$0xff] %vm169, %v231
        %265 = vst.msk [vmem:[%s259 + $0x39] sm:$0xff] %vm169, %v232
        %266 = vst.msk [vmem:[%s259 + $0x49] sm:$0xff] %vm169, %v233
        %267 = vst.msk [vmem:[%s259 + $0x51] sm:$0xff] %vm169, %v234
        %268 = vst.msk [vmem:[%s259 + $0x61] sm:$0xff] %vm169, %v235
        %269 = vst.msk [vmem:[%s259 + $0x69] sm:$0xff] %vm169, %v236
        %270 = vst.msk [vmem:[%s259 + $0x79] sm:$0xff] %vm169, %v237
        %271 = vst.msk [vmem:[%s259 + $0x81] sm:$0xff] %vm169, %v238
        %272 = vst.msk [vmem:[%s259 + $0x91] sm:$0xff] %vm169, %v239
        %273 = vst.msk [vmem:[%s259 + $0x99] sm:$0xff] %vm169, %v240
        %274 = vst.msk [vmem:[%s259 + $0xa9] sm:$0xff] %vm169, %v241
        %275 = vst.msk [vmem:[%s259 + $0xb1] sm:$0xff] %vm169, %v242
        %276 = vst.msk [vmem:[%s259 + $0xc1] sm:$0xff] %vm169, %v243
        %277 = vst.msk [vmem:[%s259 + $0xc9] sm:$0xff] %vm169, %v244
        %278 = vst.msk [vmem:[%s259 + $0xd9] sm:$0xff] %vm169, %v245
        %279 = vst.msk [vmem:[%s259 + $0xe1] sm:$0xff] %vm169, %v246
        %280 = vst.msk [vmem:[%s259 + $0xf1] sm:$0xff] %vm169, %v247
        %281 = vst.msk [vmem:[%s259 + $0xf9] sm:$0xff] %vm169, %v248
        %282 = vst.msk [vmem:[%s259 + $0x109] sm:$0xff] %vm169, %v249
        %283 = vst.msk [vmem:[%s259 + $0x111] sm:$0xff] %vm169, %v250
        %284 = vst.msk [vmem:[%s259 + $0x121] sm:$0xff] %vm169, %v251
        %285 = vst.msk [vmem:[%s259 + $0x129] sm:$0xff] %vm169, %v252
        %286 = vst.msk [vmem:[%s259 + $0x139] sm:$0xff] %vm169, %v253
        %287 = vst.msk [vmem:[%s259 + $0x141] sm:$0xff] %vm169, %v254
        %288 = vst.msk [vmem:[%s259 + $0x151] sm:$0xff] %vm169, %v255
        %289 = vst.msk [vmem:[%s259 + $0x159] sm:$0xff] %vm169, %v256
        %290 = vst.msk [vmem:[%s259 + $0x169] sm:$0xff] %vm169, %v257
        %291 = vst.msk [vmem:[%s259 + $0x171] sm:$0xff] %vm169, %v258
        %v292 = vld [vmem:[#allocation2] sm:$0xff]
        %v293 = vld [vmem:[#allocation2 + $0x8] sm:$0xff]
        %v294 = vld [vmem:[#allocation2 + $0x10] sm:$0xff]
        %v295 = vld [vmem:[#allocation2 + $0x18] sm:$0xff]
        %v296 = vld [vmem:[#allocation2 + $0x20] sm:$0xff]
        %v297 = vld [vmem:[#allocation2 + $0x28] sm:$0xff]
        %v298 = vld [vmem:[#allocation2 + $0x30] sm:$0xff]
        %v299 = vld [vmem:[#allocation2 + $0x38] sm:$0xff]
        %v300 = vld [vmem:[#allocation2 + $0x40] sm:$0xff]
        %v301 = vld [vmem:[#allocation2 + $0x48] sm:$0xff]
        %v302 = vld [vmem:[#allocation2 + $0x50] sm:$0xff]
        %v303 = vld [vmem:[#allocation2 + $0x58] sm:$0xff]
        %v304 = vld [vmem:[#allocation2 + $0x60] sm:$0xff]
        %v305 = vld [vmem:[#allocation2 + $0x68] sm:$0xff]
        %v306 = vld [vmem:[#allocation2 + $0x70] sm:$0xff]
        %v307 = vld [vmem:[#allocation2 + $0x78] sm:$0xff]
        %v308 = vld [vmem:[#allocation2 + $0x80] sm:$0xff]
        %v309 = vld [vmem:[#allocation2 + $0x88] sm:$0xff]
        %v310 = vld [vmem:[#allocation2 + $0x90] sm:$0xff]
        %v311 = vld [vmem:[#allocation2 + $0x98] sm:$0xff]
        %v312 = vld [vmem:[#allocation2 + $0xa0] sm:$0xff]
        %v313 = vld [vmem:[#allocation2 + $0xa8] sm:$0xff]
        %v314 = vld [vmem:[#allocation2 + $0xb0] sm:$0xff]
        %v315 = vld [vmem:[#allocation2 + $0xb8] sm:$0xff]
        %v316 = vld [vmem:[#allocation2 + $0xc0] sm:$0xff]
        %v317 = vld [vmem:[#allocation2 + $0xc8] sm:$0xff]
        %v318 = vld [vmem:[#allocation2 + $0xd0] sm:$0xff]
        %v319 = vld [vmem:[#allocation2 + $0xd8] sm:$0xff]
        %v320 = vld [vmem:[#allocation2 + $0xe0] sm:$0xff]
        %v321 = vld [vmem:[#allocation2 + $0xe8] sm:$0xff]
        %v322 = vld [vmem:[#allocation2 + $0xf0] sm:$0xff]
        %v323 = vld [vmem:[#allocation2 + $0xf8] sm:$0xff]
        %v324 = vld [vmem:[#allocation2 + $0x100] sm:$0xff]
        %v325 = vld [vmem:[#allocation2 + $0x108] sm:$0xff]
        %v326 = vld [vmem:[#allocation2 + $0x110] sm:$0xff]
        %v327 = vld [vmem:[#allocation2 + $0x118] sm:$0xff]
        %v328 = vld [vmem:[#allocation2 + $0x120] sm:$0xff]
        %v329 = vld [vmem:[#allocation2 + $0x128] sm:$0xff]
        %v330 = vld [vmem:[#allocation2 + $0x130] sm:$0xff]
        %v331 = vld [vmem:[#allocation2 + $0x138] sm:$0xff]
        %v332 = vld [vmem:[#allocation2 + $0x140] sm:$0xff]
        %v333 = vld [vmem:[#allocation2 + $0x148] sm:$0xff]
        %v334 = vld [vmem:[#allocation2 + $0x150] sm:$0xff]
        %v335 = vld [vmem:[#allocation2 + $0x158] sm:$0xff]
        %v336 = vld [vmem:[#allocation2 + $0x160] sm:$0xff]
        %v337 = vld [vmem:[#allocation2 + $0x168] sm:$0xff]
        %v338 = vld [vmem:[#allocation2 + $0x170] sm:$0xff]
        %v339 = vld [vmem:[#allocation2 + $0x178] sm:$0xff]
        %v340 = vld [vmem:[#allocation2 + $0x180] sm:$0xff]
        %v341 = vld [vmem:[#allocation2 + $0x188] sm:$0xff]
        %v342 = vld [vmem:[#allocation2 + $0x190] sm:$0xff]
        %v343 = vld [vmem:[#allocation2 + $0x198] sm:$0xff]
        %v344 = vld [vmem:[#allocation2 + $0x1a0] sm:$0xff]
        %v345 = vld [vmem:[#allocation2 + $0x1a8] sm:$0xff]
        %v346 = vld [vmem:[#allocation2 + $0x1b0] sm:$0xff]
        %v347 = vld [vmem:[%s1] sm:$0x7]
        %s348 = scalar_lea.vmem %s1, 4
        %v349 = vld [vmem:[%s348] sm:$0x7]
        %vm399 = vcmask 1046528
        %v400 = vrot.slane %v292, 1
        %v401 = vrot.slane %v293, 1
        %v402 = vsel %vm399, %v400, %v401
        %v403 = vrot.slane %v294, 1
        %v404 = vsel %vm399, %v401, %v403
        %v405 = vrot.slane %v295, 1
        %v406 = vsel %vm399, %v403, %v405
        %v407 = vrot.slane %v296, 1
        %v408 = vsel %vm399, %v405, %v407
        %v409 = vrot.slane %v297, 1
        %v410 = vsel %vm399, %v407, %v409
        %v411 = vrot.slane %v298, 1
        %v412 = vsel %vm399, %v409, %v411
        %v413 = vrot.slane %v299, 1
        %v414 = vsel %vm399, %v411, %v413
        %v415 = vrot.slane %v300, 1
        %v416 = vsel %vm399, %v413, %v415
        %v417 = vrot.slane %v301, 1
        %v418 = vsel %vm399, %v415, %v417
        %v419 = vrot.slane %v302, 1
        %v420 = vsel %vm399, %v417, %v419
        %v421 = vrot.slane %v303, 1
        %v422 = vsel %vm399, %v419, %v421
        %v423 = vrot.slane %v304, 1
        %v424 = vsel %vm399, %v421, %v423
        %v425 = vrot.slane %v305, 1
        %v426 = vsel %vm399, %v423, %v425
        %v427 = vrot.slane %v306, 1
        %v428 = vsel %vm399, %v425, %v427
        %v429 = vrot.slane %v307, 1
        %v430 = vsel %vm399, %v427, %v429
        %v431 = vrot.slane %v308, 1
        %v432 = vsel %vm399, %v429, %v431
        %v433 = vrot.slane %v309, 1
        %v434 = vsel %vm399, %v431, %v433
        %v435 = vrot.slane %v310, 1
        %v436 = vsel %vm399, %v433, %v435
        %v437 = vrot.slane %v311, 1
        %v438 = vsel %vm399, %v435, %v437
        %v439 = vrot.slane %v312, 1
        %v440 = vsel %vm399, %v437, %v439
        %v441 = vrot.slane %v313, 1
        %v442 = vsel %vm399, %v439, %v441
        %v443 = vrot.slane %v314, 1
        %v444 = vsel %vm399, %v441, %v443
        %v445 = vrot.slane %v315, 1
        %v446 = vsel %vm399, %v443, %v445
        %v447 = vrot.slane %v316, 1
        %v448 = vsel %vm399, %v445, %v447
        %v449 = vrot.slane %v317, 1
        %v450 = vsel %vm399, %v447, %v449
        %v451 = vrot.slane %v318, 1
        %v452 = vsel %vm399, %v449, %v451
        %v453 = vrot.slane %v319, 1
        %v454 = vsel %vm399, %v451, %v453
        %v455 = vrot.slane %v320, 1
        %v456 = vsel %vm399, %v453, %v455
        %v457 = vrot.slane %v321, 1
        %v458 = vsel %vm399, %v455, %v457
        %v459 = vrot.slane %v322, 1
        %v460 = vsel %vm399, %v457, %v459
        %v461 = vrot.slane %v323, 1
        %v462 = vsel %vm399, %v459, %v461
        %v463 = vrot.slane %v324, 1
        %v464 = vsel %vm399, %v461, %v463
        %v465 = vrot.slane %v325, 1
        %v466 = vsel %vm399, %v463, %v465
        %v467 = vrot.slane %v326, 1
        %v468 = vsel %vm399, %v465, %v467
        %v469 = vrot.slane %v327, 1
        %v470 = vsel %vm399, %v467, %v469
        %v471 = vrot.slane %v328, 1
        %v472 = vsel %vm399, %v469, %v471
        %v473 = vrot.slane %v329, 1
        %v474 = vsel %vm399, %v471, %v473
        %v475 = vrot.slane %v330, 1
        %v476 = vsel %vm399, %v473, %v475
        %v477 = vrot.slane %v331, 1
        %v478 = vsel %vm399, %v475, %v477
        %v479 = vrot.slane %v332, 1
        %v480 = vsel %vm399, %v477, %v479
        %v481 = vrot.slane %v333, 1
        %v482 = vsel %vm399, %v479, %v481
        %v483 = vrot.slane %v334, 1
        %v484 = vsel %vm399, %v481, %v483
        %v485 = vrot.slane %v335, 1
        %v486 = vsel %vm399, %v483, %v485
        %v487 = vrot.slane %v336, 1
        %v488 = vsel %vm399, %v485, %v487
        %v489 = vrot.slane %v337, 1
        %v490 = vsel %vm399, %v487, %v489
        %v491 = vrot.slane %v338, 1
        %v492 = vsel %vm399, %v489, %v491
        %v493 = vrot.slane %v339, 1
        %v494 = vsel %vm399, %v491, %v493
        %v495 = vrot.slane %v340, 1
        %v496 = vsel %vm399, %v493, %v495
        %v497 = vsel %vm169, %v402, 0
        %v499 = vsel %vm169, %v404, 0
        %v501 = vsel %vm169, %v406, 0
        %v503 = vsel %vm169, %v408, 0
        %v505 = vsel %vm169, %v410, 0
        %v507 = vsel %vm169, %v412, 0
        %v509 = vsel %vm169, %v414, 0
        %v511 = vsel %vm169, %v416, 0
        %v513 = vsel %vm169, %v418, 0
        %v515 = vsel %vm169, %v420, 0
        %v517 = vsel %vm169, %v422, 0
        %v519 = vsel %vm169, %v424, 0
        %v521 = vsel %vm169, %v426, 0
        %v523 = vsel %vm169, %v428, 0
        %v525 = vsel %vm169, %v430, 0
        %v527 = vsel %vm169, %v432, 0
        %v529 = vsel %vm169, %v434, 0
        %v531 = vsel %vm169, %v436, 0
        %v533 = vsel %vm169, %v438, 0
        %v535 = vsel %vm169, %v440, 0
        %v537 = vsel %vm169, %v442, 0
        %v539 = vsel %vm169, %v444, 0
        %v541 = vsel %vm169, %v446, 0
        %v543 = vsel %vm169, %v448, 0
        %v545 = vsel %vm169, %v450, 0
        %v547 = vsel %vm169, %v452, 0
        %v549 = vsel %vm169, %v454, 0
        %v551 = vsel %vm169, %v456, 0
        %v553 = vsel %vm169, %v458, 0
        %v555 = vsel %vm169, %v460, 0
        %v557 = vsel %vm169, %v462, 0
        %v559 = vsel %vm169, %v464, 0
        %v561 = vsel %vm169, %v466, 0
        %v563 = vsel %vm169, %v468, 0
        %v565 = vsel %vm169, %v470, 0
        %v567 = vsel %vm169, %v472, 0
        %v569 = vsel %vm169, %v474, 0
        %v571 = vsel %vm169, %v476, 0
        %v573 = vsel %vm169, %v478, 0
        %v575 = vsel %vm169, %v480, 0
        %v577 = vsel %vm169, %v482, 0
        %v579 = vsel %vm169, %v484, 0
        %v581 = vsel %vm169, %v486, 0
        %v583 = vsel %vm169, %v488, 0
        %v585 = vsel %vm169, %v490, 0
        %v587 = vsel %vm169, %v492, 0
        %v589 = vsel %vm169, %v494, 0
        %v591 = vsel %vm169, %v496, 0
        %vm593 = vcmask 1042432
        %v595 = vsel %vm593, %v349, 0
        %597 = vmatprep.subr.mxu0 0.0
        %598 = vmatpush1.msra.mxu0 %v595
        %599 = vmatprep.subr.mxu0 0.0
        %600 = vmatpush1.msra.mxu0 0.0
        %601 = vmatprep.subr.mxu0 0.0
        %602 = vmatpush1.msra.mxu0 0.0
        %603 = vmatprep.subr.mxu0 0.0
        %604 = vmatpush1.msra.mxu0 0.0
        %605 = vmatprep.subr.mxu0 0.0
        %606 = vmatpush1.msra.mxu0 0.0
        %607 = vmatprep.subr.mxu0 0.0
        %608 = vmatpush1.msra.mxu0 0.0
        %609 = vmatprep.subr.mxu0 0.0
        %610 = vmatpush1.msra.mxu0 0.0
        %611 = vmatprep.subr.mxu0 0.0
        %612 = vmatpush1.msra.mxu0 0.0
        %613 = vmatprep.subr.mxu0 0.0
        %614 = vmatpush1.msra.mxu0 0.0
        %615 = vmatprep.subr.mxu0 0.0
        %616 = vmatpush1.msra.mxu0 0.0
        %617 = vmatprep.subr.mxu0 0.0
        %618 = vmatpush1.msra.mxu0 0.0
        %619 = vmatprep.subr.mxu0 0.0
        %620 = vmatpush1.msra.mxu0 0.0
        %621 = vmatprep.subr.mxu0 0.0
        %622 = vmatpush1.msra.mxu0 0.0
        %623 = vmatprep.subr.mxu0 0.0
        %624 = vmatpush1.msra.mxu0 0.0
        %625 = vmatprep.subr.mxu0 0.0
        %626 = vmatpush1.msra.mxu0 0.0
        %627 = vmatprep.subr.mxu0 0.0
        %628 = vmatpush1.msra.mxu0 0.0
        %629 = vmatprep.subr.mxu0 0.0
        %630 = vmatpush1.msra.mxu0 0.0
        %631 = vmatprep.subr.mxu0 0.0
        %632 = vmatpush1.msra.mxu0 0.0
        %633 = vmatprep.subr.mxu0 0.0
        %634 = vmatpush1.msra.mxu0 0.0
        %635 = vmatprep.subr.mxu0 0.0
        %636 = vmatpush1.msra.mxu0 0.0
        %637 = vmatprep.subr.mxu0 0.0
        %638 = vmatpush1.msra.mxu0 0.0
        %639 = vmatprep.subr.mxu0 0.0
        %640 = vmatpush1.msra.mxu0 0.0
        %641 = vmatprep.subr.mxu0 0.0
        %642 = vmatpush1.msra.mxu0 0.0
        %643 = vmatprep.subr.mxu0 0.0
        %644 = vmatpush1.msra.mxu0 0.0
        %645 = vmatprep.subr.mxu0 0.0
        %646 = vmatpush1.msra.mxu0 0.0
        %647 = vmatprep.subr.mxu0 0.0
        %648 = vmatpush1.msra.mxu0 0.0
        %649 = vmatprep.subr.mxu0 0.0
        %650 = vmatpush1.msra.mxu0 0.0
        %651 = vmatprep.subr.mxu0 0.0
        %652 = vmatpush1.msra.mxu0 0.0
        %653 = vmatprep.subr.mxu0 0.0
        %654 = vmatpush1.msra.mxu0 0.0
        %655 = vmatprep.subr.mxu0 0.0
        %656 = vmatpush1.msra.mxu0 0.0
        %657 = vmatprep.subr.mxu0 0.0
        %658 = vmatpush1.msra.mxu0 0.0
        %659 = vmatprep.subr.mxu0 0.0
        %660 = vmatpush1.msra.mxu0 0.0
        %661 = vmatprep.mubr.f32.mxu0 0.0
        %662 = vmatmul.mubr.f32.gmra.mrb[0].mxu0 %v497
        %v663 = vpop.f32.mrb[0].mxu0
        %v664 = vadd.f32 0.0, %v663
        %v665 = vpop.f32.mrb[0].mxu0
        %666 = vmatprep.mubr.f32.mxu0 0.0
        %667 = vmatmul.mubr.f32.gmra.mrb[0].mxu0 %v499
        %v668 = vpop.f32.mrb[0].mxu0
        %v669 = vadd.f32 0.0, %v668
        %v670 = vpop.f32.mrb[0].mxu0
        %671 = vmatprep.mubr.f32.mxu0 0.0
        %672 = vmatmul.mubr.f32.gmra.mrb[0].mxu0 %v501
        %v673 = vpop.f32.mrb[0].mxu0
        %v674 = vpop.f32.mrb[0].mxu0
        %675 = vmatprep.mubr.f32.mxu0 0.0
        %676 = vmatmul.mubr.f32.gmra.mrb[0].mxu0 %v503
        %v677 = vpop.f32.mrb[0].mxu0
        %v678 = vadd.f32 0.0, %v677
        %v679 = vpop.f32.mrb[0].mxu0
        %680 = vmatprep.mubr.f32.mxu0 0.0
        %681 = vmatmul.mubr.f32.gmra.mrb[0].mxu0 %v505
        %v682 = vpop.f32.mrb[0].mxu0
        %v683 = vadd.f32 0.0, %v682
        %v684 = vpop.f32.mrb[0].mxu0
        %685 = vmatprep.mubr.f32.mxu0 0.0
        %686 = vmatmul.mubr.f32.gmra.mrb[0].mxu0 %v507
        %v687 = vpop.f32.mrb[0].mxu0
        %v688 = vpop.f32.mrb[0].mxu0
        %689 = vmatprep.mubr.f32.mxu0 0.0
        %690 = vmatmul.mubr.f32.gmra.mrb[0].mxu0 %v509
        %v691 = vpop.f32.mrb[0].mxu0
        %v692 = vadd.f32 0.0, %v691
        %v693 = vpop.f32.mrb[0].mxu0
        %694 = vmatprep.mubr.f32.mxu0 0.0
        %695 = vmatmul.mubr.f32.gmra.mrb[0].mxu0 %v511
        %v696 = vpop.f32.mrb[0].mxu0
        %v697 = vadd.f32 0.0, %v696
        %v698 = vpop.f32.mrb[0].mxu0
        %699 = vmatprep.mubr.f32.mxu0 0.0
        %700 = vmatmul.mubr.f32.gmra.mrb[0].mxu0 %v513
        %v701 = vpop.f32.mrb[0].mxu0
        %v702 = vpop.f32.mrb[0].mxu0
        %703 = vmatprep.mubr.f32.mxu0 0.0
        %704 = vmatmul.mubr.f32.gmra.mrb[0].mxu0 %v515
        %v705 = vpop.f32.mrb[0].mxu0
        %v706 = vadd.f32 0.0, %v705
        %v707 = vpop.f32.mrb[0].mxu0
        %708 = vmatprep.mubr.f32.mxu0 0.0
        %709 = vmatmul.mubr.f32.gmra.mrb[0].mxu0 %v517
        %v710 = vpop.f32.mrb[0].mxu0
        %v711 = vadd.f32 0.0, %v710
        %v712 = vpop.f32.mrb[0].mxu0
        %713 = vmatprep.mubr.f32.mxu0 0.0
        %714 = vmatmul.mubr.f32.gmra.mrb[0].mxu0 %v519
        %v715 = vpop.f32.mrb[0].mxu0
        %v716 = vpop.f32.mrb[0].mxu0
        %717 = vmatprep.mubr.f32.mxu0 0.0
        %718 = vmatmul.mubr.f32.gmra.mrb[0].mxu0 %v521
        %v719 = vpop.f32.mrb[0].mxu0
        %v720 = vadd.f32 0.0, %v719
        %v721 = vpop.f32.mrb[0].mxu0
        %722 = vmatprep.mubr.f32.mxu0 0.0
        %723 = vmatmul.mubr.f32.gmra.mrb[0].mxu0 %v523
        %v724 = vpop.f32.mrb[0].mxu0
        %v725 = vadd.f32 0.0, %v724
        %v726 = vpop.f32.mrb[0].mxu0
        %727 = vmatprep.mubr.f32.mxu0 0.0
        %728 = vmatmul.mubr.f32.gmra.mrb[0].mxu0 %v525
        %v729 = vpop.f32.mrb[0].mxu0
        %v730 = vpop.f32.mrb[0].mxu0
        %731 = vmatprep.mubr.f32.mxu0 0.0
        %732 = vmatmul.mubr.f32.gmra.mrb[0].mxu0 %v527
        %v733 = vpop.f32.mrb[0].mxu0
        %v734 = vadd.f32 0.0, %v733
        %v735 = vpop.f32.mrb[0].mxu0
        %736 = vmatprep.mubr.f32.mxu0 0.0
        %737 = vmatmul.mubr.f32.gmra.mrb[0].mxu0 %v529
        %v738 = vpop.f32.mrb[0].mxu0
        %v739 = vadd.f32 0.0, %v738
        %v740 = vpop.f32.mrb[0].mxu0
        %741 = vmatprep.mubr.f32.mxu0 0.0
        %742 = vmatmul.mubr.f32.gmra.mrb[0].mxu0 %v531
        %v743 = vpop.f32.mrb[0].mxu0
        %v744 = vpop.f32.mrb[0].mxu0
        %745 = vmatprep.mubr.f32.mxu0 0.0
        %746 = vmatmul.mubr.f32.gmra.mrb[0].mxu0 %v533
        %v747 = vpop.f32.mrb[0].mxu0
        %v748 = vadd.f32 0.0, %v747
        %v749 = vpop.f32.mrb[0].mxu0
        %750 = vmatprep.mubr.f32.mxu0 0.0
        %751 = vmatmul.mubr.f32.gmra.mrb[0].mxu0 %v535
        %v752 = vpop.f32.mrb[0].mxu0
        %v753 = vadd.f32 0.0, %v752
        %v754 = vpop.f32.mrb[0].mxu0
        %755 = vmatprep.mubr.f32.mxu0 0.0
        %756 = vmatmul.mubr.f32.gmra.mrb[0].mxu0 %v537
        %v757 = vpop.f32.mrb[0].mxu0
        %v758 = vpop.f32.mrb[0].mxu0
        %759 = vmatprep.mubr.f32.mxu0 0.0
        %760 = vmatmul.mubr.f32.gmra.mrb[0].mxu0 %v539
        %v761 = vpop.f32.mrb[0].mxu0
        %v762 = vadd.f32 0.0, %v761
        %v763 = vpop.f32.mrb[0].mxu0
        %764 = vmatprep.mubr.f32.mxu0 0.0
        %765 = vmatmul.mubr.f32.gmra.mrb[0].mxu0 %v541
        %v766 = vpop.f32.mrb[0].mxu0
        %v767 = vadd.f32 0.0, %v766
        %v768 = vpop.f32.mrb[0].mxu0
        %769 = vmatprep.mubr.f32.mxu0 0.0
        %770 = vmatmul.mubr.f32.gmra.mrb[0].mxu0 %v543
        %v771 = vpop.f32.mrb[0].mxu0
        %v772 = vpop.f32.mrb[0].mxu0
        %773 = vmatprep.mubr.f32.mxu0 0.0
        %774 = vmatmul.mubr.f32.gmra.mrb[0].mxu0 %v545
        %v775 = vpop.f32.mrb[0].mxu0
        %v776 = vadd.f32 0.0, %v775
        %v777 = vpop.f32.mrb[0].mxu0
        %778 = vmatprep.mubr.f32.mxu0 0.0
        %779 = vmatmul.mubr.f32.gmra.mrb[0].mxu0 %v547
        %v780 = vpop.f32.mrb[0].mxu0
        %v781 = vadd.f32 0.0, %v780
        %v782 = vpop.f32.mrb[0].mxu0
        %783 = vmatprep.mubr.f32.mxu0 0.0
        %784 = vmatmul.mubr.f32.gmra.mrb[0].mxu0 %v549
        %v785 = vpop.f32.mrb[0].mxu0
        %v786 = vpop.f32.mrb[0].mxu0
        %787 = vmatprep.mubr.f32.mxu0 0.0
        %788 = vmatmul.mubr.f32.gmra.mrb[0].mxu0 %v551
        %v789 = vpop.f32.mrb[0].mxu0
        %v790 = vadd.f32 0.0, %v789
        %v791 = vpop.f32.mrb[0].mxu0
        %792 = vmatprep.mubr.f32.mxu0 0.0
        %793 = vmatmul.mubr.f32.gmra.mrb[0].mxu0 %v553
        %v794 = vpop.f32.mrb[0].mxu0
        %v795 = vadd.f32 0.0, %v794
        %v796 = vpop.f32.mrb[0].mxu0
        %797 = vmatprep.mubr.f32.mxu0 0.0
        %798 = vmatmul.mubr.f32.gmra.mrb[0].mxu0 %v555
        %v799 = vpop.f32.mrb[0].mxu0
        %v800 = vpop.f32.mrb[0].mxu0
        %801 = vmatprep.mubr.f32.mxu0 0.0
        %802 = vmatmul.mubr.f32.gmra.mrb[0].mxu0 %v557
        %v803 = vpop.f32.mrb[0].mxu0
        %v804 = vadd.f32 0.0, %v803
        %v805 = vpop.f32.mrb[0].mxu0
        %806 = vmatprep.mubr.f32.mxu0 0.0
        %807 = vmatmul.mubr.f32.gmra.mrb[0].mxu0 %v559
        %v808 = vpop.f32.mrb[0].mxu0
        %v809 = vadd.f32 0.0, %v808
        %v810 = vpop.f32.mrb[0].mxu0
        %811 = vmatprep.mubr.f32.mxu0 0.0
        %812 = vmatmul.mubr.f32.gmra.mrb[0].mxu0 %v561
        %v813 = vpop.f32.mrb[0].mxu0
        %v814 = vpop.f32.mrb[0].mxu0
        %815 = vmatprep.mubr.f32.mxu0 0.0
        %816 = vmatmul.mubr.f32.gmra.mrb[0].mxu0 %v563
        %v817 = vpop.f32.mrb[0].mxu0
        %v818 = vadd.f32 0.0, %v817
        %v819 = vpop.f32.mrb[0].mxu0
        %820 = vmatprep.mubr.f32.mxu0 0.0
        %821 = vmatmul.mubr.f32.gmra.mrb[0].mxu0 %v565
        %v822 = vpop.f32.mrb[0].mxu0
        %v823 = vadd.f32 0.0, %v822
        %v824 = vpop.f32.mrb[0].mxu0
        %825 = vmatprep.mubr.f32.mxu0 0.0
        %826 = vmatmul.mubr.f32.gmra.mrb[0].mxu0 %v567
        %v827 = vpop.f32.mrb[0].mxu0
        %v828 = vpop.f32.mrb[0].mxu0
        %829 = vmatprep.mubr.f32.mxu0 0.0
        %830 = vmatmul.mubr.f32.gmra.mrb[0].mxu0 %v569
        %v831 = vpop.f32.mrb[0].mxu0
        %v832 = vadd.f32 0.0, %v831
        %v833 = vpop.f32.mrb[0].mxu0
        %834 = vmatprep.mubr.f32.mxu0 0.0
        %835 = vmatmul.mubr.f32.gmra.mrb[0].mxu0 %v571
        %v836 = vpop.f32.mrb[0].mxu0
        %v837 = vadd.f32 0.0, %v836
        %v838 = vpop.f32.mrb[0].mxu0
        %839 = vmatprep.mubr.f32.mxu0 0.0
        %840 = vmatmul.mubr.f32.gmra.mrb[0].mxu0 %v573
        %v841 = vpop.f32.mrb[0].mxu0
        %v842 = vpop.f32.mrb[0].mxu0
        %843 = vmatprep.mubr.f32.mxu0 0.0
        %844 = vmatmul.mubr.f32.gmra.mrb[0].mxu0 %v575
        %v845 = vpop.f32.mrb[0].mxu0
        %v846 = vadd.f32 0.0, %v845
        %v847 = vpop.f32.mrb[0].mxu0
        %848 = vmatprep.mubr.f32.mxu0 0.0
        %849 = vmatmul.mubr.f32.gmra.mrb[0].mxu0 %v577
        %v850 = vpop.f32.mrb[0].mxu0
        %v851 = vadd.f32 0.0, %v850
        %v852 = vpop.f32.mrb[0].mxu0
        %853 = vmatprep.mubr.f32.mxu0 0.0
        %854 = vmatmul.mubr.f32.gmra.mrb[0].mxu0 %v579
        %v855 = vpop.f32.mrb[0].mxu0
        %v856 = vpop.f32.mrb[0].mxu0
        %857 = vmatprep.mubr.f32.mxu0 0.0
        %858 = vmatmul.mubr.f32.gmra.mrb[0].mxu0 %v581
        %v859 = vpop.f32.mrb[0].mxu0
        %v860 = vadd.f32 0.0, %v859
        %v861 = vpop.f32.mrb[0].mxu0
        %862 = vmatprep.mubr.f32.mxu0 0.0
        %863 = vmatmul.mubr.f32.gmra.mrb[0].mxu0 %v583
        %v864 = vpop.f32.mrb[0].mxu0
        %v865 = vadd.f32 0.0, %v864
        %v866 = vpop.f32.mrb[0].mxu0
        %867 = vmatprep.mubr.f32.mxu0 0.0
        %868 = vmatmul.mubr.f32.gmra.mrb[0].mxu0 %v585
        %v869 = vpop.f32.mrb[0].mxu0
        %v870 = vpop.f32.mrb[0].mxu0
        %871 = vmatprep.mubr.f32.mxu0 0.0
        %872 = vmatmul.mubr.f32.gmra.mrb[0].mxu0 %v587
        %v873 = vpop.f32.mrb[0].mxu0
        %v874 = vadd.f32 0.0, %v873
        %v875 = vpop.f32.mrb[0].mxu0
        %876 = vmatprep.mubr.f32.mxu0 0.0
        %877 = vmatmul.mubr.f32.gmra.mrb[0].mxu0 %v589
        %v878 = vpop.f32.mrb[0].mxu0
        %v879 = vadd.f32 0.0, %v878
        %v880 = vpop.f32.mrb[0].mxu0
        %881 = vmatprep.mubr.f32.mxu0 0.0
        %882 = vmatmul.mubr.f32.gmra.mrb[0].mxu0 %v591
        %v883 = vpop.f32.mrb[0].mxu0
        %v884 = vpop.f32.mrb[0].mxu0
        %885 = vdwg.mxu0
        %v886 = vsel %vm169, %v292, 0
        %v888 = vsel %vm169, %v293, 0
        %v890 = vsel %vm169, %v294, 0
        %v892 = vsel %vm169, %v295, 0
        %v894 = vsel %vm169, %v296, 0
        %v896 = vsel %vm169, %v297, 0
        %v898 = vsel %vm169, %v298, 0
        %v900 = vsel %vm169, %v299, 0
        %v902 = vsel %vm169, %v300, 0
        %v904 = vsel %vm169, %v301, 0
        %v906 = vsel %vm169, %v302, 0
        %v908 = vsel %vm169, %v303, 0
        %v910 = vsel %vm169, %v304, 0
        %v912 = vsel %vm169, %v305, 0
        %v914 = vsel %vm169, %v306, 0
        %v916 = vsel %vm169, %v307, 0
        %v918 = vsel %vm169, %v308, 0
        %v920 = vsel %vm169, %v309, 0
        %v922 = vsel %vm169, %v310, 0
        %v924 = vsel %vm169, %v311, 0
        %v926 = vsel %vm169, %v312, 0
        %v928 = vsel %vm169, %v313, 0
        %v930 = vsel %vm169, %v314, 0
        %v932 = vsel %vm169, %v315, 0
        %v934 = vsel %vm169, %v316, 0
        %v936 = vsel %vm169, %v317, 0
        %v938 = vsel %vm169, %v318, 0
        %v940 = vsel %vm169, %v319, 0
        %v942 = vsel %vm169, %v320, 0
        %v944 = vsel %vm169, %v321, 0
        %v946 = vsel %vm169, %v322, 0
        %v948 = vsel %vm169, %v323, 0
        %v950 = vsel %vm169, %v324, 0
        %v952 = vsel %vm169, %v325, 0
        %v954 = vsel %vm169, %v326, 0
        %v956 = vsel %vm169, %v327, 0
        %v958 = vsel %vm169, %v328, 0
        %v960 = vsel %vm169, %v329, 0
        %v962 = vsel %vm169, %v330, 0
        %v964 = vsel %vm169, %v331, 0
        %v966 = vsel %vm169, %v332, 0
        %v968 = vsel %vm169, %v333, 0
        %v970 = vsel %vm169, %v334, 0
        %v972 = vsel %vm169, %v335, 0
        %v974 = vsel %vm169, %v336, 0
        %v976 = vsel %vm169, %v337, 0
        %v978 = vsel %vm169, %v338, 0
        %v980 = vsel %vm169, %v339, 0
        %v983 = vsel %vm593, %v347, 0
        %985 = vmatprep.subr.mxu0 0.0
        %986 = vmatpush1.msra.mxu0 %v983
        %987 = vmatprep.subr.mxu0 0.0
        %988 = vmatpush1.msra.mxu0 0.0
        %989 = vmatprep.subr.mxu0 0.0
        %990 = vmatpush1.msra.mxu0 0.0
        %991 = vmatprep.subr.mxu0 0.0
        %992 = vmatpush1.msra.mxu0 0.0
        %993 = vmatprep.subr.mxu0 0.0
        %994 = vmatpush1.msra.mxu0 0.0
        %995 = vmatprep.subr.mxu0 0.0
        %996 = vmatpush1.msra.mxu0 0.0
        %997 = vmatprep.subr.mxu0 0.0
        %998 = vmatpush1.msra.mxu0 0.0
        %999 = vmatprep.subr.mxu0 0.0
        %1000 = vmatpush1.msra.mxu0 0.0
        %1001 = vmatprep.subr.mxu0 0.0
        %1002 = vmatpush1.msra.mxu0 0.0
        %1003 = vmatprep.subr.mxu0 0.0
        %1004 = vmatpush1.msra.mxu0 0.0
        %1005 = vmatprep.subr.mxu0 0.0
        %1006 = vmatpush1.msra.mxu0 0.0
        %1007 = vmatprep.subr.mxu0 0.0
        %1008 = vmatpush1.msra.mxu0 0.0
        %1009 = vmatprep.subr.mxu0 0.0
        %1010 = vmatpush1.msra.mxu0 0.0
        %1011 = vmatprep.subr.mxu0 0.0
        %1012 = vmatpush1.msra.mxu0 0.0
        %1013 = vmatprep.subr.mxu0 0.0
        %1014 = vmatpush1.msra.mxu0 0.0
        %1015 = vmatprep.subr.mxu0 0.0
        %1016 = vmatpush1.msra.mxu0 0.0
        %1017 = vmatprep.subr.mxu0 0.0
        %1018 = vmatpush1.msra.mxu0 0.0
        %1019 = vmatprep.subr.mxu0 0.0
        %1020 = vmatpush1.msra.mxu0 0.0
        %1021 = vmatprep.subr.mxu0 0.0
        %1022 = vmatpush1.msra.mxu0 0.0
        %1023 = vmatprep.subr.mxu0 0.0
        %1024 = vmatpush1.msra.mxu0 0.0
        %1025 = vmatprep.subr.mxu0 0.0
        %1026 = vmatpush1.msra.mxu0 0.0
        %1027 = vmatprep.subr.mxu0 0.0
        %1028 = vmatpush1.msra.mxu0 0.0
        %1029 = vmatprep.subr.mxu0 0.0
        %1030 = vmatpush1.msra.mxu0 0.0
        %1031 = vmatprep.subr.mxu0 0.0
        %1032 = vmatpush1.msra.mxu0 0.0
        %1033 = vmatprep.subr.mxu0 0.0
        %1034 = vmatpush1.msra.mxu0 0.0
        %1035 = vmatprep.subr.mxu0 0.0
        %1036 = vmatpush1.msra.mxu0 0.0
        %1037 = vmatprep.subr.mxu0 0.0
        %1038 = vmatpush1.msra.mxu0 0.0
        %1039 = vmatprep.subr.mxu0 0.0
        %1040 = vmatpush1.msra.mxu0 0.0
        %1041 = vmatprep.subr.mxu0 0.0
        %1042 = vmatpush1.msra.mxu0 0.0
        %1043 = vmatprep.subr.mxu0 0.0
        %1044 = vmatpush1.msra.mxu0 0.0
        %1045 = vmatprep.subr.mxu0 0.0
        %1046 = vmatpush1.msra.mxu0 0.0
        %1047 = vmatprep.subr.mxu0 0.0
        %1048 = vmatpush1.msra.mxu0 0.0
        %1049 = vmatprep.mubr.f32.mxu0 0.0
        %1050 = vmatmul.mubr.f32.gmra.mrb[0].mxu0 %v886
        %v1051 = vpop.f32.mrb[0].mxu0
        %v1052 = vadd.f32 %v664, %v1051
        %v1053 = vpop.f32.mrb[0].mxu0
        %1054 = vmatprep.mubr.f32.mxu0 0.0
        %1055 = vmatmul.mubr.f32.gmra.mrb[0].mxu0 %v888
        %v1056 = vpop.f32.mrb[0].mxu0
        %v1057 = vadd.f32 %v669, %v1056
        %v1058 = vpop.f32.mrb[0].mxu0
        %1059 = vmatprep.mubr.f32.mxu0 0.0
        %1060 = vmatmul.mubr.f32.gmra.mrb[0].mxu0 %v890
        %v1061 = vpop.f32.mrb[0].mxu0
        %v1062 = vpop.f32.mrb[0].mxu0
        %1063 = vmatprep.mubr.f32.mxu0 0.0
        %1064 = vmatmul.mubr.f32.gmra.mrb[0].mxu0 %v892
        %v1065 = vpop.f32.mrb[0].mxu0
        %v1066 = vadd.f32 %v678, %v1065
        %v1067 = vpop.f32.mrb[0].mxu0
        %1068 = vmatprep.mubr.f32.mxu0 0.0
        %1069 = vmatmul.mubr.f32.gmra.mrb[0].mxu0 %v894
        %v1070 = vpop.f32.mrb[0].mxu0
        %v1071 = vadd.f32 %v683, %v1070
        %v1072 = vpop.f32.mrb[0].mxu0
        %1073 = vmatprep.mubr.f32.mxu0 0.0
        %1074 = vmatmul.mubr.f32.gmra.mrb[0].mxu0 %v896
        %v1075 = vpop.f32.mrb[0].mxu0
        %v1076 = vpop.f32.mrb[0].mxu0
        %1077 = vmatprep.mubr.f32.mxu0 0.0
        %1078 = vmatmul.mubr.f32.gmra.mrb[0].mxu0 %v898
        %v1079 = vpop.f32.mrb[0].mxu0
        %v1080 = vadd.f32 %v692, %v1079
        %v1081 = vpop.f32.mrb[0].mxu0
        %1082 = vmatprep.mubr.f32.mxu0 0.0
        %1083 = vmatmul.mubr.f32.gmra.mrb[0].mxu0 %v900
        %v1084 = vpop.f32.mrb[0].mxu0
        %v1085 = vadd.f32 %v697, %v1084
        %v1086 = vpop.f32.mrb[0].mxu0
        %1087 = vmatprep.mubr.f32.mxu0 0.0
        %1088 = vmatmul.mubr.f32.gmra.mrb[0].mxu0 %v902
        %v1089 = vpop.f32.mrb[0].mxu0
        %v1090 = vpop.f32.mrb[0].mxu0
        %1091 = vmatprep.mubr.f32.mxu0 0.0
        %1092 = vmatmul.mubr.f32.gmra.mrb[0].mxu0 %v904
        %v1093 = vpop.f32.mrb[0].mxu0
        %v1094 = vadd.f32 %v706, %v1093
        %v1095 = vpop.f32.mrb[0].mxu0
        %1096 = vmatprep.mubr.f32.mxu0 0.0
        %1097 = vmatmul.mubr.f32.gmra.mrb[0].mxu0 %v906
        %v1098 = vpop.f32.mrb[0].mxu0
        %v1099 = vadd.f32 %v711, %v1098
        %v1100 = vpop.f32.mrb[0].mxu0
        %1101 = vmatprep.mubr.f32.mxu0 0.0
        %1102 = vmatmul.mubr.f32.gmra.mrb[0].mxu0 %v908
        %v1103 = vpop.f32.mrb[0].mxu0
        %v1104 = vpop.f32.mrb[0].mxu0
        %1105 = vmatprep.mubr.f32.mxu0 0.0
        %1106 = vmatmul.mubr.f32.gmra.mrb[0].mxu0 %v910
        %v1107 = vpop.f32.mrb[0].mxu0
        %v1108 = vadd.f32 %v720, %v1107
        %v1109 = vpop.f32.mrb[0].mxu0
        %1110 = vmatprep.mubr.f32.mxu0 0.0
        %1111 = vmatmul.mubr.f32.gmra.mrb[0].mxu0 %v912
        %v1112 = vpop.f32.mrb[0].mxu0
        %v1113 = vadd.f32 %v725, %v1112
        %v1114 = vpop.f32.mrb[0].mxu0
        %1115 = vmatprep.mubr.f32.mxu0 0.0
        %1116 = vmatmul.mubr.f32.gmra.mrb[0].mxu0 %v914
        %v1117 = vpop.f32.mrb[0].mxu0
        %v1118 = vpop.f32.mrb[0].mxu0
        %1119 = vmatprep.mubr.f32.mxu0 0.0
        %1120 = vmatmul.mubr.f32.gmra.mrb[0].mxu0 %v916
        %v1121 = vpop.f32.mrb[0].mxu0
        %v1122 = vadd.f32 %v734, %v1121
        %v1123 = vpop.f32.mrb[0].mxu0
        %1124 = vmatprep.mubr.f32.mxu0 0.0
        %1125 = vmatmul.mubr.f32.gmra.mrb[0].mxu0 %v918
        %v1126 = vpop.f32.mrb[0].mxu0
        %v1127 = vadd.f32 %v739, %v1126
        %v1128 = vpop.f32.mrb[0].mxu0
        %1129 = vmatprep.mubr.f32.mxu0 0.0
        %1130 = vmatmul.mubr.f32.gmra.mrb[0].mxu0 %v920
        %v1131 = vpop.f32.mrb[0].mxu0
        %v1132 = vpop.f32.mrb[0].mxu0
        %1133 = vmatprep.mubr.f32.mxu0 0.0
        %1134 = vmatmul.mubr.f32.gmra.mrb[0].mxu0 %v922
        %v1135 = vpop.f32.mrb[0].mxu0
        %v1136 = vadd.f32 %v748, %v1135
        %v1137 = vpop.f32.mrb[0].mxu0
        %1138 = vmatprep.mubr.f32.mxu0 0.0
        %1139 = vmatmul.mubr.f32.gmra.mrb[0].mxu0 %v924
        %v1140 = vpop.f32.mrb[0].mxu0
        %v1141 = vadd.f32 %v753, %v1140
        %v1142 = vpop.f32.mrb[0].mxu0
        %1143 = vmatprep.mubr.f32.mxu0 0.0
        %1144 = vmatmul.mubr.f32.gmra.mrb[0].mxu0 %v926
        %v1145 = vpop.f32.mrb[0].mxu0
        %v1146 = vpop.f32.mrb[0].mxu0
        %1147 = vmatprep.mubr.f32.mxu0 0.0
        %1148 = vmatmul.mubr.f32.gmra.mrb[0].mxu0 %v928
        %v1149 = vpop.f32.mrb[0].mxu0
        %v1150 = vadd.f32 %v762, %v1149
        %v1151 = vpop.f32.mrb[0].mxu0
        %1152 = vmatprep.mubr.f32.mxu0 0.0
        %1153 = vmatmul.mubr.f32.gmra.mrb[0].mxu0 %v930
        %v1154 = vpop.f32.mrb[0].mxu0
        %v1155 = vadd.f32 %v767, %v1154
        %v1156 = vpop.f32.mrb[0].mxu0
        %1157 = vmatprep.mubr.f32.mxu0 0.0
        %1158 = vmatmul.mubr.f32.gmra.mrb[0].mxu0 %v932
        %v1159 = vpop.f32.mrb[0].mxu0
        %v1160 = vpop.f32.mrb[0].mxu0
        %1161 = vmatprep.mubr.f32.mxu0 0.0
        %1162 = vmatmul.mubr.f32.gmra.mrb[0].mxu0 %v934
        %v1163 = vpop.f32.mrb[0].mxu0
        %v1164 = vadd.f32 %v776, %v1163
        %v1165 = vpop.f32.mrb[0].mxu0
        %1166 = vmatprep.mubr.f32.mxu0 0.0
        %1167 = vmatmul.mubr.f32.gmra.mrb[0].mxu0 %v936
        %v1168 = vpop.f32.mrb[0].mxu0
        %v1169 = vadd.f32 %v781, %v1168
        %v1170 = vpop.f32.mrb[0].mxu0
        %1171 = vmatprep.mubr.f32.mxu0 0.0
        %1172 = vmatmul.mubr.f32.gmra.mrb[0].mxu0 %v938
        %v1173 = vpop.f32.mrb[0].mxu0
        %v1174 = vpop.f32.mrb[0].mxu0
        %1175 = vmatprep.mubr.f32.mxu0 0.0
        %1176 = vmatmul.mubr.f32.gmra.mrb[0].mxu0 %v940
        %v1177 = vpop.f32.mrb[0].mxu0
        %v1178 = vadd.f32 %v790, %v1177
        %v1179 = vpop.f32.mrb[0].mxu0
        %1180 = vmatprep.mubr.f32.mxu0 0.0
        %1181 = vmatmul.mubr.f32.gmra.mrb[0].mxu0 %v942
        %v1182 = vpop.f32.mrb[0].mxu0
        %v1183 = vadd.f32 %v795, %v1182
        %v1184 = vpop.f32.mrb[0].mxu0
        %1185 = vmatprep.mubr.f32.mxu0 0.0
        %1186 = vmatmul.mubr.f32.gmra.mrb[0].mxu0 %v944
        %v1187 = vpop.f32.mrb[0].mxu0
        %v1188 = vpop.f32.mrb[0].mxu0
        %1189 = vmatprep.mubr.f32.mxu0 0.0
        %1190 = vmatmul.mubr.f32.gmra.mrb[0].mxu0 %v946
        %v1191 = vpop.f32.mrb[0].mxu0
        %v1192 = vadd.f32 %v804, %v1191
        %v1193 = vpop.f32.mrb[0].mxu0
        %1194 = vmatprep.mubr.f32.mxu0 0.0
        %1195 = vmatmul.mubr.f32.gmra.mrb[0].mxu0 %v948
        %v1196 = vpop.f32.mrb[0].mxu0
        %v1197 = vadd.f32 %v809, %v1196
        %v1198 = vpop.f32.mrb[0].mxu0
        %1199 = vmatprep.mubr.f32.mxu0 0.0
        %1200 = vmatmul.mubr.f32.gmra.mrb[0].mxu0 %v950
        %v1201 = vpop.f32.mrb[0].mxu0
        %v1202 = vpop.f32.mrb[0].mxu0
        %1203 = vmatprep.mubr.f32.mxu0 0.0
        %1204 = vmatmul.mubr.f32.gmra.mrb[0].mxu0 %v952
        %v1205 = vpop.f32.mrb[0].mxu0
        %v1206 = vadd.f32 %v818, %v1205
        %v1207 = vpop.f32.mrb[0].mxu0
        %1208 = vmatprep.mubr.f32.mxu0 0.0
        %1209 = vmatmul.mubr.f32.gmra.mrb[0].mxu0 %v954
        %v1210 = vpop.f32.mrb[0].mxu0
        %v1211 = vadd.f32 %v823, %v1210
        %v1212 = vpop.f32.mrb[0].mxu0
        %1213 = vmatprep.mubr.f32.mxu0 0.0
        %1214 = vmatmul.mubr.f32.gmra.mrb[0].mxu0 %v956
        %v1215 = vpop.f32.mrb[0].mxu0
        %v1216 = vpop.f32.mrb[0].mxu0
        %1217 = vmatprep.mubr.f32.mxu0 0.0
        %1218 = vmatmul.mubr.f32.gmra.mrb[0].mxu0 %v958
        %v1219 = vpop.f32.mrb[0].mxu0
        %v1220 = vadd.f32 %v832, %v1219
        %v1221 = vpop.f32.mrb[0].mxu0
        %1222 = vmatprep.mubr.f32.mxu0 0.0
        %1223 = vmatmul.mubr.f32.gmra.mrb[0].mxu0 %v960
        %v1224 = vpop.f32.mrb[0].mxu0
        %v1225 = vadd.f32 %v837, %v1224
        %v1226 = vpop.f32.mrb[0].mxu0
        %1227 = vmatprep.mubr.f32.mxu0 0.0
        %1228 = vmatmul.mubr.f32.gmra.mrb[0].mxu0 %v962
        %v1229 = vpop.f32.mrb[0].mxu0
        %v1230 = vpop.f32.mrb[0].mxu0
        %1231 = vmatprep.mubr.f32.mxu0 0.0
        %1232 = vmatmul.mubr.f32.gmra.mrb[0].mxu0 %v964
        %v1233 = vpop.f32.mrb[0].mxu0
        %v1234 = vadd.f32 %v846, %v1233
        %v1235 = vpop.f32.mrb[0].mxu0
        %1236 = vmatprep.mubr.f32.mxu0 0.0
        %1237 = vmatmul.mubr.f32.gmra.mrb[0].mxu0 %v966
        %v1238 = vpop.f32.mrb[0].mxu0
        %v1239 = vadd.f32 %v851, %v1238
        %v1240 = vpop.f32.mrb[0].mxu0
        %1241 = vmatprep.mubr.f32.mxu0 0.0
        %1242 = vmatmul.mubr.f32.gmra.mrb[0].mxu0 %v968
        %v1243 = vpop.f32.mrb[0].mxu0
        %v1244 = vpop.f32.mrb[0].mxu0
        %1245 = vmatprep.mubr.f32.mxu0 0.0
        %1246 = vmatmul.mubr.f32.gmra.mrb[0].mxu0 %v970
        %v1247 = vpop.f32.mrb[0].mxu0
        %v1248 = vadd.f32 %v860, %v1247
        %v1249 = vpop.f32.mrb[0].mxu0
        %1250 = vmatprep.mubr.f32.mxu0 0.0
        %1251 = vmatmul.mubr.f32.gmra.mrb[0].mxu0 %v972
        %v1252 = vpop.f32.mrb[0].mxu0
        %v1253 = vadd.f32 %v865, %v1252
        %v1254 = vpop.f32.mrb[0].mxu0
        %1255 = vmatprep.mubr.f32.mxu0 0.0
        %1256 = vmatmul.mubr.f32.gmra.mrb[0].mxu0 %v974
        %v1257 = vpop.f32.mrb[0].mxu0
        %v1258 = vpop.f32.mrb[0].mxu0
        %1259 = vmatprep.mubr.f32.mxu0 0.0
        %1260 = vmatmul.mubr.f32.gmra.mrb[0].mxu0 %v976
        %v1261 = vpop.f32.mrb[0].mxu0
        %v1262 = vadd.f32 %v874, %v1261
        %v1263 = vpop.f32.mrb[0].mxu0
        %1264 = vmatprep.mubr.f32.mxu0 0.0
        %1265 = vmatmul.mubr.f32.gmra.mrb[0].mxu0 %v978
        %v1266 = vpop.f32.mrb[0].mxu0
        %v1267 = vadd.f32 %v879, %v1266
        %v1268 = vpop.f32.mrb[0].mxu0
        %1269 = vmatprep.mubr.f32.mxu0 0.0
        %1270 = vmatmul.mubr.f32.gmra.mrb[0].mxu0 %v980
        %v1271 = vpop.f32.mrb[0].mxu0
        %v1272 = vpop.f32.mrb[0].mxu0
        %1273 = vdwg.mxu0
        %s1274 = scalar_lea.vmem %s1, 8
        %v1275 = vld [vmem:[%s1274] sm:$0x7]
        %vm1276 = vcmask 1045504
        %v1277 = vrot.slane %v292, 2
        %v1278 = vrot.slane %v293, 2
        %v1279 = vsel %vm1276, %v1277, %v1278
        %v1280 = vrot.slane %v294, 2
        %v1281 = vsel %vm1276, %v1278, %v1280
        %v1282 = vrot.slane %v295, 2
        %v1283 = vsel %vm1276, %v1280, %v1282
        %v1284 = vrot.slane %v296, 2
        %v1285 = vsel %vm1276, %v1282, %v1284
        %v1286 = vrot.slane %v297, 2
        %v1287 = vsel %vm1276, %v1284, %v1286
        %v1288 = vrot.slane %v298, 2
        %v1289 = vsel %vm1276, %v1286, %v1288
        %v1290 = vrot.slane %v299, 2
        %v1291 = vsel %vm1276, %v1288, %v1290
        %v1292 = vrot.slane %v300, 2
        %v1293 = vsel %vm1276, %v1290, %v1292
        %v1294 = vrot.slane %v301, 2
        %v1295 = vsel %vm1276, %v1292, %v1294
        %v1296 = vrot.slane %v302, 2
        %v1297 = vsel %vm1276, %v1294, %v1296
        %v1298 = vrot.slane %v303, 2
        %v1299 = vsel %vm1276, %v1296, %v1298
        %v1300 = vrot.slane %v304, 2
        %v1301 = vsel %vm1276, %v1298, %v1300
        %v1302 = vrot.slane %v305, 2
        %v1303 = vsel %vm1276, %v1300, %v1302
        %v1304 = vrot.slane %v306, 2
        %v1305 = vsel %vm1276, %v1302, %v1304
        %v1306 = vrot.slane %v307, 2
        %v1307 = vsel %vm1276, %v1304, %v1306
        %v1308 = vrot.slane %v308, 2
        %v1309 = vsel %vm1276, %v1306, %v1308
        %v1310 = vrot.slane %v309, 2
        %v1311 = vsel %vm1276, %v1308, %v1310
        %v1312 = vrot.slane %v310, 2
        %v1313 = vsel %vm1276, %v1310, %v1312
        %v1314 = vrot.slane %v311, 2
        %v1315 = vsel %vm1276, %v1312, %v1314
        %v1316 = vrot.slane %v312, 2
        %v1317 = vsel %vm1276, %v1314, %v1316
        %v1318 = vrot.slane %v313, 2
        %v1319 = vsel %vm1276, %v1316, %v1318
        %v1320 = vrot.slane %v314, 2
        %v1321 = vsel %vm1276, %v1318, %v1320
        %v1322 = vrot.slane %v315, 2
        %v1323 = vsel %vm1276, %v1320, %v1322
        %v1324 = vrot.slane %v316, 2
        %v1325 = vsel %vm1276, %v1322, %v1324
        %v1326 = vrot.slane %v317, 2
        %v1327 = vsel %vm1276, %v1324, %v1326
        %v1328 = vrot.slane %v318, 2
        %v1329 = vsel %vm1276, %v1326, %v1328
        %v1330 = vrot.slane %v319, 2
        %v1331 = vsel %vm1276, %v1328, %v1330
        %v1332 = vrot.slane %v320, 2
        %v1333 = vsel %vm1276, %v1330, %v1332
        %v1334 = vrot.slane %v321, 2
        %v1335 = vsel %vm1276, %v1332, %v1334
        %v1336 = vrot.slane %v322, 2
        %v1337 = vsel %vm1276, %v1334, %v1336
        %v1338 = vrot.slane %v323, 2
        %v1339 = vsel %vm1276, %v1336, %v1338
        %v1340 = vrot.slane %v324, 2
        %v1341 = vsel %vm1276, %v1338, %v1340
        %v1342 = vrot.slane %v325, 2
        %v1343 = vsel %vm1276, %v1340, %v1342
        %v1344 = vrot.slane %v326, 2
        %v1345 = vsel %vm1276, %v1342, %v1344
        %v1346 = vrot.slane %v327, 2
        %v1347 = vsel %vm1276, %v1344, %v1346
        %v1348 = vrot.slane %v328, 2
        %v1349 = vsel %vm1276, %v1346, %v1348
        %v1350 = vrot.slane %v329, 2
        %v1351 = vsel %vm1276, %v1348, %v1350
        %v1352 = vrot.slane %v330, 2
        %v1353 = vsel %vm1276, %v1350, %v1352
        %v1354 = vrot.slane %v331, 2
        %v1355 = vsel %vm1276, %v1352, %v1354
        %v1356 = vrot.slane %v332, 2
        %v1357 = vsel %vm1276, %v1354, %v1356
        %v1358 = vrot.slane %v333, 2
        %v1359 = vsel %vm1276, %v1356, %v1358
        %v1360 = vrot.slane %v334, 2
        %v1361 = vsel %vm1276, %v1358, %v1360
        %v1362 = vrot.slane %v335, 2
        %v1363 = vsel %vm1276, %v1360, %v1362
        %v1364 = vrot.slane %v336, 2
        %v1365 = vsel %vm1276, %v1362, %v1364
        %v1366 = vrot.slane %v337, 2
        %v1367 = vsel %vm1276, %v1364, %v1366
        %v1368 = vrot.slane %v338, 2
        %v1369 = vsel %vm1276, %v1366, %v1368
        %v1370 = vrot.slane %v339, 2
        %v1371 = vsel %vm1276, %v1368, %v1370
        %v1372 = vrot.slane %v340, 2
        %v1373 = vsel %vm1276, %v1370, %v1372
        %v1374 = vsel %vm169, %v1279, 0
        %v1376 = vsel %vm169, %v1281, 0
        %v1378 = vsel %vm169, %v1283, 0
        %v1380 = vsel %vm169, %v1285, 0
        %v1382 = vsel %vm169, %v1287, 0
        %v1384 = vsel %vm169, %v1289, 0
        %v1386 = vsel %vm169, %v1291, 0
        %v1388 = vsel %vm169, %v1293, 0
        %v1390 = vsel %vm169, %v1295, 0
        %v1392 = vsel %vm169, %v1297, 0
        %v1394 = vsel %vm169, %v1299, 0
        %v1396 = vsel %vm169, %v1301, 0
        %v1398 = vsel %vm169, %v1303, 0
        %v1400 = vsel %vm169, %v1305, 0
        %v1402 = vsel %vm169, %v1307, 0
        %v1404 = vsel %vm169, %v1309, 0
        %v1406 = vsel %vm169, %v1311, 0
        %v1408 = vsel %vm169, %v1313, 0
        %v1410 = vsel %vm169, %v1315, 0
        %v1412 = vsel %vm169, %v1317, 0
        %v1414 = vsel %vm169, %v1319, 0
        %v1416 = vsel %vm169, %v1321, 0
        %v1418 = vsel %vm169, %v1323, 0
        %v1420 = vsel %vm169, %v1325, 0
        %v1422 = vsel %vm169, %v1327, 0
        %v1424 = vsel %vm169, %v1329, 0
        %v1426 = vsel %vm169, %v1331, 0
        %v1428 = vsel %vm169, %v1333, 0
        %v1430 = vsel %vm169, %v1335, 0
        %v1432 = vsel %vm169, %v1337, 0
        %v1434 = vsel %vm169, %v1339, 0
        %v1436 = vsel %vm169, %v1341, 0
        %v1438 = vsel %vm169, %v1343, 0
        %v1440 = vsel %vm169, %v1345, 0
        %v1442 = vsel %vm169, %v1347, 0
        %v1444 = vsel %vm169, %v1349, 0
        %v1446 = vsel %vm169, %v1351, 0
        %v1448 = vsel %vm169, %v1353, 0
        %v1450 = vsel %vm169, %v1355, 0
        %v1452 = vsel %vm169, %v1357, 0
        %v1454 = vsel %vm169, %v1359, 0
        %v1456 = vsel %vm169, %v1361, 0
        %v1458 = vsel %vm169, %v1363, 0
        %v1460 = vsel %vm169, %v1365, 0
        %v1462 = vsel %vm169, %v1367, 0
        %v1464 = vsel %vm169, %v1369, 0
        %v1466 = vsel %vm169, %v1371, 0
        %v1468 = vsel %vm169, %v1373, 0
        %v1471 = vsel %vm593, %v1275, 0
        %1473 = vmatprep.subr.mxu0 0.0
        %1474 = vmatpush1.msra.mxu0 %v1471
        %1475 = vmatprep.subr.mxu0 0.0
        %1476 = vmatpush1.msra.mxu0 0.0
        %1477 = vmatprep.subr.mxu0 0.0
        %1478 = vmatpush1.msra.mxu0 0.0
        %1479 = vmatprep.subr.mxu0 0.0
        %1480 = vmatpush1.msra.mxu0 0.0
        %1481 = vmatprep.subr.mxu0 0.0
        %1482 = vmatpush1.msra.mxu0 0.0
        %1483 = vmatprep.subr.mxu0 0.0
        %1484 = vmatpush1.msra.mxu0 0.0
        %1485 = vmatprep.subr.mxu0 0.0
        %1486 = vmatpush1.msra.mxu0 0.0
        %1487 = vmatprep.subr.mxu0 0.0
        %1488 = vmatpush1.msra.mxu0 0.0
        %1489 = vmatprep.subr.mxu0 0.0
        %1490 = vmatpush1.msra.mxu0 0.0
        %1491 = vmatprep.subr.mxu0 0.0
        %1492 = vmatpush1.msra.mxu0 0.0
        %1493 = vmatprep.subr.mxu0 0.0
        %1494 = vmatpush1.msra.mxu0 0.0
        %1495 = vmatprep.subr.mxu0 0.0
        %1496 = vmatpush1.msra.mxu0 0.0
        %1497 = vmatprep.subr.mxu0 0.0
        %1498 = vmatpush1.msra.mxu0 0.0
        %1499 = vmatprep.subr.mxu0 0.0
        %1500 = vmatpush1.msra.mxu0 0.0
        %1501 = vmatprep.subr.mxu0 0.0
        %1502 = vmatpush1.msra.mxu0 0.0
        %1503 = vmatprep.subr.mxu0 0.0
        %1504 = vmatpush1.msra.mxu0 0.0
        %1505 = vmatprep.subr.mxu0 0.0
        %1506 = vmatpush1.msra.mxu0 0.0
        %1507 = vmatprep.subr.mxu0 0.0
        %1508 = vmatpush1.msra.mxu0 0.0
        %1509 = vmatprep.subr.mxu0 0.0
        %1510 = vmatpush1.msra.mxu0 0.0
        %1511 = vmatprep.subr.mxu0 0.0
        %1512 = vmatpush1.msra.mxu0 0.0
        %1513 = vmatprep.subr.mxu0 0.0
        %1514 = vmatpush1.msra.mxu0 0.0
        %1515 = vmatprep.subr.mxu0 0.0
        %1516 = vmatpush1.msra.mxu0 0.0
        %1517 = vmatprep.subr.mxu0 0.0
        %1518 = vmatpush1.msra.mxu0 0.0
        %1519 = vmatprep.subr.mxu0 0.0
        %1520 = vmatpush1.msra.mxu0 0.0
        %1521 = vmatprep.subr.mxu0 0.0
        %1522 = vmatpush1.msra.mxu0 0.0
        %1523 = vmatprep.subr.mxu0 0.0
        %1524 = vmatpush1.msra.mxu0 0.0
        %1525 = vmatprep.subr.mxu0 0.0
        %1526 = vmatpush1.msra.mxu0 0.0
        %1527 = vmatprep.subr.mxu0 0.0
        %1528 = vmatpush1.msra.mxu0 0.0
        %1529 = vmatprep.subr.mxu0 0.0
        %1530 = vmatpush1.msra.mxu0 0.0
        %1531 = vmatprep.subr.mxu0 0.0
        %1532 = vmatpush1.msra.mxu0 0.0
        %1533 = vmatprep.subr.mxu0 0.0
        %1534 = vmatpush1.msra.mxu0 0.0
        %1535 = vmatprep.subr.mxu0 0.0
        %1536 = vmatpush1.msra.mxu0 0.0
        %1537 = vmatprep.mubr.f32.mxu0 0.0
        %1538 = vmatmul.mubr.f32.gmra.mrb[0].mxu0 %v1374
        %v1539 = vpop.f32.mrb[0].mxu0
        %v1540 = vadd.f32 0.0, %v1539
        %v1541 = vpop.f32.mrb[0].mxu0
        %1542 = vmatprep.mubr.f32.mxu0 0.0
        %1543 = vmatmul.mubr.f32.gmra.mrb[0].mxu0 %v1376
        %v1544 = vpop.f32.mrb[0].mxu0
        %v1545 = vadd.f32 0.0, %v1544
        %v1546 = vpop.f32.mrb[0].mxu0
        %1547 = vmatprep.mubr.f32.mxu0 0.0
        %1548 = vmatmul.mubr.f32.gmra.mrb[0].mxu0 %v1378
        %v1549 = vpop.f32.mrb[0].mxu0
        %v1550 = vpop.f32.mrb[0].mxu0
        %1551 = vmatprep.mubr.f32.mxu0 0.0
        %1552 = vmatmul.mubr.f32.gmra.mrb[0].mxu0 %v1380
        %v1553 = vpop.f32.mrb[0].mxu0
        %v1554 = vadd.f32 0.0, %v1553
        %v1555 = vpop.f32.mrb[0].mxu0
        %1556 = vmatprep.mubr.f32.mxu0 0.0
        %1557 = vmatmul.mubr.f32.gmra.mrb[0].mxu0 %v1382
        %v1558 = vpop.f32.mrb[0].mxu0
        %v1559 = vadd.f32 0.0, %v1558
        %v1560 = vpop.f32.mrb[0].mxu0
        %1561 = vmatprep.mubr.f32.mxu0 0.0
        %1562 = vmatmul.mubr.f32.gmra.mrb[0].mxu0 %v1384
        %v1563 = vpop.f32.mrb[0].mxu0
        %v1564 = vpop.f32.mrb[0].mxu0
        %1565 = vmatprep.mubr.f32.mxu0 0.0
        %1566 = vmatmul.mubr.f32.gmra.mrb[0].mxu0 %v1386
        %v1567 = vpop.f32.mrb[0].mxu0
        %v1568 = vadd.f32 0.0, %v1567
        %v1569 = vpop.f32.mrb[0].mxu0
        %1570 = vmatprep.mubr.f32.mxu0 0.0
        %1571 = vmatmul.mubr.f32.gmra.mrb[0].mxu0 %v1388
        %v1572 = vpop.f32.mrb[0].mxu0
        %v1573 = vadd.f32 0.0, %v1572
        %v1574 = vpop.f32.mrb[0].mxu0
        %1575 = vmatprep.mubr.f32.mxu0 0.0
        %1576 = vmatmul.mubr.f32.gmra.mrb[0].mxu0 %v1390
        %v1577 = vpop.f32.mrb[0].mxu0
        %v1578 = vpop.f32.mrb[0].mxu0
        %1579 = vmatprep.mubr.f32.mxu0 0.0
        %1580 = vmatmul.mubr.f32.gmra.mrb[0].mxu0 %v1392
        %v1581 = vpop.f32.mrb[0].mxu0
        %v1582 = vadd.f32 0.0, %v1581
        %v1583 = vpop.f32.mrb[0].mxu0
        %1584 = vmatprep.mubr.f32.mxu0 0.0
        %1585 = vmatmul.mubr.f32.gmra.mrb[0].mxu0 %v1394
        %v1586 = vpop.f32.mrb[0].mxu0
        %v1587 = vadd.f32 0.0, %v1586
        %v1588 = vpop.f32.mrb[0].mxu0
        %1589 = vmatprep.mubr.f32.mxu0 0.0
        %1590 = vmatmul.mubr.f32.gmra.mrb[0].mxu0 %v1396
        %v1591 = vpop.f32.mrb[0].mxu0
        %v1592 = vpop.f32.mrb[0].mxu0
        %1593 = vmatprep.mubr.f32.mxu0 0.0
        %1594 = vmatmul.mubr.f32.gmra.mrb[0].mxu0 %v1398
        %v1595 = vpop.f32.mrb[0].mxu0
        %v1596 = vadd.f32 0.0, %v1595
        %v1597 = vpop.f32.mrb[0].mxu0
        %1598 = vmatprep.mubr.f32.mxu0 0.0
        %1599 = vmatmul.mubr.f32.gmra.mrb[0].mxu0 %v1400
        %v1600 = vpop.f32.mrb[0].mxu0
        %v1601 = vadd.f32 0.0, %v1600
        %v1602 = vpop.f32.mrb[0].mxu0
        %1603 = vmatprep.mubr.f32.mxu0 0.0
        %1604 = vmatmul.mubr.f32.gmra.mrb[0].mxu0 %v1402
        %v1605 = vpop.f32.mrb[0].mxu0
        %v1606 = vpop.f32.mrb[0].mxu0
        %1607 = vmatprep.mubr.f32.mxu0 0.0
        %1608 = vmatmul.mubr.f32.gmra.mrb[0].mxu0 %v1404
        %v1609 = vpop.f32.mrb[0].mxu0
        %v1610 = vadd.f32 0.0, %v1609
        %v1611 = vpop.f32.mrb[0].mxu0
        %1612 = vmatprep.mubr.f32.mxu0 0.0
        %1613 = vmatmul.mubr.f32.gmra.mrb[0].mxu0 %v1406
        %v1614 = vpop.f32.mrb[0].mxu0
        %v1615 = vadd.f32 0.0, %v1614
        %v1616 = vpop.f32.mrb[0].mxu0
        %1617 = vmatprep.mubr.f32.mxu0 0.0
        %1618 = vmatmul.mubr.f32.gmra.mrb[0].mxu0 %v1408
        %v1619 = vpop.f32.mrb[0].mxu0
        %v1620 = vpop.f32.mrb[0].mxu0
        %1621 = vmatprep.mubr.f32.mxu0 0.0
        %1622 = vmatmul.mubr.f32.gmra.mrb[0].mxu0 %v1410
        %v1623 = vpop.f32.mrb[0].mxu0
        %v1624 = vadd.f32 0.0, %v1623
        %v1625 = vpop.f32.mrb[0].mxu0
        %1626 = vmatprep.mubr.f32.mxu0 0.0
        %1627 = vmatmul.mubr.f32.gmra.mrb[0].mxu0 %v1412
        %v1628 = vpop.f32.mrb[0].mxu0
        %v1629 = vadd.f32 0.0, %v1628
        %v1630 = vpop.f32.mrb[0].mxu0
        %1631 = vmatprep.mubr.f32.mxu0 0.0
        %1632 = vmatmul.mubr.f32.gmra.mrb[0].mxu0 %v1414
        %v1633 = vpop.f32.mrb[0].mxu0
        %v1634 = vpop.f32.mrb[0].mxu0
        %1635 = vmatprep.mubr.f32.mxu0 0.0
        %1636 = vmatmul.mubr.f32.gmra.mrb[0].mxu0 %v1416
        %v1637 = vpop.f32.mrb[0].mxu0
        %v1638 = vadd.f32 0.0, %v1637
        %v1639 = vpop.f32.mrb[0].mxu0
        %1640 = vmatprep.mubr.f32.mxu0 0.0
        %1641 = vmatmul.mubr.f32.gmra.mrb[0].mxu0 %v1418
        %v1642 = vpop.f32.mrb[0].mxu0
        %v1643 = vadd.f32 0.0, %v1642
        %v1644 = vpop.f32.mrb[0].mxu0
        %1645 = vmatprep.mubr.f32.mxu0 0.0
        %1646 = vmatmul.mubr.f32.gmra.mrb[0].mxu0 %v1420
        %v1647 = vpop.f32.mrb[0].mxu0
        %v1648 = vpop.f32.mrb[0].mxu0
        %1649 = vmatprep.mubr.f32.mxu0 0.0
        %1650 = vmatmul.mubr.f32.gmra.mrb[0].mxu0 %v1422
        %v1651 = vpop.f32.mrb[0].mxu0
        %v1652 = vadd.f32 0.0, %v1651
        %v1653 = vpop.f32.mrb[0].mxu0
        %1654 = vmatprep.mubr.f32.mxu0 0.0
        %1655 = vmatmul.mubr.f32.gmra.mrb[0].mxu0 %v1424
        %v1656 = vpop.f32.mrb[0].mxu0
        %v1657 = vadd.f32 0.0, %v1656
        %v1658 = vpop.f32.mrb[0].mxu0
        %1659 = vmatprep.mubr.f32.mxu0 0.0
        %1660 = vmatmul.mubr.f32.gmra.mrb[0].mxu0 %v1426
        %v1661 = vpop.f32.mrb[0].mxu0
        %v1662 = vpop.f32.mrb[0].mxu0
        %1663 = vmatprep.mubr.f32.mxu0 0.0
        %1664 = vmatmul.mubr.f32.gmra.mrb[0].mxu0 %v1428
        %v1665 = vpop.f32.mrb[0].mxu0
        %v1666 = vadd.f32 0.0, %v1665
        %v1667 = vpop.f32.mrb[0].mxu0
        %1668 = vmatprep.mubr.f32.mxu0 0.0
        %1669 = vmatmul.mubr.f32.gmra.mrb[0].mxu0 %v1430
        %v1670 = vpop.f32.mrb[0].mxu0
        %v1671 = vadd.f32 0.0, %v1670
        %v1672 = vpop.f32.mrb[0].mxu0
        %1673 = vmatprep.mubr.f32.mxu0 0.0
        %1674 = vmatmul.mubr.f32.gmra.mrb[0].mxu0 %v1432
        %v1675 = vpop.f32.mrb[0].mxu0
        %v1676 = vpop.f32.mrb[0].mxu0
        %1677 = vmatprep.mubr.f32.mxu0 0.0
        %1678 = vmatmul.mubr.f32.gmra.mrb[0].mxu0 %v1434
        %v1679 = vpop.f32.mrb[0].mxu0
        %v1680 = vadd.f32 0.0, %v1679
        %v1681 = vpop.f32.mrb[0].mxu0
        %1682 = vmatprep.mubr.f32.mxu0 0.0
        %1683 = vmatmul.mubr.f32.gmra.mrb[0].mxu0 %v1436
        %v1684 = vpop.f32.mrb[0].mxu0
        %v1685 = vadd.f32 0.0, %v1684
        %v1686 = vpop.f32.mrb[0].mxu0
        %1687 = vmatprep.mubr.f32.mxu0 0.0
        %1688 = vmatmul.mubr.f32.gmra.mrb[0].mxu0 %v1438
        %v1689 = vpop.f32.mrb[0].mxu0
        %v1690 = vpop.f32.mrb[0].mxu0
        %1691 = vmatprep.mubr.f32.mxu0 0.0
        %1692 = vmatmul.mubr.f32.gmra.mrb[0].mxu0 %v1440
        %v1693 = vpop.f32.mrb[0].mxu0
        %v1694 = vadd.f32 0.0, %v1693
        %v1695 = vpop.f32.mrb[0].mxu0
        %1696 = vmatprep.mubr.f32.mxu0 0.0
        %1697 = vmatmul.mubr.f32.gmra.mrb[0].mxu0 %v1442
        %v1698 = vpop.f32.mrb[0].mxu0
        %v1699 = vadd.f32 0.0, %v1698
        %v1700 = vpop.f32.mrb[0].mxu0
        %1701 = vmatprep.mubr.f32.mxu0 0.0
        %1702 = vmatmul.mubr.f32.gmra.mrb[0].mxu0 %v1444
        %v1703 = vpop.f32.mrb[0].mxu0
        %v1704 = vpop.f32.mrb[0].mxu0
        %1705 = vmatprep.mubr.f32.mxu0 0.0
        %1706 = vmatmul.mubr.f32.gmra.mrb[0].mxu0 %v1446
        %v1707 = vpop.f32.mrb[0].mxu0
        %v1708 = vadd.f32 0.0, %v1707
        %v1709 = vpop.f32.mrb[0].mxu0
        %1710 = vmatprep.mubr.f32.mxu0 0.0
        %1711 = vmatmul.mubr.f32.gmra.mrb[0].mxu0 %v1448
        %v1712 = vpop.f32.mrb[0].mxu0
        %v1713 = vadd.f32 0.0, %v1712
        %v1714 = vpop.f32.mrb[0].mxu0
        %1715 = vmatprep.mubr.f32.mxu0 0.0
        %1716 = vmatmul.mubr.f32.gmra.mrb[0].mxu0 %v1450
        %v1717 = vpop.f32.mrb[0].mxu0
        %v1718 = vpop.f32.mrb[0].mxu0
        %1719 = vmatprep.mubr.f32.mxu0 0.0
        %1720 = vmatmul.mubr.f32.gmra.mrb[0].mxu0 %v1452
        %v1721 = vpop.f32.mrb[0].mxu0
        %v1722 = vadd.f32 0.0, %v1721
        %v1723 = vpop.f32.mrb[0].mxu0
        %1724 = vmatprep.mubr.f32.mxu0 0.0
        %1725 = vmatmul.mubr.f32.gmra.mrb[0].mxu0 %v1454
        %v1726 = vpop.f32.mrb[0].mxu0
        %v1727 = vadd.f32 0.0, %v1726
        %v1728 = vpop.f32.mrb[0].mxu0
        %1729 = vmatprep.mubr.f32.mxu0 0.0
        %1730 = vmatmul.mubr.f32.gmra.mrb[0].mxu0 %v1456
        %v1731 = vpop.f32.mrb[0].mxu0
        %v1732 = vpop.f32.mrb[0].mxu0
        %1733 = vmatprep.mubr.f32.mxu0 0.0
        %1734 = vmatmul.mubr.f32.gmra.mrb[0].mxu0 %v1458
        %v1735 = vpop.f32.mrb[0].mxu0
        %v1736 = vadd.f32 0.0, %v1735
        %v1737 = vpop.f32.mrb[0].mxu0
        %1738 = vmatprep.mubr.f32.mxu0 0.0
        %1739 = vmatmul.mubr.f32.gmra.mrb[0].mxu0 %v1460
        %v1740 = vpop.f32.mrb[0].mxu0
        %v1741 = vadd.f32 0.0, %v1740
        %v1742 = vpop.f32.mrb[0].mxu0
        %1743 = vmatprep.mubr.f32.mxu0 0.0
        %1744 = vmatmul.mubr.f32.gmra.mrb[0].mxu0 %v1462
        %v1745 = vpop.f32.mrb[0].mxu0
        %v1746 = vpop.f32.mrb[0].mxu0
        %1747 = vmatprep.mubr.f32.mxu0 0.0
        %1748 = vmatmul.mubr.f32.gmra.mrb[0].mxu0 %v1464
        %v1749 = vpop.f32.mrb[0].mxu0
        %v1750 = vadd.f32 0.0, %v1749
        %v1751 = vpop.f32.mrb[0].mxu0
        %1752 = vmatprep.mubr.f32.mxu0 0.0
        %1753 = vmatmul.mubr.f32.gmra.mrb[0].mxu0 %v1466
        %v1754 = vpop.f32.mrb[0].mxu0
        %v1755 = vadd.f32 0.0, %v1754
        %v1756 = vpop.f32.mrb[0].mxu0
        %1757 = vmatprep.mubr.f32.mxu0 0.0
        %1758 = vmatmul.mubr.f32.gmra.mrb[0].mxu0 %v1468
        %v1759 = vpop.f32.mrb[0].mxu0
        %v1760 = vpop.f32.mrb[0].mxu0
        %1761 = vdwg.mxu0
        %v1762 = vadd.f32 %v1052, %v1540
        %v1763 = vadd.f32 %v1057, %v1545
        %v1764 = vadd.f32 %v1066, %v1554
        %v1765 = vadd.f32 %v1071, %v1559
        %v1766 = vadd.f32 %v1080, %v1568
        %v1767 = vadd.f32 %v1085, %v1573
        %v1768 = vadd.f32 %v1094, %v1582
        %v1769 = vadd.f32 %v1099, %v1587
        %v1770 = vadd.f32 %v1108, %v1596
        %v1771 = vadd.f32 %v1113, %v1601
        %v1772 = vadd.f32 %v1122, %v1610
        %v1773 = vadd.f32 %v1127, %v1615
        %v1774 = vadd.f32 %v1136, %v1624
        %v1775 = vadd.f32 %v1141, %v1629
        %v1776 = vadd.f32 %v1150, %v1638
        %v1777 = vadd.f32 %v1155, %v1643
        %v1778 = vadd.f32 %v1164, %v1652
        %v1779 = vadd.f32 %v1169, %v1657
        %v1780 = vadd.f32 %v1178, %v1666
        %v1781 = vadd.f32 %v1183, %v1671
        %v1782 = vadd.f32 %v1192, %v1680
        %v1783 = vadd.f32 %v1197, %v1685
        %v1784 = vadd.f32 %v1206, %v1694
        %v1785 = vadd.f32 %v1211, %v1699
        %v1786 = vadd.f32 %v1220, %v1708
        %v1787 = vadd.f32 %v1225, %v1713
        %v1788 = vadd.f32 %v1234, %v1722
        %v1789 = vadd.f32 %v1239, %v1727
        %v1790 = vadd.f32 %v1248, %v1736
        %v1791 = vadd.f32 %v1253, %v1741
        %v1792 = vadd.f32 %v1262, %v1750
        %v1793 = vadd.f32 %v1267, %v1755
        %s1794 = scalar_lea.vmem %s1, 12
        %v1795 = vld [vmem:[%s1794] sm:$0x7]
        %v1796 = vsel %vm169, %v340, 0
        %v1799 = vsel %vm169, %v341, 0
        %v1802 = vsel %vm169, %v342, 0
        %v1805 = vsel %vm593, %v1795, 0
        %1807 = vmatprep.subr.mxu0 0.0
        %1808 = vmatpush1.msra.mxu0 %v1805
        %1809 = vmatprep.subr.mxu0 0.0
        %1810 = vmatpush1.msra.mxu0 0.0
        %1811 = vmatprep.subr.mxu0 0.0
        %1812 = vmatpush1.msra.mxu0 0.0
        %1813 = vmatprep.subr.mxu0 0.0
        %1814 = vmatpush1.msra.mxu0 0.0
        %1815 = vmatprep.subr.mxu0 0.0
        %1816 = vmatpush1.msra.mxu0 0.0
        %1817 = vmatprep.subr.mxu0 0.0
        %1818 = vmatpush1.msra.mxu0 0.0
        %1819 = vmatprep.subr.mxu0 0.0
        %1820 = vmatpush1.msra.mxu0 0.0
        %1821 = vmatprep.subr.mxu0 0.0
        %1822 = vmatpush1.msra.mxu0 0.0
        %1823 = vmatprep.subr.mxu0 0.0
        %1824 = vmatpush1.msra.mxu0 0.0
        %1825 = vmatprep.subr.mxu0 0.0
        %1826 = vmatpush1.msra.mxu0 0.0
        %1827 = vmatprep.subr.mxu0 0.0
        %1828 = vmatpush1.msra.mxu0 0.0
        %1829 = vmatprep.subr.mxu0 0.0
        %1830 = vmatpush1.msra.mxu0 0.0
        %1831 = vmatprep.subr.mxu0 0.0
        %1832 = vmatpush1.msra.mxu0 0.0
        %1833 = vmatprep.subr.mxu0 0.0
        %1834 = vmatpush1.msra.mxu0 0.0
        %1835 = vmatprep.subr.mxu0 0.0
        %1836 = vmatpush1.msra.mxu0 0.0
        %1837 = vmatprep.subr.mxu0 0.0
        %1838 = vmatpush1.msra.mxu0 0.0
        %1839 = vmatprep.subr.mxu0 0.0
        %1840 = vmatpush1.msra.mxu0 0.0
        %1841 = vmatprep.subr.mxu0 0.0
        %1842 = vmatpush1.msra.mxu0 0.0
        %1843 = vmatprep.subr.mxu0 0.0
        %1844 = vmatpush1.msra.mxu0 0.0
        %1845 = vmatprep.subr.mxu0 0.0
        %1846 = vmatpush1.msra.mxu0 0.0
        %1847 = vmatprep.subr.mxu0 0.0
        %1848 = vmatpush1.msra.mxu0 0.0
        %1849 = vmatprep.subr.mxu0 0.0
        %1850 = vmatpush1.msra.mxu0 0.0
        %1851 = vmatprep.subr.mxu0 0.0
        %1852 = vmatpush1.msra.mxu0 0.0
        %1853 = vmatprep.subr.mxu0 0.0
        %1854 = vmatpush1.msra.mxu0 0.0
        %1855 = vmatprep.subr.mxu0 0.0
        %1856 = vmatpush1.msra.mxu0 0.0
        %1857 = vmatprep.subr.mxu0 0.0
        %1858 = vmatpush1.msra.mxu0 0.0
        %1859 = vmatprep.subr.mxu0 0.0
        %1860 = vmatpush1.msra.mxu0 0.0
        %1861 = vmatprep.subr.mxu0 0.0
        %1862 = vmatpush1.msra.mxu0 0.0
        %1863 = vmatprep.subr.mxu0 0.0
        %1864 = vmatpush1.msra.mxu0 0.0
        %1865 = vmatprep.subr.mxu0 0.0
        %1866 = vmatpush1.msra.mxu0 0.0
        %1867 = vmatprep.subr.mxu0 0.0
        %1868 = vmatpush1.msra.mxu0 0.0
        %1869 = vmatprep.subr.mxu0 0.0
        %1870 = vmatpush1.msra.mxu0 0.0
        %1871 = vmatprep.mubr.f32.mxu0 0.0
        %1872 = vmatmul.mubr.f32.gmra.mrb[0].mxu0 %v892
        %v1873 = vpop.f32.mrb[0].mxu0
        %v1874 = vadd.f32 0.0, %v1873
        %v1875 = vpop.f32.mrb[0].mxu0
        %1876 = vmatprep.mubr.f32.mxu0 0.0
        %1877 = vmatmul.mubr.f32.gmra.mrb[0].mxu0 %v894
        %v1878 = vpop.f32.mrb[0].mxu0
        %v1879 = vadd.f32 0.0, %v1878
        %v1880 = vpop.f32.mrb[0].mxu0
        %1881 = vmatprep.mubr.f32.mxu0 0.0
        %1882 = vmatmul.mubr.f32.gmra.mrb[0].mxu0 %v896
        %v1883 = vpop.f32.mrb[0].mxu0
        %v1884 = vpop.f32.mrb[0].mxu0
        %1885 = vmatprep.mubr.f32.mxu0 0.0
        %1886 = vmatmul.mubr.f32.gmra.mrb[0].mxu0 %v898
        %v1887 = vpop.f32.mrb[0].mxu0
        %v1888 = vadd.f32 0.0, %v1887
        %v1889 = vpop.f32.mrb[0].mxu0
        %1890 = vmatprep.mubr.f32.mxu0 0.0
        %1891 = vmatmul.mubr.f32.gmra.mrb[0].mxu0 %v900
        %v1892 = vpop.f32.mrb[0].mxu0
        %v1893 = vadd.f32 0.0, %v1892
        %v1894 = vpop.f32.mrb[0].mxu0
        %1895 = vmatprep.mubr.f32.mxu0 0.0
        %1896 = vmatmul.mubr.f32.gmra.mrb[0].mxu0 %v902
        %v1897 = vpop.f32.mrb[0].mxu0
        %v1898 = vpop.f32.mrb[0].mxu0
        %1899 = vmatprep.mubr.f32.mxu0 0.0
        %1900 = vmatmul.mubr.f32.gmra.mrb[0].mxu0 %v904
        %v1901 = vpop.f32.mrb[0].mxu0
        %v1902 = vadd.f32 0.0, %v1901
        %v1903 = vpop.f32.mrb[0].mxu0
        %1904 = vmatprep.mubr.f32.mxu0 0.0
        %1905 = vmatmul.mubr.f32.gmra.mrb[0].mxu0 %v906
        %v1906 = vpop.f32.mrb[0].mxu0
        %v1907 = vadd.f32 0.0, %v1906
        %v1908 = vpop.f32.mrb[0].mxu0
        %1909 = vmatprep.mubr.f32.mxu0 0.0
        %1910 = vmatmul.mubr.f32.gmra.mrb[0].mxu0 %v908
        %v1911 = vpop.f32.mrb[0].mxu0
        %v1912 = vpop.f32.mrb[0].mxu0
        %1913 = vmatprep.mubr.f32.mxu0 0.0
        %1914 = vmatmul.mubr.f32.gmra.mrb[0].mxu0 %v910
        %v1915 = vpop.f32.mrb[0].mxu0
        %v1916 = vadd.f32 0.0, %v1915
        %v1917 = vpop.f32.mrb[0].mxu0
        %1918 = vmatprep.mubr.f32.mxu0 0.0
        %1919 = vmatmul.mubr.f32.gmra.mrb[0].mxu0 %v912
        %v1920 = vpop.f32.mrb[0].mxu0
        %v1921 = vadd.f32 0.0, %v1920
        %v1922 = vpop.f32.mrb[0].mxu0
        %1923 = vmatprep.mubr.f32.mxu0 0.0
        %1924 = vmatmul.mubr.f32.gmra.mrb[0].mxu0 %v914
        %v1925 = vpop.f32.mrb[0].mxu0
        %v1926 = vpop.f32.mrb[0].mxu0
        %1927 = vmatprep.mubr.f32.mxu0 0.0
        %1928 = vmatmul.mubr.f32.gmra.mrb[0].mxu0 %v916
        %v1929 = vpop.f32.mrb[0].mxu0
        %v1930 = vadd.f32 0.0, %v1929
        %v1931 = vpop.f32.mrb[0].mxu0
        %1932 = vmatprep.mubr.f32.mxu0 0.0
        %1933 = vmatmul.mubr.f32.gmra.mrb[0].mxu0 %v918
        %v1934 = vpop.f32.mrb[0].mxu0
        %v1935 = vadd.f32 0.0, %v1934
        %v1936 = vpop.f32.mrb[0].mxu0
        %1937 = vmatprep.mubr.f32.mxu0 0.0
        %1938 = vmatmul.mubr.f32.gmra.mrb[0].mxu0 %v920
        %v1939 = vpop.f32.mrb[0].mxu0
        %v1940 = vpop.f32.mrb[0].mxu0
        %1941 = vmatprep.mubr.f32.mxu0 0.0
        %1942 = vmatmul.mubr.f32.gmra.mrb[0].mxu0 %v922
        %v1943 = vpop.f32.mrb[0].mxu0
        %v1944 = vadd.f32 0.0, %v1943
        %v1945 = vpop.f32.mrb[0].mxu0
        %1946 = vmatprep.mubr.f32.mxu0 0.0
        %1947 = vmatmul.mubr.f32.gmra.mrb[0].mxu0 %v924
        %v1948 = vpop.f32.mrb[0].mxu0
        %v1949 = vadd.f32 0.0, %v1948
        %v1950 = vpop.f32.mrb[0].mxu0
        %1951 = vmatprep.mubr.f32.mxu0 0.0
        %1952 = vmatmul.mubr.f32.gmra.mrb[0].mxu0 %v926
        %v1953 = vpop.f32.mrb[0].mxu0
        %v1954 = vpop.f32.mrb[0].mxu0
        %1955 = vmatprep.mubr.f32.mxu0 0.0
        %1956 = vmatmul.mubr.f32.gmra.mrb[0].mxu0 %v928
        %v1957 = vpop.f32.mrb[0].mxu0
        %v1958 = vadd.f32 0.0, %v1957
        %v1959 = vpop.f32.mrb[0].mxu0
        %1960 = vmatprep.mubr.f32.mxu0 0.0
        %1961 = vmatmul.mubr.f32.gmra.mrb[0].mxu0 %v930
        %v1962 = vpop.f32.mrb[0].mxu0
        %v1963 = vadd.f32 0.0, %v1962
        %v1964 = vpop.f32.mrb[0].mxu0
        %1965 = vmatprep.mubr.f32.mxu0 0.0
        %1966 = vmatmul.mubr.f32.gmra.mrb[0].mxu0 %v932
        %v1967 = vpop.f32.mrb[0].mxu0
        %v1968 = vpop.f32.mrb[0].mxu0
        %1969 = vmatprep.mubr.f32.mxu0 0.0
        %1970 = vmatmul.mubr.f32.gmra.mrb[0].mxu0 %v934
        %v1971 = vpop.f32.mrb[0].mxu0
        %v1972 = vadd.f32 0.0, %v1971
        %v1973 = vpop.f32.mrb[0].mxu0
        %1974 = vmatprep.mubr.f32.mxu0 0.0
        %1975 = vmatmul.mubr.f32.gmra.mrb[0].mxu0 %v936
        %v1976 = vpop.f32.mrb[0].mxu0
        %v1977 = vadd.f32 0.0, %v1976
        %v1978 = vpop.f32.mrb[0].mxu0
        %1979 = vmatprep.mubr.f32.mxu0 0.0
        %1980 = vmatmul.mubr.f32.gmra.mrb[0].mxu0 %v938
        %v1981 = vpop.f32.mrb[0].mxu0
        %v1982 = vpop.f32.mrb[0].mxu0
        %1983 = vmatprep.mubr.f32.mxu0 0.0
        %1984 = vmatmul.mubr.f32.gmra.mrb[0].mxu0 %v940
        %v1985 = vpop.f32.mrb[0].mxu0
        %v1986 = vadd.f32 0.0, %v1985
        %v1987 = vpop.f32.mrb[0].mxu0
        %1988 = vmatprep.mubr.f32.mxu0 0.0
        %1989 = vmatmul.mubr.f32.gmra.mrb[0].mxu0 %v942
        %v1990 = vpop.f32.mrb[0].mxu0
        %v1991 = vadd.f32 0.0, %v1990
        %v1992 = vpop.f32.mrb[0].mxu0
        %1993 = vmatprep.mubr.f32.mxu0 0.0
        %1994 = vmatmul.mubr.f32.gmra.mrb[0].mxu0 %v944
        %v1995 = vpop.f32.mrb[0].mxu0
        %v1996 = vpop.f32.mrb[0].mxu0
        %1997 = vmatprep.mubr.f32.mxu0 0.0
        %1998 = vmatmul.mubr.f32.gmra.mrb[0].mxu0 %v946
        %v1999 = vpop.f32.mrb[0].mxu0
        %v2000 = vadd.f32 0.0, %v1999
        %v2001 = vpop.f32.mrb[0].mxu0
        %2002 = vmatprep.mubr.f32.mxu0 0.0
        %2003 = vmatmul.mubr.f32.gmra.mrb[0].mxu0 %v948
        %v2004 = vpop.f32.mrb[0].mxu0
        %v2005 = vadd.f32 0.0, %v2004
        %v2006 = vpop.f32.mrb[0].mxu0
        %2007 = vmatprep.mubr.f32.mxu0 0.0
        %2008 = vmatmul.mubr.f32.gmra.mrb[0].mxu0 %v950
        %v2009 = vpop.f32.mrb[0].mxu0
        %v2010 = vpop.f32.mrb[0].mxu0
        %2011 = vmatprep.mubr.f32.mxu0 0.0
        %2012 = vmatmul.mubr.f32.gmra.mrb[0].mxu0 %v952
        %v2013 = vpop.f32.mrb[0].mxu0
        %v2014 = vadd.f32 0.0, %v2013
        %v2015 = vpop.f32.mrb[0].mxu0
        %2016 = vmatprep.mubr.f32.mxu0 0.0
        %2017 = vmatmul.mubr.f32.gmra.mrb[0].mxu0 %v954
        %v2018 = vpop.f32.mrb[0].mxu0
        %v2019 = vadd.f32 0.0, %v2018
        %v2020 = vpop.f32.mrb[0].mxu0
        %2021 = vmatprep.mubr.f32.mxu0 0.0
        %2022 = vmatmul.mubr.f32.gmra.mrb[0].mxu0 %v956
        %v2023 = vpop.f32.mrb[0].mxu0
        %v2024 = vpop.f32.mrb[0].mxu0
        %2025 = vmatprep.mubr.f32.mxu0 0.0
        %2026 = vmatmul.mubr.f32.gmra.mrb[0].mxu0 %v958
        %v2027 = vpop.f32.mrb[0].mxu0
        %v2028 = vadd.f32 0.0, %v2027
        %v2029 = vpop.f32.mrb[0].mxu0
        %2030 = vmatprep.mubr.f32.mxu0 0.0
        %2031 = vmatmul.mubr.f32.gmra.mrb[0].mxu0 %v960
        %v2032 = vpop.f32.mrb[0].mxu0
        %v2033 = vadd.f32 0.0, %v2032
        %v2034 = vpop.f32.mrb[0].mxu0
        %2035 = vmatprep.mubr.f32.mxu0 0.0
        %2036 = vmatmul.mubr.f32.gmra.mrb[0].mxu0 %v962
        %v2037 = vpop.f32.mrb[0].mxu0
        %v2038 = vpop.f32.mrb[0].mxu0
        %2039 = vmatprep.mubr.f32.mxu0 0.0
        %2040 = vmatmul.mubr.f32.gmra.mrb[0].mxu0 %v964
        %v2041 = vpop.f32.mrb[0].mxu0
        %v2042 = vadd.f32 0.0, %v2041
        %v2043 = vpop.f32.mrb[0].mxu0
        %2044 = vmatprep.mubr.f32.mxu0 0.0
        %2045 = vmatmul.mubr.f32.gmra.mrb[0].mxu0 %v966
        %v2046 = vpop.f32.mrb[0].mxu0
        %v2047 = vadd.f32 0.0, %v2046
        %v2048 = vpop.f32.mrb[0].mxu0
        %2049 = vmatprep.mubr.f32.mxu0 0.0
        %2050 = vmatmul.mubr.f32.gmra.mrb[0].mxu0 %v968
        %v2051 = vpop.f32.mrb[0].mxu0
        %v2052 = vpop.f32.mrb[0].mxu0
        %2053 = vmatprep.mubr.f32.mxu0 0.0
        %2054 = vmatmul.mubr.f32.gmra.mrb[0].mxu0 %v970
        %v2055 = vpop.f32.mrb[0].mxu0
        %v2056 = vadd.f32 0.0, %v2055
        %v2057 = vpop.f32.mrb[0].mxu0
        %2058 = vmatprep.mubr.f32.mxu0 0.0
        %2059 = vmatmul.mubr.f32.gmra.mrb[0].mxu0 %v972
        %v2060 = vpop.f32.mrb[0].mxu0
        %v2061 = vadd.f32 0.0, %v2060
        %v2062 = vpop.f32.mrb[0].mxu0
        %2063 = vmatprep.mubr.f32.mxu0 0.0
        %2064 = vmatmul.mubr.f32.gmra.mrb[0].mxu0 %v974
        %v2065 = vpop.f32.mrb[0].mxu0
        %v2066 = vpop.f32.mrb[0].mxu0
        %2067 = vmatprep.mubr.f32.mxu0 0.0
        %2068 = vmatmul.mubr.f32.gmra.mrb[0].mxu0 %v976
        %v2069 = vpop.f32.mrb[0].mxu0
        %v2070 = vadd.f32 0.0, %v2069
        %v2071 = vpop.f32.mrb[0].mxu0
        %2072 = vmatprep.mubr.f32.mxu0 0.0
        %2073 = vmatmul.mubr.f32.gmra.mrb[0].mxu0 %v978
        %v2074 = vpop.f32.mrb[0].mxu0
        %v2075 = vadd.f32 0.0, %v2074
        %v2076 = vpop.f32.mrb[0].mxu0
        %2077 = vmatprep.mubr.f32.mxu0 0.0
        %2078 = vmatmul.mubr.f32.gmra.mrb[0].mxu0 %v980
        %v2079 = vpop.f32.mrb[0].mxu0
        %v2080 = vpop.f32.mrb[0].mxu0
        %2081 = vmatprep.mubr.f32.mxu0 0.0
        %2082 = vmatmul.mubr.f32.gmra.mrb[0].mxu0 %v1796
        %v2083 = vpop.f32.mrb[0].mxu0
        %v2084 = vadd.f32 0.0, %v2083
        %v2085 = vpop.f32.mrb[0].mxu0
        %2086 = vmatprep.mubr.f32.mxu0 0.0
        %2087 = vmatmul.mubr.f32.gmra.mrb[0].mxu0 %v1799
        %v2088 = vpop.f32.mrb[0].mxu0
        %v2089 = vadd.f32 0.0, %v2088
        %v2090 = vpop.f32.mrb[0].mxu0
        %2091 = vmatprep.mubr.f32.mxu0 0.0
        %2092 = vmatmul.mubr.f32.gmra.mrb[0].mxu0 %v1802
        %v2093 = vpop.f32.mrb[0].mxu0
        %v2094 = vpop.f32.mrb[0].mxu0
        %2095 = vdwg.mxu0
        %v2096 = vadd.f32 %v1762, %v1874
        %v2097 = vadd.f32 %v1763, %v1879
        %v2098 = vadd.f32 %v1764, %v1888
        %v2099 = vadd.f32 %v1765, %v1893
        %v2100 = vadd.f32 %v1766, %v1902
        %v2101 = vadd.f32 %v1767, %v1907
        %v2102 = vadd.f32 %v1768, %v1916
        %v2103 = vadd.f32 %v1769, %v1921
        %v2104 = vadd.f32 %v1770, %v1930
        %v2105 = vadd.f32 %v1771, %v1935
        %v2106 = vadd.f32 %v1772, %v1944
        %v2107 = vadd.f32 %v1773, %v1949
        %v2108 = vadd.f32 %v1774, %v1958
        %v2109 = vadd.f32 %v1775, %v1963
        %v2110 = vadd.f32 %v1776, %v1972
        %v2111 = vadd.f32 %v1777, %v1977
        %v2112 = vadd.f32 %v1778, %v1986
        %v2113 = vadd.f32 %v1779, %v1991
        %v2114 = vadd.f32 %v1780, %v2000
        %v2115 = vadd.f32 %v1781, %v2005
        %v2116 = vadd.f32 %v1782, %v2014
        %v2117 = vadd.f32 %v1783, %v2019
        %v2118 = vadd.f32 %v1784, %v2028
        %v2119 = vadd.f32 %v1785, %v2033
        %v2120 = vadd.f32 %v1786, %v2042
        %v2121 = vadd.f32 %v1787, %v2047
        %v2122 = vadd.f32 %v1788, %v2056
        %v2123 = vadd.f32 %v1789, %v2061
        %v2124 = vadd.f32 %v1790, %v2070
        %v2125 = vadd.f32 %v1791, %v2075
        %v2126 = vadd.f32 %v1792, %v2084
        %v2127 = vadd.f32 %v1793, %v2089
        %s2128 = scalar_lea.vmem %s1, 16
        %v2129 = vld [vmem:[%s2128] sm:$0x7]
        %v2131 = vrot.slane %v341, 1
        %v2132 = vsel %vm399, %v495, %v2131
        %v2133 = vrot.slane %v342, 1
        %v2134 = vsel %vm399, %v2131, %v2133
        %v2135 = vrot.slane %v343, 1
        %v2136 = vsel %vm399, %v2133, %v2135
        %v2137 = vsel %vm169, %v2132, 0
        %v2139 = vsel %vm169, %v2134, 0
        %v2141 = vsel %vm169, %v2136, 0
        %v2144 = vsel %vm593, %v2129, 0
        %2146 = vmatprep.subr.mxu0 0.0
        %2147 = vmatpush1.msra.mxu0 %v2144
        %2148 = vmatprep.subr.mxu0 0.0
        %2149 = vmatpush1.msra.mxu0 0.0
        %2150 = vmatprep.subr.mxu0 0.0
        %2151 = vmatpush1.msra.mxu0 0.0
        %2152 = vmatprep.subr.mxu0 0.0
        %2153 = vmatpush1.msra.mxu0 0.0
        %2154 = vmatprep.subr.mxu0 0.0
        %2155 = vmatpush1.msra.mxu0 0.0
        %2156 = vmatprep.subr.mxu0 0.0
        %2157 = vmatpush1.msra.mxu0 0.0
        %2158 = vmatprep.subr.mxu0 0.0
        %2159 = vmatpush1.msra.mxu0 0.0
        %2160 = vmatprep.subr.mxu0 0.0
        %2161 = vmatpush1.msra.mxu0 0.0
        %2162 = vmatprep.subr.mxu0 0.0
        %2163 = vmatpush1.msra.mxu0 0.0
        %2164 = vmatprep.subr.mxu0 0.0
        %2165 = vmatpush1.msra.mxu0 0.0
        %2166 = vmatprep.subr.mxu0 0.0
        %2167 = vmatpush1.msra.mxu0 0.0
        %2168 = vmatprep.subr.mxu0 0.0
        %2169 = vmatpush1.msra.mxu0 0.0
        %2170 = vmatprep.subr.mxu0 0.0
        %2171 = vmatpush1.msra.mxu0 0.0
        %2172 = vmatprep.subr.mxu0 0.0
        %2173 = vmatpush1.msra.mxu0 0.0
        %2174 = vmatprep.subr.mxu0 0.0
        %2175 = vmatpush1.msra.mxu0 0.0
        %2176 = vmatprep.subr.mxu0 0.0
        %2177 = vmatpush1.msra.mxu0 0.0
        %2178 = vmatprep.subr.mxu0 0.0
        %2179 = vmatpush1.msra.mxu0 0.0
        %2180 = vmatprep.subr.mxu0 0.0
        %2181 = vmatpush1.msra.mxu0 0.0
        %2182 = vmatprep.subr.mxu0 0.0
        %2183 = vmatpush1.msra.mxu0 0.0
        %2184 = vmatprep.subr.mxu0 0.0
        %2185 = vmatpush1.msra.mxu0 0.0
        %2186 = vmatprep.subr.mxu0 0.0
        %2187 = vmatpush1.msra.mxu0 0.0
        %2188 = vmatprep.subr.mxu0 0.0
        %2189 = vmatpush1.msra.mxu0 0.0
        %2190 = vmatprep.subr.mxu0 0.0
        %2191 = vmatpush1.msra.mxu0 0.0
        %2192 = vmatprep.subr.mxu0 0.0
        %2193 = vmatpush1.msra.mxu0 0.0
        %2194 = vmatprep.subr.mxu0 0.0
        %2195 = vmatpush1.msra.mxu0 0.0
        %2196 = vmatprep.subr.mxu0 0.0
        %2197 = vmatpush1.msra.mxu0 0.0
        %2198 = vmatprep.subr.mxu0 0.0
        %2199 = vmatpush1.msra.mxu0 0.0
        %2200 = vmatprep.subr.mxu0 0.0
        %2201 = vmatpush1.msra.mxu0 0.0
        %2202 = vmatprep.subr.mxu0 0.0
        %2203 = vmatpush1.msra.mxu0 0.0
        %2204 = vmatprep.subr.mxu0 0.0
        %2205 = vmatpush1.msra.mxu0 0.0
        %2206 = vmatprep.subr.mxu0 0.0
        %2207 = vmatpush1.msra.mxu0 0.0
        %2208 = vmatprep.subr.mxu0 0.0
        %2209 = vmatpush1.msra.mxu0 0.0
        %2210 = vmatprep.mubr.f32.mxu0 0.0
        %2211 = vmatmul.mubr.f32.gmra.mrb[0].mxu0 %v503
        %v2212 = vpop.f32.mrb[0].mxu0
        %v2213 = vadd.f32 0.0, %v2212
        %v2214 = vpop.f32.mrb[0].mxu0
        %2215 = vmatprep.mubr.f32.mxu0 0.0
        %2216 = vmatmul.mubr.f32.gmra.mrb[0].mxu0 %v505
        %v2217 = vpop.f32.mrb[0].mxu0
        %v2218 = vadd.f32 0.0, %v2217
        %v2219 = vpop.f32.mrb[0].mxu0
        %2220 = vmatprep.mubr.f32.mxu0 0.0
        %2221 = vmatmul.mubr.f32.gmra.mrb[0].mxu0 %v507
        %v2222 = vpop.f32.mrb[0].mxu0
        %v2223 = vpop.f32.mrb[0].mxu0
        %2224 = vmatprep.mubr.f32.mxu0 0.0
        %2225 = vmatmul.mubr.f32.gmra.mrb[0].mxu0 %v509
        %v2226 = vpop.f32.mrb[0].mxu0
        %v2227 = vadd.f32 0.0, %v2226
        %v2228 = vpop.f32.mrb[0].mxu0
        %2229 = vmatprep.mubr.f32.mxu0 0.0
        %2230 = vmatmul.mubr.f32.gmra.mrb[0].mxu0 %v511
        %v2231 = vpop.f32.mrb[0].mxu0
        %v2232 = vadd.f32 0.0, %v2231
        %v2233 = vpop.f32.mrb[0].mxu0
        %2234 = vmatprep.mubr.f32.mxu0 0.0
        %2235 = vmatmul.mubr.f32.gmra.mrb[0].mxu0 %v513
        %v2236 = vpop.f32.mrb[0].mxu0
        %v2237 = vpop.f32.mrb[0].mxu0
        %2238 = vmatprep.mubr.f32.mxu0 0.0
        %2239 = vmatmul.mubr.f32.gmra.mrb[0].mxu0 %v515
        %v2240 = vpop.f32.mrb[0].mxu0
        %v2241 = vadd.f32 0.0, %v2240
        %v2242 = vpop.f32.mrb[0].mxu0
        %2243 = vmatprep.mubr.f32.mxu0 0.0
        %2244 = vmatmul.mubr.f32.gmra.mrb[0].mxu0 %v517
        %v2245 = vpop.f32.mrb[0].mxu0
        %v2246 = vadd.f32 0.0, %v2245
        %v2247 = vpop.f32.mrb[0].mxu0
        %2248 = vmatprep.mubr.f32.mxu0 0.0
        %2249 = vmatmul.mubr.f32.gmra.mrb[0].mxu0 %v519
        %v2250 = vpop.f32.mrb[0].mxu0
        %v2251 = vpop.f32.mrb[0].mxu0
        %2252 = vmatprep.mubr.f32.mxu0 0.0
        %2253 = vmatmul.mubr.f32.gmra.mrb[0].mxu0 %v521
        %v2254 = vpop.f32.mrb[0].mxu0
        %v2255 = vadd.f32 0.0, %v2254
        %v2256 = vpop.f32.mrb[0].mxu0
        %2257 = vmatprep.mubr.f32.mxu0 0.0
        %2258 = vmatmul.mubr.f32.gmra.mrb[0].mxu0 %v523
        %v2259 = vpop.f32.mrb[0].mxu0
        %v2260 = vadd.f32 0.0, %v2259
        %v2261 = vpop.f32.mrb[0].mxu0
        %2262 = vmatprep.mubr.f32.mxu0 0.0
        %2263 = vmatmul.mubr.f32.gmra.mrb[0].mxu0 %v525
        %v2264 = vpop.f32.mrb[0].mxu0
        %v2265 = vpop.f32.mrb[0].mxu0
        %2266 = vmatprep.mubr.f32.mxu0 0.0
        %2267 = vmatmul.mubr.f32.gmra.mrb[0].mxu0 %v527
        %v2268 = vpop.f32.mrb[0].mxu0
        %v2269 = vadd.f32 0.0, %v2268
        %v2270 = vpop.f32.mrb[0].mxu0
        %2271 = vmatprep.mubr.f32.mxu0 0.0
        %2272 = vmatmul.mubr.f32.gmra.mrb[0].mxu0 %v529
        %v2273 = vpop.f32.mrb[0].mxu0
        %v2274 = vadd.f32 0.0, %v2273
        %v2275 = vpop.f32.mrb[0].mxu0
        %2276 = vmatprep.mubr.f32.mxu0 0.0
        %2277 = vmatmul.mubr.f32.gmra.mrb[0].mxu0 %v531
        %v2278 = vpop.f32.mrb[0].mxu0
        %v2279 = vpop.f32.mrb[0].mxu0
        %2280 = vmatprep.mubr.f32.mxu0 0.0
        %2281 = vmatmul.mubr.f32.gmra.mrb[0].mxu0 %v533
        %v2282 = vpop.f32.mrb[0].mxu0
        %v2283 = vadd.f32 0.0, %v2282
        %v2284 = vpop.f32.mrb[0].mxu0
        %2285 = vmatprep.mubr.f32.mxu0 0.0
        %2286 = vmatmul.mubr.f32.gmra.mrb[0].mxu0 %v535
        %v2287 = vpop.f32.mrb[0].mxu0
        %v2288 = vadd.f32 0.0, %v2287
        %v2289 = vpop.f32.mrb[0].mxu0
        %2290 = vmatprep.mubr.f32.mxu0 0.0
        %2291 = vmatmul.mubr.f32.gmra.mrb[0].mxu0 %v537
        %v2292 = vpop.f32.mrb[0].mxu0
        %v2293 = vpop.f32.mrb[0].mxu0
        %2294 = vmatprep.mubr.f32.mxu0 0.0
        %2295 = vmatmul.mubr.f32.gmra.mrb[0].mxu0 %v539
        %v2296 = vpop.f32.mrb[0].mxu0
        %v2297 = vadd.f32 0.0, %v2296
        %v2298 = vpop.f32.mrb[0].mxu0
        %2299 = vmatprep.mubr.f32.mxu0 0.0
        %2300 = vmatmul.mubr.f32.gmra.mrb[0].mxu0 %v541
        %v2301 = vpop.f32.mrb[0].mxu0
        %v2302 = vadd.f32 0.0, %v2301
        %v2303 = vpop.f32.mrb[0].mxu0
        %2304 = vmatprep.mubr.f32.mxu0 0.0
        %2305 = vmatmul.mubr.f32.gmra.mrb[0].mxu0 %v543
        %v2306 = vpop.f32.mrb[0].mxu0
        %v2307 = vpop.f32.mrb[0].mxu0
        %2308 = vmatprep.mubr.f32.mxu0 0.0
        %2309 = vmatmul.mubr.f32.gmra.mrb[0].mxu0 %v545
        %v2310 = vpop.f32.mrb[0].mxu0
        %v2311 = vadd.f32 0.0, %v2310
        %v2312 = vpop.f32.mrb[0].mxu0
        %2313 = vmatprep.mubr.f32.mxu0 0.0
        %2314 = vmatmul.mubr.f32.gmra.mrb[0].mxu0 %v547
        %v2315 = vpop.f32.mrb[0].mxu0
        %v2316 = vadd.f32 0.0, %v2315
        %v2317 = vpop.f32.mrb[0].mxu0
        %2318 = vmatprep.mubr.f32.mxu0 0.0
        %2319 = vmatmul.mubr.f32.gmra.mrb[0].mxu0 %v549
        %v2320 = vpop.f32.mrb[0].mxu0
        %v2321 = vpop.f32.mrb[0].mxu0
        %2322 = vmatprep.mubr.f32.mxu0 0.0
        %2323 = vmatmul.mubr.f32.gmra.mrb[0].mxu0 %v551
        %v2324 = vpop.f32.mrb[0].mxu0
        %v2325 = vadd.f32 0.0, %v2324
        %v2326 = vpop.f32.mrb[0].mxu0
        %2327 = vmatprep.mubr.f32.mxu0 0.0
        %2328 = vmatmul.mubr.f32.gmra.mrb[0].mxu0 %v553
        %v2329 = vpop.f32.mrb[0].mxu0
        %v2330 = vadd.f32 0.0, %v2329
        %v2331 = vpop.f32.mrb[0].mxu0
        %2332 = vmatprep.mubr.f32.mxu0 0.0
        %2333 = vmatmul.mubr.f32.gmra.mrb[0].mxu0 %v555
        %v2334 = vpop.f32.mrb[0].mxu0
        %v2335 = vpop.f32.mrb[0].mxu0
        %2336 = vmatprep.mubr.f32.mxu0 0.0
        %2337 = vmatmul.mubr.f32.gmra.mrb[0].mxu0 %v557
        %v2338 = vpop.f32.mrb[0].mxu0
        %v2339 = vadd.f32 0.0, %v2338
        %v2340 = vpop.f32.mrb[0].mxu0
        %2341 = vmatprep.mubr.f32.mxu0 0.0
        %2342 = vmatmul.mubr.f32.gmra.mrb[0].mxu0 %v559
        %v2343 = vpop.f32.mrb[0].mxu0
        %v2344 = vadd.f32 0.0, %v2343
        %v2345 = vpop.f32.mrb[0].mxu0
        %2346 = vmatprep.mubr.f32.mxu0 0.0
        %2347 = vmatmul.mubr.f32.gmra.mrb[0].mxu0 %v561
        %v2348 = vpop.f32.mrb[0].mxu0
        %v2349 = vpop.f32.mrb[0].mxu0
        %2350 = vmatprep.mubr.f32.mxu0 0.0
        %2351 = vmatmul.mubr.f32.gmra.mrb[0].mxu0 %v563
        %v2352 = vpop.f32.mrb[0].mxu0
        %v2353 = vadd.f32 0.0, %v2352
        %v2354 = vpop.f32.mrb[0].mxu0
        %2355 = vmatprep.mubr.f32.mxu0 0.0
        %2356 = vmatmul.mubr.f32.gmra.mrb[0].mxu0 %v565
        %v2357 = vpop.f32.mrb[0].mxu0
        %v2358 = vadd.f32 0.0, %v2357
        %v2359 = vpop.f32.mrb[0].mxu0
        %2360 = vmatprep.mubr.f32.mxu0 0.0
        %2361 = vmatmul.mubr.f32.gmra.mrb[0].mxu0 %v567
        %v2362 = vpop.f32.mrb[0].mxu0
        %v2363 = vpop.f32.mrb[0].mxu0
        %2364 = vmatprep.mubr.f32.mxu0 0.0
        %2365 = vmatmul.mubr.f32.gmra.mrb[0].mxu0 %v569
        %v2366 = vpop.f32.mrb[0].mxu0
        %v2367 = vadd.f32 0.0, %v2366
        %v2368 = vpop.f32.mrb[0].mxu0
        %2369 = vmatprep.mubr.f32.mxu0 0.0
        %2370 = vmatmul.mubr.f32.gmra.mrb[0].mxu0 %v571
        %v2371 = vpop.f32.mrb[0].mxu0
        %v2372 = vadd.f32 0.0, %v2371
        %v2373 = vpop.f32.mrb[0].mxu0
        %2374 = vmatprep.mubr.f32.mxu0 0.0
        %2375 = vmatmul.mubr.f32.gmra.mrb[0].mxu0 %v573
        %v2376 = vpop.f32.mrb[0].mxu0
        %v2377 = vpop.f32.mrb[0].mxu0
        %2378 = vmatprep.mubr.f32.mxu0 0.0
        %2379 = vmatmul.mubr.f32.gmra.mrb[0].mxu0 %v575
        %v2380 = vpop.f32.mrb[0].mxu0
        %v2381 = vadd.f32 0.0, %v2380
        %v2382 = vpop.f32.mrb[0].mxu0
        %2383 = vmatprep.mubr.f32.mxu0 0.0
        %2384 = vmatmul.mubr.f32.gmra.mrb[0].mxu0 %v577
        %v2385 = vpop.f32.mrb[0].mxu0
        %v2386 = vadd.f32 0.0, %v2385
        %v2387 = vpop.f32.mrb[0].mxu0
        %2388 = vmatprep.mubr.f32.mxu0 0.0
        %2389 = vmatmul.mubr.f32.gmra.mrb[0].mxu0 %v579
        %v2390 = vpop.f32.mrb[0].mxu0
        %v2391 = vpop.f32.mrb[0].mxu0
        %2392 = vmatprep.mubr.f32.mxu0 0.0
        %2393 = vmatmul.mubr.f32.gmra.mrb[0].mxu0 %v581
        %v2394 = vpop.f32.mrb[0].mxu0
        %v2395 = vadd.f32 0.0, %v2394
        %v2396 = vpop.f32.mrb[0].mxu0
        %2397 = vmatprep.mubr.f32.mxu0 0.0
        %2398 = vmatmul.mubr.f32.gmra.mrb[0].mxu0 %v583
        %v2399 = vpop.f32.mrb[0].mxu0
        %v2400 = vadd.f32 0.0, %v2399
        %v2401 = vpop.f32.mrb[0].mxu0
        %2402 = vmatprep.mubr.f32.mxu0 0.0
        %2403 = vmatmul.mubr.f32.gmra.mrb[0].mxu0 %v585
        %v2404 = vpop.f32.mrb[0].mxu0
        %v2405 = vpop.f32.mrb[0].mxu0
        %2406 = vmatprep.mubr.f32.mxu0 0.0
        %2407 = vmatmul.mubr.f32.gmra.mrb[0].mxu0 %v587
        %v2408 = vpop.f32.mrb[0].mxu0
        %v2409 = vadd.f32 0.0, %v2408
        %v2410 = vpop.f32.mrb[0].mxu0
        %2411 = vmatprep.mubr.f32.mxu0 0.0
        %2412 = vmatmul.mubr.f32.gmra.mrb[0].mxu0 %v589
        %v2413 = vpop.f32.mrb[0].mxu0
        %v2414 = vadd.f32 0.0, %v2413
        %v2415 = vpop.f32.mrb[0].mxu0
        %2416 = vmatprep.mubr.f32.mxu0 0.0
        %2417 = vmatmul.mubr.f32.gmra.mrb[0].mxu0 %v591
        %v2418 = vpop.f32.mrb[0].mxu0
        %v2419 = vpop.f32.mrb[0].mxu0
        %2420 = vmatprep.mubr.f32.mxu0 0.0
        %2421 = vmatmul.mubr.f32.gmra.mrb[0].mxu0 %v2137
        %v2422 = vpop.f32.mrb[0].mxu0
        %v2423 = vadd.f32 0.0, %v2422
        %v2424 = vpop.f32.mrb[0].mxu0
        %2425 = vmatprep.mubr.f32.mxu0 0.0
        %2426 = vmatmul.mubr.f32.gmra.mrb[0].mxu0 %v2139
        %v2427 = vpop.f32.mrb[0].mxu0
        %v2428 = vadd.f32 0.0, %v2427
        %v2429 = vpop.f32.mrb[0].mxu0
        %2430 = vmatprep.mubr.f32.mxu0 0.0
        %2431 = vmatmul.mubr.f32.gmra.mrb[0].mxu0 %v2141
        %v2432 = vpop.f32.mrb[0].mxu0
        %v2433 = vpop.f32.mrb[0].mxu0
        %2434 = vdwg.mxu0
        %v2435 = vadd.f32 %v2096, %v2213
        %v2436 = vadd.f32 %v2097, %v2218
        %v2437 = vadd.f32 %v2098, %v2227
        %v2438 = vadd.f32 %v2099, %v2232
        %v2439 = vadd.f32 %v2100, %v2241
        %v2440 = vadd.f32 %v2101, %v2246
        %v2441 = vadd.f32 %v2102, %v2255
        %v2442 = vadd.f32 %v2103, %v2260
        %v2443 = vadd.f32 %v2104, %v2269
        %v2444 = vadd.f32 %v2105, %v2274
        %v2445 = vadd.f32 %v2106, %v2283
        %v2446 = vadd.f32 %v2107, %v2288
        %v2447 = vadd.f32 %v2108, %v2297
        %v2448 = vadd.f32 %v2109, %v2302
        %v2449 = vadd.f32 %v2110, %v2311
        %v2450 = vadd.f32 %v2111, %v2316
        %v2451 = vadd.f32 %v2112, %v2325
        %v2452 = vadd.f32 %v2113, %v2330
        %v2453 = vadd.f32 %v2114, %v2339
        %v2454 = vadd.f32 %v2115, %v2344
        %v2455 = vadd.f32 %v2116, %v2353
        %v2456 = vadd.f32 %v2117, %v2358
        %v2457 = vadd.f32 %v2118, %v2367
        %v2458 = vadd.f32 %v2119, %v2372
        %v2459 = vadd.f32 %v2120, %v2381
        %v2460 = vadd.f32 %v2121, %v2386
        %v2461 = vadd.f32 %v2122, %v2395
        %v2462 = vadd.f32 %v2123, %v2400
        %v2463 = vadd.f32 %v2124, %v2409
        %v2464 = vadd.f32 %v2125, %v2414
        %v2465 = vadd.f32 %v2126, %v2423
        %v2466 = vadd.f32 %v2127, %v2428
        %s2467 = scalar_lea.vmem %s1, 20
        %v2468 = vld [vmem:[%s2467] sm:$0x7]
        %v2469 = vrot.slane %v341, 2
        %v2470 = vsel %vm1276, %v1372, %v2469
        %v2471 = vrot.slane %v342, 2
        %v2472 = vsel %vm1276, %v2469, %v2471
        %v2473 = vrot.slane %v343, 2
        %v2474 = vsel %vm1276, %v2471, %v2473
        %v2475 = vsel %vm169, %v2470, 0
        %v2477 = vsel %vm169, %v2472, 0
        %v2479 = vsel %vm169, %v2474, 0
        %v2482 = vsel %vm593, %v2468, 0
        %2484 = vmatprep.subr.mxu0 0.0
        %2485 = vmatpush1.msra.mxu0 %v2482
        %2486 = vmatprep.subr.mxu0 0.0
        %2487 = vmatpush1.msra.mxu0 0.0
        %2488 = vmatprep.subr.mxu0 0.0
        %2489 = vmatpush1.msra.mxu0 0.0
        %2490 = vmatprep.subr.mxu0 0.0
        %2491 = vmatpush1.msra.mxu0 0.0
        %2492 = vmatprep.subr.mxu0 0.0
        %2493 = vmatpush1.msra.mxu0 0.0
        %2494 = vmatprep.subr.mxu0 0.0
        %2495 = vmatpush1.msra.mxu0 0.0
        %2496 = vmatprep.subr.mxu0 0.0
        %2497 = vmatpush1.msra.mxu0 0.0
        %2498 = vmatprep.subr.mxu0 0.0
        %2499 = vmatpush1.msra.mxu0 0.0
        %2500 = vmatprep.subr.mxu0 0.0
        %2501 = vmatpush1.msra.mxu0 0.0
        %2502 = vmatprep.subr.mxu0 0.0
        %2503 = vmatpush1.msra.mxu0 0.0
        %2504 = vmatprep.subr.mxu0 0.0
        %2505 = vmatpush1.msra.mxu0 0.0
        %2506 = vmatprep.subr.mxu0 0.0
        %2507 = vmatpush1.msra.mxu0 0.0
        %2508 = vmatprep.subr.mxu0 0.0
        %2509 = vmatpush1.msra.mxu0 0.0
        %2510 = vmatprep.subr.mxu0 0.0
        %2511 = vmatpush1.msra.mxu0 0.0
        %2512 = vmatprep.subr.mxu0 0.0
        %2513 = vmatpush1.msra.mxu0 0.0
        %2514 = vmatprep.subr.mxu0 0.0
        %2515 = vmatpush1.msra.mxu0 0.0
        %2516 = vmatprep.subr.mxu0 0.0
        %2517 = vmatpush1.msra.mxu0 0.0
        %2518 = vmatprep.subr.mxu0 0.0
        %2519 = vmatpush1.msra.mxu0 0.0
        %2520 = vmatprep.subr.mxu0 0.0
        %2521 = vmatpush1.msra.mxu0 0.0
        %2522 = vmatprep.subr.mxu0 0.0
        %2523 = vmatpush1.msra.mxu0 0.0
        %2524 = vmatprep.subr.mxu0 0.0
        %2525 = vmatpush1.msra.mxu0 0.0
        %2526 = vmatprep.subr.mxu0 0.0
        %2527 = vmatpush1.msra.mxu0 0.0
        %2528 = vmatprep.subr.mxu0 0.0
        %2529 = vmatpush1.msra.mxu0 0.0
        %2530 = vmatprep.subr.mxu0 0.0
        %2531 = vmatpush1.msra.mxu0 0.0
        %2532 = vmatprep.subr.mxu0 0.0
        %2533 = vmatpush1.msra.mxu0 0.0
        %2534 = vmatprep.subr.mxu0 0.0
        %2535 = vmatpush1.msra.mxu0 0.0
        %2536 = vmatprep.subr.mxu0 0.0
        %2537 = vmatpush1.msra.mxu0 0.0
        %2538 = vmatprep.subr.mxu0 0.0
        %2539 = vmatpush1.msra.mxu0 0.0
        %2540 = vmatprep.subr.mxu0 0.0
        %2541 = vmatpush1.msra.mxu0 0.0
        %2542 = vmatprep.subr.mxu0 0.0
        %2543 = vmatpush1.msra.mxu0 0.0
        %2544 = vmatprep.subr.mxu0 0.0
        %2545 = vmatpush1.msra.mxu0 0.0
        %2546 = vmatprep.subr.mxu0 0.0
        %2547 = vmatpush1.msra.mxu0 0.0
        %2548 = vmatprep.mubr.f32.mxu0 0.0
        %2549 = vmatmul.mubr.f32.gmra.mrb[0].mxu0 %v1380
        %v2550 = vpop.f32.mrb[0].mxu0
        %v2551 = vadd.f32 0.0, %v2550
        %v2552 = vpop.f32.mrb[0].mxu0
        %2553 = vmatprep.mubr.f32.mxu0 0.0
        %2554 = vmatmul.mubr.f32.gmra.mrb[0].mxu0 %v1382
        %v2555 = vpop.f32.mrb[0].mxu0
        %v2556 = vadd.f32 0.0, %v2555
        %v2557 = vpop.f32.mrb[0].mxu0
        %2558 = vmatprep.mubr.f32.mxu0 0.0
        %2559 = vmatmul.mubr.f32.gmra.mrb[0].mxu0 %v1384
        %v2560 = vpop.f32.mrb[0].mxu0
        %v2561 = vpop.f32.mrb[0].mxu0
        %2562 = vmatprep.mubr.f32.mxu0 0.0
        %2563 = vmatmul.mubr.f32.gmra.mrb[0].mxu0 %v1386
        %v2564 = vpop.f32.mrb[0].mxu0
        %v2565 = vadd.f32 0.0, %v2564
        %v2566 = vpop.f32.mrb[0].mxu0
        %2567 = vmatprep.mubr.f32.mxu0 0.0
        %2568 = vmatmul.mubr.f32.gmra.mrb[0].mxu0 %v1388
        %v2569 = vpop.f32.mrb[0].mxu0
        %v2570 = vadd.f32 0.0, %v2569
        %v2571 = vpop.f32.mrb[0].mxu0
        %2572 = vmatprep.mubr.f32.mxu0 0.0
        %2573 = vmatmul.mubr.f32.gmra.mrb[0].mxu0 %v1390
        %v2574 = vpop.f32.mrb[0].mxu0
        %v2575 = vpop.f32.mrb[0].mxu0
        %2576 = vmatprep.mubr.f32.mxu0 0.0
        %2577 = vmatmul.mubr.f32.gmra.mrb[0].mxu0 %v1392
        %v2578 = vpop.f32.mrb[0].mxu0
        %v2579 = vadd.f32 0.0, %v2578
        %v2580 = vpop.f32.mrb[0].mxu0
        %2581 = vmatprep.mubr.f32.mxu0 0.0
        %2582 = vmatmul.mubr.f32.gmra.mrb[0].mxu0 %v1394
        %v2583 = vpop.f32.mrb[0].mxu0
        %v2584 = vadd.f32 0.0, %v2583
        %v2585 = vpop.f32.mrb[0].mxu0
        %2586 = vmatprep.mubr.f32.mxu0 0.0
        %2587 = vmatmul.mubr.f32.gmra.mrb[0].mxu0 %v1396
        %v2588 = vpop.f32.mrb[0].mxu0
        %v2589 = vpop.f32.mrb[0].mxu0
        %2590 = vmatprep.mubr.f32.mxu0 0.0
        %2591 = vmatmul.mubr.f32.gmra.mrb[0].mxu0 %v1398
        %v2592 = vpop.f32.mrb[0].mxu0
        %v2593 = vadd.f32 0.0, %v2592
        %v2594 = vpop.f32.mrb[0].mxu0
        %2595 = vmatprep.mubr.f32.mxu0 0.0
        %2596 = vmatmul.mubr.f32.gmra.mrb[0].mxu0 %v1400
        %v2597 = vpop.f32.mrb[0].mxu0
        %v2598 = vadd.f32 0.0, %v2597
        %v2599 = vpop.f32.mrb[0].mxu0
        %2600 = vmatprep.mubr.f32.mxu0 0.0
        %2601 = vmatmul.mubr.f32.gmra.mrb[0].mxu0 %v1402
        %v2602 = vpop.f32.mrb[0].mxu0
        %v2603 = vpop.f32.mrb[0].mxu0
        %2604 = vmatprep.mubr.f32.mxu0 0.0
        %2605 = vmatmul.mubr.f32.gmra.mrb[0].mxu0 %v1404
        %v2606 = vpop.f32.mrb[0].mxu0
        %v2607 = vadd.f32 0.0, %v2606
        %v2608 = vpop.f32.mrb[0].mxu0
        %2609 = vmatprep.mubr.f32.mxu0 0.0
        %2610 = vmatmul.mubr.f32.gmra.mrb[0].mxu0 %v1406
        %v2611 = vpop.f32.mrb[0].mxu0
        %v2612 = vadd.f32 0.0, %v2611
        %v2613 = vpop.f32.mrb[0].mxu0
        %2614 = vmatprep.mubr.f32.mxu0 0.0
        %2615 = vmatmul.mubr.f32.gmra.mrb[0].mxu0 %v1408
        %v2616 = vpop.f32.mrb[0].mxu0
        %v2617 = vpop.f32.mrb[0].mxu0
        %2618 = vmatprep.mubr.f32.mxu0 0.0
        %2619 = vmatmul.mubr.f32.gmra.mrb[0].mxu0 %v1410
        %v2620 = vpop.f32.mrb[0].mxu0
        %v2621 = vadd.f32 0.0, %v2620
        %v2622 = vpop.f32.mrb[0].mxu0
        %2623 = vmatprep.mubr.f32.mxu0 0.0
        %2624 = vmatmul.mubr.f32.gmra.mrb[0].mxu0 %v1412
        %v2625 = vpop.f32.mrb[0].mxu0
        %v2626 = vadd.f32 0.0, %v2625
        %v2627 = vpop.f32.mrb[0].mxu0
        %2628 = vmatprep.mubr.f32.mxu0 0.0
        %2629 = vmatmul.mubr.f32.gmra.mrb[0].mxu0 %v1414
        %v2630 = vpop.f32.mrb[0].mxu0
        %v2631 = vpop.f32.mrb[0].mxu0
        %2632 = vmatprep.mubr.f32.mxu0 0.0
        %2633 = vmatmul.mubr.f32.gmra.mrb[0].mxu0 %v1416
        %v2634 = vpop.f32.mrb[0].mxu0
        %v2635 = vadd.f32 0.0, %v2634
        %v2636 = vpop.f32.mrb[0].mxu0
        %2637 = vmatprep.mubr.f32.mxu0 0.0
        %2638 = vmatmul.mubr.f32.gmra.mrb[0].mxu0 %v1418
        %v2639 = vpop.f32.mrb[0].mxu0
        %v2640 = vadd.f32 0.0, %v2639
        %v2641 = vpop.f32.mrb[0].mxu0
        %2642 = vmatprep.mubr.f32.mxu0 0.0
        %2643 = vmatmul.mubr.f32.gmra.mrb[0].mxu0 %v1420
        %v2644 = vpop.f32.mrb[0].mxu0
        %v2645 = vpop.f32.mrb[0].mxu0
        %2646 = vmatprep.mubr.f32.mxu0 0.0
        %2647 = vmatmul.mubr.f32.gmra.mrb[0].mxu0 %v1422
        %v2648 = vpop.f32.mrb[0].mxu0
        %v2649 = vadd.f32 0.0, %v2648
        %v2650 = vpop.f32.mrb[0].mxu0
        %2651 = vmatprep.mubr.f32.mxu0 0.0
        %2652 = vmatmul.mubr.f32.gmra.mrb[0].mxu0 %v1424
        %v2653 = vpop.f32.mrb[0].mxu0
        %v2654 = vadd.f32 0.0, %v2653
        %v2655 = vpop.f32.mrb[0].mxu0
        %2656 = vmatprep.mubr.f32.mxu0 0.0
        %2657 = vmatmul.mubr.f32.gmra.mrb[0].mxu0 %v1426
        %v2658 = vpop.f32.mrb[0].mxu0
        %v2659 = vpop.f32.mrb[0].mxu0
        %2660 = vmatprep.mubr.f32.mxu0 0.0
        %2661 = vmatmul.mubr.f32.gmra.mrb[0].mxu0 %v1428
        %v2662 = vpop.f32.mrb[0].mxu0
        %v2663 = vadd.f32 0.0, %v2662
        %v2664 = vpop.f32.mrb[0].mxu0
        %2665 = vmatprep.mubr.f32.mxu0 0.0
        %2666 = vmatmul.mubr.f32.gmra.mrb[0].mxu0 %v1430
        %v2667 = vpop.f32.mrb[0].mxu0
        %v2668 = vadd.f32 0.0, %v2667
        %v2669 = vpop.f32.mrb[0].mxu0
        %2670 = vmatprep.mubr.f32.mxu0 0.0
        %2671 = vmatmul.mubr.f32.gmra.mrb[0].mxu0 %v1432
        %v2672 = vpop.f32.mrb[0].mxu0
        %v2673 = vpop.f32.mrb[0].mxu0
        %2674 = vmatprep.mubr.f32.mxu0 0.0
        %2675 = vmatmul.mubr.f32.gmra.mrb[0].mxu0 %v1434
        %v2676 = vpop.f32.mrb[0].mxu0
        %v2677 = vadd.f32 0.0, %v2676
        %v2678 = vpop.f32.mrb[0].mxu0
        %2679 = vmatprep.mubr.f32.mxu0 0.0
        %2680 = vmatmul.mubr.f32.gmra.mrb[0].mxu0 %v1436
        %v2681 = vpop.f32.mrb[0].mxu0
        %v2682 = vadd.f32 0.0, %v2681
        %v2683 = vpop.f32.mrb[0].mxu0
        %2684 = vmatprep.mubr.f32.mxu0 0.0
        %2685 = vmatmul.mubr.f32.gmra.mrb[0].mxu0 %v1438
        %v2686 = vpop.f32.mrb[0].mxu0
        %v2687 = vpop.f32.mrb[0].mxu0
        %2688 = vmatprep.mubr.f32.mxu0 0.0
        %2689 = vmatmul.mubr.f32.gmra.mrb[0].mxu0 %v1440
        %v2690 = vpop.f32.mrb[0].mxu0
        %v2691 = vadd.f32 0.0, %v2690
        %v2692 = vpop.f32.mrb[0].mxu0
        %2693 = vmatprep.mubr.f32.mxu0 0.0
        %2694 = vmatmul.mubr.f32.gmra.mrb[0].mxu0 %v1442
        %v2695 = vpop.f32.mrb[0].mxu0
        %v2696 = vadd.f32 0.0, %v2695
        %v2697 = vpop.f32.mrb[0].mxu0
        %2698 = vmatprep.mubr.f32.mxu0 0.0
        %2699 = vmatmul.mubr.f32.gmra.mrb[0].mxu0 %v1444
        %v2700 = vpop.f32.mrb[0].mxu0
        %v2701 = vpop.f32.mrb[0].mxu0
        %2702 = vmatprep.mubr.f32.mxu0 0.0
        %2703 = vmatmul.mubr.f32.gmra.mrb[0].mxu0 %v1446
        %v2704 = vpop.f32.mrb[0].mxu0
        %v2705 = vadd.f32 0.0, %v2704
        %v2706 = vpop.f32.mrb[0].mxu0
        %2707 = vmatprep.mubr.f32.mxu0 0.0
        %2708 = vmatmul.mubr.f32.gmra.mrb[0].mxu0 %v1448
        %v2709 = vpop.f32.mrb[0].mxu0
        %v2710 = vadd.f32 0.0, %v2709
        %v2711 = vpop.f32.mrb[0].mxu0
        %2712 = vmatprep.mubr.f32.mxu0 0.0
        %2713 = vmatmul.mubr.f32.gmra.mrb[0].mxu0 %v1450
        %v2714 = vpop.f32.mrb[0].mxu0
        %v2715 = vpop.f32.mrb[0].mxu0
        %2716 = vmatprep.mubr.f32.mxu0 0.0
        %2717 = vmatmul.mubr.f32.gmra.mrb[0].mxu0 %v1452
        %v2718 = vpop.f32.mrb[0].mxu0
        %v2719 = vadd.f32 0.0, %v2718
        %v2720 = vpop.f32.mrb[0].mxu0
        %2721 = vmatprep.mubr.f32.mxu0 0.0
        %2722 = vmatmul.mubr.f32.gmra.mrb[0].mxu0 %v1454
        %v2723 = vpop.f32.mrb[0].mxu0
        %v2724 = vadd.f32 0.0, %v2723
        %v2725 = vpop.f32.mrb[0].mxu0
        %2726 = vmatprep.mubr.f32.mxu0 0.0
        %2727 = vmatmul.mubr.f32.gmra.mrb[0].mxu0 %v1456
        %v2728 = vpop.f32.mrb[0].mxu0
        %v2729 = vpop.f32.mrb[0].mxu0
        %2730 = vmatprep.mubr.f32.mxu0 0.0
        %2731 = vmatmul.mubr.f32.gmra.mrb[0].mxu0 %v1458
        %v2732 = vpop.f32.mrb[0].mxu0
        %v2733 = vadd.f32 0.0, %v2732
        %v2734 = vpop.f32.mrb[0].mxu0
        %2735 = vmatprep.mubr.f32.mxu0 0.0
        %2736 = vmatmul.mubr.f32.gmra.mrb[0].mxu0 %v1460
        %v2737 = vpop.f32.mrb[0].mxu0
        %v2738 = vadd.f32 0.0, %v2737
        %v2739 = vpop.f32.mrb[0].mxu0
        %2740 = vmatprep.mubr.f32.mxu0 0.0
        %2741 = vmatmul.mubr.f32.gmra.mrb[0].mxu0 %v1462
        %v2742 = vpop.f32.mrb[0].mxu0
        %v2743 = vpop.f32.mrb[0].mxu0
        %2744 = vmatprep.mubr.f32.mxu0 0.0
        %2745 = vmatmul.mubr.f32.gmra.mrb[0].mxu0 %v1464
        %v2746 = vpop.f32.mrb[0].mxu0
        %v2747 = vadd.f32 0.0, %v2746
        %v2748 = vpop.f32.mrb[0].mxu0
        %2749 = vmatprep.mubr.f32.mxu0 0.0
        %2750 = vmatmul.mubr.f32.gmra.mrb[0].mxu0 %v1466
        %v2751 = vpop.f32.mrb[0].mxu0
        %v2752 = vadd.f32 0.0, %v2751
        %v2753 = vpop.f32.mrb[0].mxu0
        %2754 = vmatprep.mubr.f32.mxu0 0.0
        %2755 = vmatmul.mubr.f32.gmra.mrb[0].mxu0 %v1468
        %v2756 = vpop.f32.mrb[0].mxu0
        %v2757 = vpop.f32.mrb[0].mxu0
        %2758 = vmatprep.mubr.f32.mxu0 0.0
        %2759 = vmatmul.mubr.f32.gmra.mrb[0].mxu0 %v2475
        %v2760 = vpop.f32.mrb[0].mxu0
        %v2761 = vadd.f32 0.0, %v2760
        %v2762 = vpop.f32.mrb[0].mxu0
        %2763 = vmatprep.mubr.f32.mxu0 0.0
        %2764 = vmatmul.mubr.f32.gmra.mrb[0].mxu0 %v2477
        %v2765 = vpop.f32.mrb[0].mxu0
        %v2766 = vadd.f32 0.0, %v2765
        %v2767 = vpop.f32.mrb[0].mxu0
        %2768 = vmatprep.mubr.f32.mxu0 0.0
        %2769 = vmatmul.mubr.f32.gmra.mrb[0].mxu0 %v2479
        %v2770 = vpop.f32.mrb[0].mxu0
        %v2771 = vpop.f32.mrb[0].mxu0
        %2772 = vdwg.mxu0
        %v2773 = vadd.f32 %v2435, %v2551
        %v2774 = vadd.f32 %v2436, %v2556
        %v2775 = vadd.f32 %v2437, %v2565
        %v2776 = vadd.f32 %v2438, %v2570
        %v2777 = vadd.f32 %v2439, %v2579
        %v2778 = vadd.f32 %v2440, %v2584
        %v2779 = vadd.f32 %v2441, %v2593
        %v2780 = vadd.f32 %v2442, %v2598
        %v2781 = vadd.f32 %v2443, %v2607
        %v2782 = vadd.f32 %v2444, %v2612
        %v2783 = vadd.f32 %v2445, %v2621
        %v2784 = vadd.f32 %v2446, %v2626
        %v2785 = vadd.f32 %v2447, %v2635
        %v2786 = vadd.f32 %v2448, %v2640
        %v2787 = vadd.f32 %v2449, %v2649
        %v2788 = vadd.f32 %v2450, %v2654
        %v2789 = vadd.f32 %v2451, %v2663
        %v2790 = vadd.f32 %v2452, %v2668
        %v2791 = vadd.f32 %v2453, %v2677
        %v2792 = vadd.f32 %v2454, %v2682
        %v2793 = vadd.f32 %v2455, %v2691
        %v2794 = vadd.f32 %v2456, %v2696
        %v2795 = vadd.f32 %v2457, %v2705
        %v2796 = vadd.f32 %v2458, %v2710
        %v2797 = vadd.f32 %v2459, %v2719
        %v2798 = vadd.f32 %v2460, %v2724
        %v2799 = vadd.f32 %v2461, %v2733
        %v2800 = vadd.f32 %v2462, %v2738
        %v2801 = vadd.f32 %v2463, %v2747
        %v2802 = vadd.f32 %v2464, %v2752
        %v2803 = vadd.f32 %v2465, %v2761
        %v2804 = vadd.f32 %v2466, %v2766
        %s2805 = scalar_lea.vmem %s1, 24
        %v2806 = vld [vmem:[%s2805] sm:$0x7]
        %v2807 = vsel %vm169, %v343, 0
        %v2810 = vsel %vm169, %v344, 0
        %v2813 = vsel %vm169, %v345, 0
        %v2816 = vsel %vm593, %v2806, 0
        %2818 = vmatprep.subr.mxu0 0.0
        %2819 = vmatpush1.msra.mxu0 %v2816
        %2820 = vmatprep.subr.mxu0 0.0
        %2821 = vmatpush1.msra.mxu0 0.0
        %2822 = vmatprep.subr.mxu0 0.0
        %2823 = vmatpush1.msra.mxu0 0.0
        %2824 = vmatprep.subr.mxu0 0.0
        %2825 = vmatpush1.msra.mxu0 0.0
        %2826 = vmatprep.subr.mxu0 0.0
        %2827 = vmatpush1.msra.mxu0 0.0
        %2828 = vmatprep.subr.mxu0 0.0
        %2829 = vmatpush1.msra.mxu0 0.0
        %2830 = vmatprep.subr.mxu0 0.0
        %2831 = vmatpush1.msra.mxu0 0.0
        %2832 = vmatprep.subr.mxu0 0.0
        %2833 = vmatpush1.msra.mxu0 0.0
        %2834 = vmatprep.subr.mxu0 0.0
        %2835 = vmatpush1.msra.mxu0 0.0
        %2836 = vmatprep.subr.mxu0 0.0
        %2837 = vmatpush1.msra.mxu0 0.0
        %2838 = vmatprep.subr.mxu0 0.0
        %2839 = vmatpush1.msra.mxu0 0.0
        %2840 = vmatprep.subr.mxu0 0.0
        %2841 = vmatpush1.msra.mxu0 0.0
        %2842 = vmatprep.subr.mxu0 0.0
        %2843 = vmatpush1.msra.mxu0 0.0
        %2844 = vmatprep.subr.mxu0 0.0
        %2845 = vmatpush1.msra.mxu0 0.0
        %2846 = vmatprep.subr.mxu0 0.0
        %2847 = vmatpush1.msra.mxu0 0.0
        %2848 = vmatprep.subr.mxu0 0.0
        %2849 = vmatpush1.msra.mxu0 0.0
        %2850 = vmatprep.subr.mxu0 0.0
        %2851 = vmatpush1.msra.mxu0 0.0
        %2852 = vmatprep.subr.mxu0 0.0
        %2853 = vmatpush1.msra.mxu0 0.0
        %2854 = vmatprep.subr.mxu0 0.0
        %2855 = vmatpush1.msra.mxu0 0.0
        %2856 = vmatprep.subr.mxu0 0.0
        %2857 = vmatpush1.msra.mxu0 0.0
        %2858 = vmatprep.subr.mxu0 0.0
        %2859 = vmatpush1.msra.mxu0 0.0
        %2860 = vmatprep.subr.mxu0 0.0
        %2861 = vmatpush1.msra.mxu0 0.0
        %2862 = vmatprep.subr.mxu0 0.0
        %2863 = vmatpush1.msra.mxu0 0.0
        %2864 = vmatprep.subr.mxu0 0.0
        %2865 = vmatpush1.msra.mxu0 0.0
        %2866 = vmatprep.subr.mxu0 0.0
        %2867 = vmatpush1.msra.mxu0 0.0
        %2868 = vmatprep.subr.mxu0 0.0
        %2869 = vmatpush1.msra.mxu0 0.0
        %2870 = vmatprep.subr.mxu0 0.0
        %2871 = vmatpush1.msra.mxu0 0.0
        %2872 = vmatprep.subr.mxu0 0.0
        %2873 = vmatpush1.msra.mxu0 0.0
        %2874 = vmatprep.subr.mxu0 0.0
        %2875 = vmatpush1.msra.mxu0 0.0
        %2876 = vmatprep.subr.mxu0 0.0
        %2877 = vmatpush1.msra.mxu0 0.0
        %2878 = vmatprep.subr.mxu0 0.0
        %2879 = vmatpush1.msra.mxu0 0.0
        %2880 = vmatprep.subr.mxu0 0.0
        %2881 = vmatpush1.msra.mxu0 0.0
        %2882 = vmatprep.mubr.f32.mxu0 0.0
        %2883 = vmatmul.mubr.f32.gmra.mrb[0].mxu0 %v898
        %v2884 = vpop.f32.mrb[0].mxu0
        %v2885 = vadd.f32 0.0, %v2884
        %v2886 = vpop.f32.mrb[0].mxu0
        %2887 = vmatprep.mubr.f32.mxu0 0.0
        %2888 = vmatmul.mubr.f32.gmra.mrb[0].mxu0 %v900
        %v2889 = vpop.f32.mrb[0].mxu0
        %v2890 = vadd.f32 0.0, %v2889
        %v2891 = vpop.f32.mrb[0].mxu0
        %2892 = vmatprep.mubr.f32.mxu0 0.0
        %2893 = vmatmul.mubr.f32.gmra.mrb[0].mxu0 %v902
        %v2894 = vpop.f32.mrb[0].mxu0
        %v2895 = vpop.f32.mrb[0].mxu0
        %2896 = vmatprep.mubr.f32.mxu0 0.0
        %2897 = vmatmul.mubr.f32.gmra.mrb[0].mxu0 %v904
        %v2898 = vpop.f32.mrb[0].mxu0
        %v2899 = vadd.f32 0.0, %v2898
        %v2900 = vpop.f32.mrb[0].mxu0
        %2901 = vmatprep.mubr.f32.mxu0 0.0
        %2902 = vmatmul.mubr.f32.gmra.mrb[0].mxu0 %v906
        %v2903 = vpop.f32.mrb[0].mxu0
        %v2904 = vadd.f32 0.0, %v2903
        %v2905 = vpop.f32.mrb[0].mxu0
        %2906 = vmatprep.mubr.f32.mxu0 0.0
        %2907 = vmatmul.mubr.f32.gmra.mrb[0].mxu0 %v908
        %v2908 = vpop.f32.mrb[0].mxu0
        %v2909 = vpop.f32.mrb[0].mxu0
        %2910 = vmatprep.mubr.f32.mxu0 0.0
        %2911 = vmatmul.mubr.f32.gmra.mrb[0].mxu0 %v910
        %v2912 = vpop.f32.mrb[0].mxu0
        %v2913 = vadd.f32 0.0, %v2912
        %v2914 = vpop.f32.mrb[0].mxu0
        %2915 = vmatprep.mubr.f32.mxu0 0.0
        %2916 = vmatmul.mubr.f32.gmra.mrb[0].mxu0 %v912
        %v2917 = vpop.f32.mrb[0].mxu0
        %v2918 = vadd.f32 0.0, %v2917
        %v2919 = vpop.f32.mrb[0].mxu0
        %2920 = vmatprep.mubr.f32.mxu0 0.0
        %2921 = vmatmul.mubr.f32.gmra.mrb[0].mxu0 %v914
        %v2922 = vpop.f32.mrb[0].mxu0
        %v2923 = vpop.f32.mrb[0].mxu0
        %2924 = vmatprep.mubr.f32.mxu0 0.0
        %2925 = vmatmul.mubr.f32.gmra.mrb[0].mxu0 %v916
        %v2926 = vpop.f32.mrb[0].mxu0
        %v2927 = vadd.f32 0.0, %v2926
        %v2928 = vpop.f32.mrb[0].mxu0
        %2929 = vmatprep.mubr.f32.mxu0 0.0
        %2930 = vmatmul.mubr.f32.gmra.mrb[0].mxu0 %v918
        %v2931 = vpop.f32.mrb[0].mxu0
        %v2932 = vadd.f32 0.0, %v2931
        %v2933 = vpop.f32.mrb[0].mxu0
        %2934 = vmatprep.mubr.f32.mxu0 0.0
        %2935 = vmatmul.mubr.f32.gmra.mrb[0].mxu0 %v920
        %v2936 = vpop.f32.mrb[0].mxu0
        %v2937 = vpop.f32.mrb[0].mxu0
        %2938 = vmatprep.mubr.f32.mxu0 0.0
        %2939 = vmatmul.mubr.f32.gmra.mrb[0].mxu0 %v922
        %v2940 = vpop.f32.mrb[0].mxu0
        %v2941 = vadd.f32 0.0, %v2940
        %v2942 = vpop.f32.mrb[0].mxu0
        %2943 = vmatprep.mubr.f32.mxu0 0.0
        %2944 = vmatmul.mubr.f32.gmra.mrb[0].mxu0 %v924
        %v2945 = vpop.f32.mrb[0].mxu0
        %v2946 = vadd.f32 0.0, %v2945
        %v2947 = vpop.f32.mrb[0].mxu0
        %2948 = vmatprep.mubr.f32.mxu0 0.0
        %2949 = vmatmul.mubr.f32.gmra.mrb[0].mxu0 %v926
        %v2950 = vpop.f32.mrb[0].mxu0
        %v2951 = vpop.f32.mrb[0].mxu0
        %2952 = vmatprep.mubr.f32.mxu0 0.0
        %2953 = vmatmul.mubr.f32.gmra.mrb[0].mxu0 %v928
        %v2954 = vpop.f32.mrb[0].mxu0
        %v2955 = vadd.f32 0.0, %v2954
        %v2956 = vpop.f32.mrb[0].mxu0
        %2957 = vmatprep.mubr.f32.mxu0 0.0
        %2958 = vmatmul.mubr.f32.gmra.mrb[0].mxu0 %v930
        %v2959 = vpop.f32.mrb[0].mxu0
        %v2960 = vadd.f32 0.0, %v2959
        %v2961 = vpop.f32.mrb[0].mxu0
        %2962 = vmatprep.mubr.f32.mxu0 0.0
        %2963 = vmatmul.mubr.f32.gmra.mrb[0].mxu0 %v932
        %v2964 = vpop.f32.mrb[0].mxu0
        %v2965 = vpop.f32.mrb[0].mxu0
        %2966 = vmatprep.mubr.f32.mxu0 0.0
        %2967 = vmatmul.mubr.f32.gmra.mrb[0].mxu0 %v934
        %v2968 = vpop.f32.mrb[0].mxu0
        %v2969 = vadd.f32 0.0, %v2968
        %v2970 = vpop.f32.mrb[0].mxu0
        %2971 = vmatprep.mubr.f32.mxu0 0.0
        %2972 = vmatmul.mubr.f32.gmra.mrb[0].mxu0 %v936
        %v2973 = vpop.f32.mrb[0].mxu0
        %v2974 = vadd.f32 0.0, %v2973
        %v2975 = vpop.f32.mrb[0].mxu0
        %2976 = vmatprep.mubr.f32.mxu0 0.0
        %2977 = vmatmul.mubr.f32.gmra.mrb[0].mxu0 %v938
        %v2978 = vpop.f32.mrb[0].mxu0
        %v2979 = vpop.f32.mrb[0].mxu0
        %2980 = vmatprep.mubr.f32.mxu0 0.0
        %2981 = vmatmul.mubr.f32.gmra.mrb[0].mxu0 %v940
        %v2982 = vpop.f32.mrb[0].mxu0
        %v2983 = vadd.f32 0.0, %v2982
        %v2984 = vpop.f32.mrb[0].mxu0
        %2985 = vmatprep.mubr.f32.mxu0 0.0
        %2986 = vmatmul.mubr.f32.gmra.mrb[0].mxu0 %v942
        %v2987 = vpop.f32.mrb[0].mxu0
        %v2988 = vadd.f32 0.0, %v2987
        %v2989 = vpop.f32.mrb[0].mxu0
        %2990 = vmatprep.mubr.f32.mxu0 0.0
        %2991 = vmatmul.mubr.f32.gmra.mrb[0].mxu0 %v944
        %v2992 = vpop.f32.mrb[0].mxu0
        %v2993 = vpop.f32.mrb[0].mxu0
        %2994 = vmatprep.mubr.f32.mxu0 0.0
        %2995 = vmatmul.mubr.f32.gmra.mrb[0].mxu0 %v946
        %v2996 = vpop.f32.mrb[0].mxu0
        %v2997 = vadd.f32 0.0, %v2996
        %v2998 = vpop.f32.mrb[0].mxu0
        %2999 = vmatprep.mubr.f32.mxu0 0.0
        %3000 = vmatmul.mubr.f32.gmra.mrb[0].mxu0 %v948
        %v3001 = vpop.f32.mrb[0].mxu0
        %v3002 = vadd.f32 0.0, %v3001
        %v3003 = vpop.f32.mrb[0].mxu0
        %3004 = vmatprep.mubr.f32.mxu0 0.0
        %3005 = vmatmul.mubr.f32.gmra.mrb[0].mxu0 %v950
        %v3006 = vpop.f32.mrb[0].mxu0
        %v3007 = vpop.f32.mrb[0].mxu0
        %3008 = vmatprep.mubr.f32.mxu0 0.0
        %3009 = vmatmul.mubr.f32.gmra.mrb[0].mxu0 %v952
        %v3010 = vpop.f32.mrb[0].mxu0
        %v3011 = vadd.f32 0.0, %v3010
        %v3012 = vpop.f32.mrb[0].mxu0
        %3013 = vmatprep.mubr.f32.mxu0 0.0
        %3014 = vmatmul.mubr.f32.gmra.mrb[0].mxu0 %v954
        %v3015 = vpop.f32.mrb[0].mxu0
        %v3016 = vadd.f32 0.0, %v3015
        %v3017 = vpop.f32.mrb[0].mxu0
        %3018 = vmatprep.mubr.f32.mxu0 0.0
        %3019 = vmatmul.mubr.f32.gmra.mrb[0].mxu0 %v956
        %v3020 = vpop.f32.mrb[0].mxu0
        %v3021 = vpop.f32.mrb[0].mxu0
        %3022 = vmatprep.mubr.f32.mxu0 0.0
        %3023 = vmatmul.mubr.f32.gmra.mrb[0].mxu0 %v958
        %v3024 = vpop.f32.mrb[0].mxu0
        %v3025 = vadd.f32 0.0, %v3024
        %v3026 = vpop.f32.mrb[0].mxu0
        %3027 = vmatprep.mubr.f32.mxu0 0.0
        %3028 = vmatmul.mubr.f32.gmra.mrb[0].mxu0 %v960
        %v3029 = vpop.f32.mrb[0].mxu0
        %v3030 = vadd.f32 0.0, %v3029
        %v3031 = vpop.f32.mrb[0].mxu0
        %3032 = vmatprep.mubr.f32.mxu0 0.0
        %3033 = vmatmul.mubr.f32.gmra.mrb[0].mxu0 %v962
        %v3034 = vpop.f32.mrb[0].mxu0
        %v3035 = vpop.f32.mrb[0].mxu0
        %3036 = vmatprep.mubr.f32.mxu0 0.0
        %3037 = vmatmul.mubr.f32.gmra.mrb[0].mxu0 %v964
        %v3038 = vpop.f32.mrb[0].mxu0
        %v3039 = vadd.f32 0.0, %v3038
        %v3040 = vpop.f32.mrb[0].mxu0
        %3041 = vmatprep.mubr.f32.mxu0 0.0
        %3042 = vmatmul.mubr.f32.gmra.mrb[0].mxu0 %v966
        %v3043 = vpop.f32.mrb[0].mxu0
        %v3044 = vadd.f32 0.0, %v3043
        %v3045 = vpop.f32.mrb[0].mxu0
        %3046 = vmatprep.mubr.f32.mxu0 0.0
        %3047 = vmatmul.mubr.f32.gmra.mrb[0].mxu0 %v968
        %v3048 = vpop.f32.mrb[0].mxu0
        %v3049 = vpop.f32.mrb[0].mxu0
        %3050 = vmatprep.mubr.f32.mxu0 0.0
        %3051 = vmatmul.mubr.f32.gmra.mrb[0].mxu0 %v970
        %v3052 = vpop.f32.mrb[0].mxu0
        %v3053 = vadd.f32 0.0, %v3052
        %v3054 = vpop.f32.mrb[0].mxu0
        %3055 = vmatprep.mubr.f32.mxu0 0.0
        %3056 = vmatmul.mubr.f32.gmra.mrb[0].mxu0 %v972
        %v3057 = vpop.f32.mrb[0].mxu0
        %v3058 = vadd.f32 0.0, %v3057
        %v3059 = vpop.f32.mrb[0].mxu0
        %3060 = vmatprep.mubr.f32.mxu0 0.0
        %3061 = vmatmul.mubr.f32.gmra.mrb[0].mxu0 %v974
        %v3062 = vpop.f32.mrb[0].mxu0
        %v3063 = vpop.f32.mrb[0].mxu0
        %3064 = vmatprep.mubr.f32.mxu0 0.0
        %3065 = vmatmul.mubr.f32.gmra.mrb[0].mxu0 %v976
        %v3066 = vpop.f32.mrb[0].mxu0
        %v3067 = vadd.f32 0.0, %v3066
        %v3068 = vpop.f32.mrb[0].mxu0
        %3069 = vmatprep.mubr.f32.mxu0 0.0
        %3070 = vmatmul.mubr.f32.gmra.mrb[0].mxu0 %v978
        %v3071 = vpop.f32.mrb[0].mxu0
        %v3072 = vadd.f32 0.0, %v3071
        %v3073 = vpop.f32.mrb[0].mxu0
        %3074 = vmatprep.mubr.f32.mxu0 0.0
        %3075 = vmatmul.mubr.f32.gmra.mrb[0].mxu0 %v980
        %v3076 = vpop.f32.mrb[0].mxu0
        %v3077 = vpop.f32.mrb[0].mxu0
        %3078 = vmatprep.mubr.f32.mxu0 0.0
        %3079 = vmatmul.mubr.f32.gmra.mrb[0].mxu0 %v1796
        %v3080 = vpop.f32.mrb[0].mxu0
        %v3081 = vadd.f32 0.0, %v3080
        %v3082 = vpop.f32.mrb[0].mxu0
        %3083 = vmatprep.mubr.f32.mxu0 0.0
        %3084 = vmatmul.mubr.f32.gmra.mrb[0].mxu0 %v1799
        %v3085 = vpop.f32.mrb[0].mxu0
        %v3086 = vadd.f32 0.0, %v3085
        %v3087 = vpop.f32.mrb[0].mxu0
        %3088 = vmatprep.mubr.f32.mxu0 0.0
        %3089 = vmatmul.mubr.f32.gmra.mrb[0].mxu0 %v1802
        %v3090 = vpop.f32.mrb[0].mxu0
        %v3091 = vpop.f32.mrb[0].mxu0
        %3092 = vmatprep.mubr.f32.mxu0 0.0
        %3093 = vmatmul.mubr.f32.gmra.mrb[0].mxu0 %v2807
        %v3094 = vpop.f32.mrb[0].mxu0
        %v3095 = vadd.f32 0.0, %v3094
        %v3096 = vpop.f32.mrb[0].mxu0
        %3097 = vmatprep.mubr.f32.mxu0 0.0
        %3098 = vmatmul.mubr.f32.gmra.mrb[0].mxu0 %v2810
        %v3099 = vpop.f32.mrb[0].mxu0
        %v3100 = vadd.f32 0.0, %v3099
        %v3101 = vpop.f32.mrb[0].mxu0
        %3102 = vmatprep.mubr.f32.mxu0 0.0
        %3103 = vmatmul.mubr.f32.gmra.mrb[0].mxu0 %v2813
        %v3104 = vpop.f32.mrb[0].mxu0
        %v3105 = vpop.f32.mrb[0].mxu0
        %3106 = vdwg.mxu0
        %v3107 = vadd.f32 %v2773, %v2885
        %v3108 = vadd.f32 %v2774, %v2890
        %v3109 = vadd.f32 %v2775, %v2899
        %v3110 = vadd.f32 %v2776, %v2904
        %v3111 = vadd.f32 %v2777, %v2913
        %v3112 = vadd.f32 %v2778, %v2918
        %v3113 = vadd.f32 %v2779, %v2927
        %v3114 = vadd.f32 %v2780, %v2932
        %v3115 = vadd.f32 %v2781, %v2941
        %v3116 = vadd.f32 %v2782, %v2946
        %v3117 = vadd.f32 %v2783, %v2955
        %v3118 = vadd.f32 %v2784, %v2960
        %v3119 = vadd.f32 %v2785, %v2969
        %v3120 = vadd.f32 %v2786, %v2974
        %v3121 = vadd.f32 %v2787, %v2983
        %v3122 = vadd.f32 %v2788, %v2988
        %v3123 = vadd.f32 %v2789, %v2997
        %v3124 = vadd.f32 %v2790, %v3002
        %v3125 = vadd.f32 %v2791, %v3011
        %v3126 = vadd.f32 %v2792, %v3016
        %v3127 = vadd.f32 %v2793, %v3025
        %v3128 = vadd.f32 %v2794, %v3030
        %v3129 = vadd.f32 %v2795, %v3039
        %v3130 = vadd.f32 %v2796, %v3044
        %v3131 = vadd.f32 %v2797, %v3053
        %v3132 = vadd.f32 %v2798, %v3058
        %v3133 = vadd.f32 %v2799, %v3067
        %v3134 = vadd.f32 %v2800, %v3072
        %v3135 = vadd.f32 %v2801, %v3081
        %v3136 = vadd.f32 %v2802, %v3086
        %v3137 = vadd.f32 %v2803, %v3095
        %v3138 = vadd.f32 %v2804, %v3100
        %s3139 = scalar_lea.vmem %s1, 28
        %v3140 = vld [vmem:[%s3139] sm:$0x7]
        %v3142 = vrot.slane %v344, 1
        %v3143 = vsel %vm399, %v2135, %v3142
        %v3144 = vrot.slane %v345, 1
        %v3145 = vsel %vm399, %v3142, %v3144
        %v3146 = vrot.slane %v346, 1
        %v3147 = vsel %vm399, %v3144, %v3146
        %v3148 = vsel %vm169, %v3143, 0
        %v3150 = vsel %vm169, %v3145, 0
        %v3152 = vsel %vm169, %v3147, 0
        %v3155 = vsel %vm593, %v3140, 0
        %3157 = vmatprep.subr.mxu0 0.0
        %3158 = vmatpush1.msra.mxu0 %v3155
        %3159 = vmatprep.subr.mxu0 0.0
        %3160 = vmatpush1.msra.mxu0 0.0
        %3161 = vmatprep.subr.mxu0 0.0
        %3162 = vmatpush1.msra.mxu0 0.0
        %3163 = vmatprep.subr.mxu0 0.0
        %3164 = vmatpush1.msra.mxu0 0.0
        %3165 = vmatprep.subr.mxu0 0.0
        %3166 = vmatpush1.msra.mxu0 0.0
        %3167 = vmatprep.subr.mxu0 0.0
        %3168 = vmatpush1.msra.mxu0 0.0
        %3169 = vmatprep.subr.mxu0 0.0
        %3170 = vmatpush1.msra.mxu0 0.0
        %3171 = vmatprep.subr.mxu0 0.0
        %3172 = vmatpush1.msra.mxu0 0.0
        %3173 = vmatprep.subr.mxu0 0.0
        %3174 = vmatpush1.msra.mxu0 0.0
        %3175 = vmatprep.subr.mxu0 0.0
        %3176 = vmatpush1.msra.mxu0 0.0
        %3177 = vmatprep.subr.mxu0 0.0
        %3178 = vmatpush1.msra.mxu0 0.0
        %3179 = vmatprep.subr.mxu0 0.0
        %3180 = vmatpush1.msra.mxu0 0.0
        %3181 = vmatprep.subr.mxu0 0.0
        %3182 = vmatpush1.msra.mxu0 0.0
        %3183 = vmatprep.subr.mxu0 0.0
        %3184 = vmatpush1.msra.mxu0 0.0
        %3185 = vmatprep.subr.mxu0 0.0
        %3186 = vmatpush1.msra.mxu0 0.0
        %3187 = vmatprep.subr.mxu0 0.0
        %3188 = vmatpush1.msra.mxu0 0.0
        %3189 = vmatprep.subr.mxu0 0.0
        %3190 = vmatpush1.msra.mxu0 0.0
        %3191 = vmatprep.subr.mxu0 0.0
        %3192 = vmatpush1.msra.mxu0 0.0
        %3193 = vmatprep.subr.mxu0 0.0
        %3194 = vmatpush1.msra.mxu0 0.0
        %3195 = vmatprep.subr.mxu0 0.0
        %3196 = vmatpush1.msra.mxu0 0.0
        %3197 = vmatprep.subr.mxu0 0.0
        %3198 = vmatpush1.msra.mxu0 0.0
        %3199 = vmatprep.subr.mxu0 0.0
        %3200 = vmatpush1.msra.mxu0 0.0
        %3201 = vmatprep.subr.mxu0 0.0
        %3202 = vmatpush1.msra.mxu0 0.0
        %3203 = vmatprep.subr.mxu0 0.0
        %3204 = vmatpush1.msra.mxu0 0.0
        %3205 = vmatprep.subr.mxu0 0.0
        %3206 = vmatpush1.msra.mxu0 0.0
        %3207 = vmatprep.subr.mxu0 0.0
        %3208 = vmatpush1.msra.mxu0 0.0
        %3209 = vmatprep.subr.mxu0 0.0
        %3210 = vmatpush1.msra.mxu0 0.0
        %3211 = vmatprep.subr.mxu0 0.0
        %3212 = vmatpush1.msra.mxu0 0.0
        %3213 = vmatprep.subr.mxu0 0.0
        %3214 = vmatpush1.msra.mxu0 0.0
        %3215 = vmatprep.subr.mxu0 0.0
        %3216 = vmatpush1.msra.mxu0 0.0
        %3217 = vmatprep.subr.mxu0 0.0
        %3218 = vmatpush1.msra.mxu0 0.0
        %3219 = vmatprep.subr.mxu0 0.0
        %3220 = vmatpush1.msra.mxu0 0.0
        %3221 = vmatprep.mubr.f32.mxu0 0.0
        %3222 = vmatmul.mubr.f32.gmra.mrb[0].mxu0 %v509
        %v3223 = vpop.f32.mrb[0].mxu0
        %v3224 = vadd.f32 0.0, %v3223
        %v3225 = vpop.f32.mrb[0].mxu0
        %3226 = vmatprep.mubr.f32.mxu0 0.0
        %3227 = vmatmul.mubr.f32.gmra.mrb[0].mxu0 %v511
        %v3228 = vpop.f32.mrb[0].mxu0
        %v3229 = vadd.f32 0.0, %v3228
        %v3230 = vpop.f32.mrb[0].mxu0
        %3231 = vmatprep.mubr.f32.mxu0 0.0
        %3232 = vmatmul.mubr.f32.gmra.mrb[0].mxu0 %v513
        %v3233 = vpop.f32.mrb[0].mxu0
        %v3234 = vpop.f32.mrb[0].mxu0
        %3235 = vmatprep.mubr.f32.mxu0 0.0
        %3236 = vmatmul.mubr.f32.gmra.mrb[0].mxu0 %v515
        %v3237 = vpop.f32.mrb[0].mxu0
        %v3238 = vadd.f32 0.0, %v3237
        %v3239 = vpop.f32.mrb[0].mxu0
        %3240 = vmatprep.mubr.f32.mxu0 0.0
        %3241 = vmatmul.mubr.f32.gmra.mrb[0].mxu0 %v517
        %v3242 = vpop.f32.mrb[0].mxu0
        %v3243 = vadd.f32 0.0, %v3242
        %v3244 = vpop.f32.mrb[0].mxu0
        %3245 = vmatprep.mubr.f32.mxu0 0.0
        %3246 = vmatmul.mubr.f32.gmra.mrb[0].mxu0 %v519
        %v3247 = vpop.f32.mrb[0].mxu0
        %v3248 = vpop.f32.mrb[0].mxu0
        %3249 = vmatprep.mubr.f32.mxu0 0.0
        %3250 = vmatmul.mubr.f32.gmra.mrb[0].mxu0 %v521
        %v3251 = vpop.f32.mrb[0].mxu0
        %v3252 = vadd.f32 0.0, %v3251
        %v3253 = vpop.f32.mrb[0].mxu0
        %3254 = vmatprep.mubr.f32.mxu0 0.0
        %3255 = vmatmul.mubr.f32.gmra.mrb[0].mxu0 %v523
        %v3256 = vpop.f32.mrb[0].mxu0
        %v3257 = vadd.f32 0.0, %v3256
        %v3258 = vpop.f32.mrb[0].mxu0
        %3259 = vmatprep.mubr.f32.mxu0 0.0
        %3260 = vmatmul.mubr.f32.gmra.mrb[0].mxu0 %v525
        %v3261 = vpop.f32.mrb[0].mxu0
        %v3262 = vpop.f32.mrb[0].mxu0
        %3263 = vmatprep.mubr.f32.mxu0 0.0
        %3264 = vmatmul.mubr.f32.gmra.mrb[0].mxu0 %v527
        %v3265 = vpop.f32.mrb[0].mxu0
        %v3266 = vadd.f32 0.0, %v3265
        %v3267 = vpop.f32.mrb[0].mxu0
        %3268 = vmatprep.mubr.f32.mxu0 0.0
        %3269 = vmatmul.mubr.f32.gmra.mrb[0].mxu0 %v529
        %v3270 = vpop.f32.mrb[0].mxu0
        %v3271 = vadd.f32 0.0, %v3270
        %v3272 = vpop.f32.mrb[0].mxu0
        %3273 = vmatprep.mubr.f32.mxu0 0.0
        %3274 = vmatmul.mubr.f32.gmra.mrb[0].mxu0 %v531
        %v3275 = vpop.f32.mrb[0].mxu0
        %v3276 = vpop.f32.mrb[0].mxu0
        %3277 = vmatprep.mubr.f32.mxu0 0.0
        %3278 = vmatmul.mubr.f32.gmra.mrb[0].mxu0 %v533
        %v3279 = vpop.f32.mrb[0].mxu0
        %v3280 = vadd.f32 0.0, %v3279
        %v3281 = vpop.f32.mrb[0].mxu0
        %3282 = vmatprep.mubr.f32.mxu0 0.0
        %3283 = vmatmul.mubr.f32.gmra.mrb[0].mxu0 %v535
        %v3284 = vpop.f32.mrb[0].mxu0
        %v3285 = vadd.f32 0.0, %v3284
        %v3286 = vpop.f32.mrb[0].mxu0
        %3287 = vmatprep.mubr.f32.mxu0 0.0
        %3288 = vmatmul.mubr.f32.gmra.mrb[0].mxu0 %v537
        %v3289 = vpop.f32.mrb[0].mxu0
        %v3290 = vpop.f32.mrb[0].mxu0
        %3291 = vmatprep.mubr.f32.mxu0 0.0
        %3292 = vmatmul.mubr.f32.gmra.mrb[0].mxu0 %v539
        %v3293 = vpop.f32.mrb[0].mxu0
        %v3294 = vadd.f32 0.0, %v3293
        %v3295 = vpop.f32.mrb[0].mxu0
        %3296 = vmatprep.mubr.f32.mxu0 0.0
        %3297 = vmatmul.mubr.f32.gmra.mrb[0].mxu0 %v541
        %v3298 = vpop.f32.mrb[0].mxu0
        %v3299 = vadd.f32 0.0, %v3298
        %v3300 = vpop.f32.mrb[0].mxu0
        %3301 = vmatprep.mubr.f32.mxu0 0.0
        %3302 = vmatmul.mubr.f32.gmra.mrb[0].mxu0 %v543
        %v3303 = vpop.f32.mrb[0].mxu0
        %v3304 = vpop.f32.mrb[0].mxu0
        %3305 = vmatprep.mubr.f32.mxu0 0.0
        %3306 = vmatmul.mubr.f32.gmra.mrb[0].mxu0 %v545
        %v3307 = vpop.f32.mrb[0].mxu0
        %v3308 = vadd.f32 0.0, %v3307
        %v3309 = vpop.f32.mrb[0].mxu0
        %3310 = vmatprep.mubr.f32.mxu0 0.0
        %3311 = vmatmul.mubr.f32.gmra.mrb[0].mxu0 %v547
        %v3312 = vpop.f32.mrb[0].mxu0
        %v3313 = vadd.f32 0.0, %v3312
        %v3314 = vpop.f32.mrb[0].mxu0
        %3315 = vmatprep.mubr.f32.mxu0 0.0
        %3316 = vmatmul.mubr.f32.gmra.mrb[0].mxu0 %v549
        %v3317 = vpop.f32.mrb[0].mxu0
        %v3318 = vpop.f32.mrb[0].mxu0
        %3319 = vmatprep.mubr.f32.mxu0 0.0
        %3320 = vmatmul.mubr.f32.gmra.mrb[0].mxu0 %v551
        %v3321 = vpop.f32.mrb[0].mxu0
        %v3322 = vadd.f32 0.0, %v3321
        %v3323 = vpop.f32.mrb[0].mxu0
        %3324 = vmatprep.mubr.f32.mxu0 0.0
        %3325 = vmatmul.mubr.f32.gmra.mrb[0].mxu0 %v553
        %v3326 = vpop.f32.mrb[0].mxu0
        %v3327 = vadd.f32 0.0, %v3326
        %v3328 = vpop.f32.mrb[0].mxu0
        %3329 = vmatprep.mubr.f32.mxu0 0.0
        %3330 = vmatmul.mubr.f32.gmra.mrb[0].mxu0 %v555
        %v3331 = vpop.f32.mrb[0].mxu0
        %v3332 = vpop.f32.mrb[0].mxu0
        %3333 = vmatprep.mubr.f32.mxu0 0.0
        %3334 = vmatmul.mubr.f32.gmra.mrb[0].mxu0 %v557
        %v3335 = vpop.f32.mrb[0].mxu0
        %v3336 = vadd.f32 0.0, %v3335
        %v3337 = vpop.f32.mrb[0].mxu0
        %3338 = vmatprep.mubr.f32.mxu0 0.0
        %3339 = vmatmul.mubr.f32.gmra.mrb[0].mxu0 %v559
        %v3340 = vpop.f32.mrb[0].mxu0
        %v3341 = vadd.f32 0.0, %v3340
        %v3342 = vpop.f32.mrb[0].mxu0
        %3343 = vmatprep.mubr.f32.mxu0 0.0
        %3344 = vmatmul.mubr.f32.gmra.mrb[0].mxu0 %v561
        %v3345 = vpop.f32.mrb[0].mxu0
        %v3346 = vpop.f32.mrb[0].mxu0
        %3347 = vmatprep.mubr.f32.mxu0 0.0
        %3348 = vmatmul.mubr.f32.gmra.mrb[0].mxu0 %v563
        %v3349 = vpop.f32.mrb[0].mxu0
        %v3350 = vadd.f32 0.0, %v3349
        %v3351 = vpop.f32.mrb[0].mxu0
        %3352 = vmatprep.mubr.f32.mxu0 0.0
        %3353 = vmatmul.mubr.f32.gmra.mrb[0].mxu0 %v565
        %v3354 = vpop.f32.mrb[0].mxu0
        %v3355 = vadd.f32 0.0, %v3354
        %v3356 = vpop.f32.mrb[0].mxu0
        %3357 = vmatprep.mubr.f32.mxu0 0.0
        %3358 = vmatmul.mubr.f32.gmra.mrb[0].mxu0 %v567
        %v3359 = vpop.f32.mrb[0].mxu0
        %v3360 = vpop.f32.mrb[0].mxu0
        %3361 = vmatprep.mubr.f32.mxu0 0.0
        %3362 = vmatmul.mubr.f32.gmra.mrb[0].mxu0 %v569
        %v3363 = vpop.f32.mrb[0].mxu0
        %v3364 = vadd.f32 0.0, %v3363
        %v3365 = vpop.f32.mrb[0].mxu0
        %3366 = vmatprep.mubr.f32.mxu0 0.0
        %3367 = vmatmul.mubr.f32.gmra.mrb[0].mxu0 %v571
        %v3368 = vpop.f32.mrb[0].mxu0
        %v3369 = vadd.f32 0.0, %v3368
        %v3370 = vpop.f32.mrb[0].mxu0
        %3371 = vmatprep.mubr.f32.mxu0 0.0
        %3372 = vmatmul.mubr.f32.gmra.mrb[0].mxu0 %v573
        %v3373 = vpop.f32.mrb[0].mxu0
        %v3374 = vpop.f32.mrb[0].mxu0
        %3375 = vmatprep.mubr.f32.mxu0 0.0
        %3376 = vmatmul.mubr.f32.gmra.mrb[0].mxu0 %v575
        %v3377 = vpop.f32.mrb[0].mxu0
        %v3378 = vadd.f32 0.0, %v3377
        %v3379 = vpop.f32.mrb[0].mxu0
        %3380 = vmatprep.mubr.f32.mxu0 0.0
        %3381 = vmatmul.mubr.f32.gmra.mrb[0].mxu0 %v577
        %v3382 = vpop.f32.mrb[0].mxu0
        %v3383 = vadd.f32 0.0, %v3382
        %v3384 = vpop.f32.mrb[0].mxu0
        %3385 = vmatprep.mubr.f32.mxu0 0.0
        %3386 = vmatmul.mubr.f32.gmra.mrb[0].mxu0 %v579
        %v3387 = vpop.f32.mrb[0].mxu0
        %v3388 = vpop.f32.mrb[0].mxu0
        %3389 = vmatprep.mubr.f32.mxu0 0.0
        %3390 = vmatmul.mubr.f32.gmra.mrb[0].mxu0 %v581
        %v3391 = vpop.f32.mrb[0].mxu0
        %v3392 = vadd.f32 0.0, %v3391
        %v3393 = vpop.f32.mrb[0].mxu0
        %3394 = vmatprep.mubr.f32.mxu0 0.0
        %3395 = vmatmul.mubr.f32.gmra.mrb[0].mxu0 %v583
        %v3396 = vpop.f32.mrb[0].mxu0
        %v3397 = vadd.f32 0.0, %v3396
        %v3398 = vpop.f32.mrb[0].mxu0
        %3399 = vmatprep.mubr.f32.mxu0 0.0
        %3400 = vmatmul.mubr.f32.gmra.mrb[0].mxu0 %v585
        %v3401 = vpop.f32.mrb[0].mxu0
        %v3402 = vpop.f32.mrb[0].mxu0
        %3403 = vmatprep.mubr.f32.mxu0 0.0
        %3404 = vmatmul.mubr.f32.gmra.mrb[0].mxu0 %v587
        %v3405 = vpop.f32.mrb[0].mxu0
        %v3406 = vadd.f32 0.0, %v3405
        %v3407 = vpop.f32.mrb[0].mxu0
        %3408 = vmatprep.mubr.f32.mxu0 0.0
        %3409 = vmatmul.mubr.f32.gmra.mrb[0].mxu0 %v589
        %v3410 = vpop.f32.mrb[0].mxu0
        %v3411 = vadd.f32 0.0, %v3410
        %v3412 = vpop.f32.mrb[0].mxu0
        %3413 = vmatprep.mubr.f32.mxu0 0.0
        %3414 = vmatmul.mubr.f32.gmra.mrb[0].mxu0 %v591
        %v3415 = vpop.f32.mrb[0].mxu0
        %v3416 = vpop.f32.mrb[0].mxu0
        %3417 = vmatprep.mubr.f32.mxu0 0.0
        %3418 = vmatmul.mubr.f32.gmra.mrb[0].mxu0 %v2137
        %v3419 = vpop.f32.mrb[0].mxu0
        %v3420 = vadd.f32 0.0, %v3419
        %v3421 = vpop.f32.mrb[0].mxu0
        %3422 = vmatprep.mubr.f32.mxu0 0.0
        %3423 = vmatmul.mubr.f32.gmra.mrb[0].mxu0 %v2139
        %v3424 = vpop.f32.mrb[0].mxu0
        %v3425 = vadd.f32 0.0, %v3424
        %v3426 = vpop.f32.mrb[0].mxu0
        %3427 = vmatprep.mubr.f32.mxu0 0.0
        %3428 = vmatmul.mubr.f32.gmra.mrb[0].mxu0 %v2141
        %v3429 = vpop.f32.mrb[0].mxu0
        %v3430 = vpop.f32.mrb[0].mxu0
        %3431 = vmatprep.mubr.f32.mxu0 0.0
        %3432 = vmatmul.mubr.f32.gmra.mrb[0].mxu0 %v3148
        %v3433 = vpop.f32.mrb[0].mxu0
        %v3434 = vadd.f32 0.0, %v3433
        %v3435 = vpop.f32.mrb[0].mxu0
        %3436 = vmatprep.mubr.f32.mxu0 0.0
        %3437 = vmatmul.mubr.f32.gmra.mrb[0].mxu0 %v3150
        %v3438 = vpop.f32.mrb[0].mxu0
        %v3439 = vadd.f32 0.0, %v3438
        %v3440 = vpop.f32.mrb[0].mxu0
        %3441 = vmatprep.mubr.f32.mxu0 0.0
        %3442 = vmatmul.mubr.f32.gmra.mrb[0].mxu0 %v3152
        %v3443 = vpop.f32.mrb[0].mxu0
        %v3444 = vpop.f32.mrb[0].mxu0
        %3445 = vdwg.mxu0
        %v3446 = vadd.f32 %v3107, %v3224
        %v3447 = vadd.f32 %v3108, %v3229
        %v3448 = vadd.f32 %v3109, %v3238
        %v3449 = vadd.f32 %v3110, %v3243
        %v3450 = vadd.f32 %v3111, %v3252
        %v3451 = vadd.f32 %v3112, %v3257
        %v3452 = vadd.f32 %v3113, %v3266
        %v3453 = vadd.f32 %v3114, %v3271
        %v3454 = vadd.f32 %v3115, %v3280
        %v3455 = vadd.f32 %v3116, %v3285
        %v3456 = vadd.f32 %v3117, %v3294
        %v3457 = vadd.f32 %v3118, %v3299
        %v3458 = vadd.f32 %v3119, %v3308
        %v3459 = vadd.f32 %v3120, %v3313
        %v3460 = vadd.f32 %v3121, %v3322
        %v3461 = vadd.f32 %v3122, %v3327
        %v3462 = vadd.f32 %v3123, %v3336
        %v3463 = vadd.f32 %v3124, %v3341
        %v3464 = vadd.f32 %v3125, %v3350
        %v3465 = vadd.f32 %v3126, %v3355
        %v3466 = vadd.f32 %v3127, %v3364
        %v3467 = vadd.f32 %v3128, %v3369
        %v3468 = vadd.f32 %v3129, %v3378
        %v3469 = vadd.f32 %v3130, %v3383
        %v3470 = vadd.f32 %v3131, %v3392
        %v3471 = vadd.f32 %v3132, %v3397
        %v3472 = vadd.f32 %v3133, %v3406
        %v3473 = vadd.f32 %v3134, %v3411
        %v3474 = vadd.f32 %v3135, %v3420
        %v3475 = vadd.f32 %v3136, %v3425
        %v3476 = vadd.f32 %v3137, %v3434
        %v3477 = vadd.f32 %v3138, %v3439
        %s3478 = scalar_lea.vmem %s1, 32
        %v3479 = vld [vmem:[%s3478] sm:$0x7]
        %v3480 = vrot.slane %v344, 2
        %v3481 = vsel %vm1276, %v2473, %v3480
        %v3482 = vrot.slane %v345, 2
        %v3483 = vsel %vm1276, %v3480, %v3482
        %v3484 = vrot.slane %v346, 2
        %v3485 = vsel %vm1276, %v3482, %v3484
        %v3486 = vsel %vm169, %v3481, 0
        %v3488 = vsel %vm169, %v3483, 0
        %v3490 = vsel %vm169, %v3485, 0
        %v3493 = vsel %vm593, %v3479, 0
        %3495 = vmatprep.subr.mxu0 0.0
        %3496 = vmatpush1.msra.mxu0 %v3493
        %3497 = vmatprep.subr.mxu0 0.0
        %3498 = vmatpush1.msra.mxu0 0.0
        %3499 = vmatprep.subr.mxu0 0.0
        %3500 = vmatpush1.msra.mxu0 0.0
        %3501 = vmatprep.subr.mxu0 0.0
        %3502 = vmatpush1.msra.mxu0 0.0
        %3503 = vmatprep.subr.mxu0 0.0
        %3504 = vmatpush1.msra.mxu0 0.0
        %3505 = vmatprep.subr.mxu0 0.0
        %3506 = vmatpush1.msra.mxu0 0.0
        %3507 = vmatprep.subr.mxu0 0.0
        %3508 = vmatpush1.msra.mxu0 0.0
        %3509 = vmatprep.subr.mxu0 0.0
        %3510 = vmatpush1.msra.mxu0 0.0
        %3511 = vmatprep.subr.mxu0 0.0
        %3512 = vmatpush1.msra.mxu0 0.0
        %3513 = vmatprep.subr.mxu0 0.0
        %3514 = vmatpush1.msra.mxu0 0.0
        %3515 = vmatprep.subr.mxu0 0.0
        %3516 = vmatpush1.msra.mxu0 0.0
        %3517 = vmatprep.subr.mxu0 0.0
        %3518 = vmatpush1.msra.mxu0 0.0
        %3519 = vmatprep.subr.mxu0 0.0
        %3520 = vmatpush1.msra.mxu0 0.0
        %3521 = vmatprep.subr.mxu0 0.0
        %3522 = vmatpush1.msra.mxu0 0.0
        %3523 = vmatprep.subr.mxu0 0.0
        %3524 = vmatpush1.msra.mxu0 0.0
        %3525 = vmatprep.subr.mxu0 0.0
        %3526 = vmatpush1.msra.mxu0 0.0
        %3527 = vmatprep.subr.mxu0 0.0
        %3528 = vmatpush1.msra.mxu0 0.0
        %3529 = vmatprep.subr.mxu0 0.0
        %3530 = vmatpush1.msra.mxu0 0.0
        %3531 = vmatprep.subr.mxu0 0.0
        %3532 = vmatpush1.msra.mxu0 0.0
        %3533 = vmatprep.subr.mxu0 0.0
        %3534 = vmatpush1.msra.mxu0 0.0
        %3535 = vmatprep.subr.mxu0 0.0
        %3536 = vmatpush1.msra.mxu0 0.0
        %3537 = vmatprep.subr.mxu0 0.0
        %3538 = vmatpush1.msra.mxu0 0.0
        %3539 = vmatprep.subr.mxu0 0.0
        %3540 = vmatpush1.msra.mxu0 0.0
        %3541 = vmatprep.subr.mxu0 0.0
        %3542 = vmatpush1.msra.mxu0 0.0
        %3543 = vmatprep.subr.mxu0 0.0
        %3544 = vmatpush1.msra.mxu0 0.0
        %3545 = vmatprep.subr.mxu0 0.0
        %3546 = vmatpush1.msra.mxu0 0.0
        %3547 = vmatprep.subr.mxu0 0.0
        %3548 = vmatpush1.msra.mxu0 0.0
        %3549 = vmatprep.subr.mxu0 0.0
        %3550 = vmatpush1.msra.mxu0 0.0
        %3551 = vmatprep.subr.mxu0 0.0
        %3552 = vmatpush1.msra.mxu0 0.0
        %3553 = vmatprep.subr.mxu0 0.0
        %3554 = vmatpush1.msra.mxu0 0.0
        %3555 = vmatprep.subr.mxu0 0.0
        %3556 = vmatpush1.msra.mxu0 0.0
        %3557 = vmatprep.subr.mxu0 0.0
        %3558 = vmatpush1.msra.mxu0 0.0
        %3559 = vmatprep.mubr.f32.mxu0 0.0
        %3560 = vmatmul.mubr.f32.gmra.mrb[0].mxu0 %v1386
        %v3561 = vpop.f32.mrb[0].mxu0
        %v3562 = vadd.f32 0.0, %v3561
        %v3563 = vpop.f32.mrb[0].mxu0
        %3564 = vmatprep.mubr.f32.mxu0 0.0
        %3565 = vmatmul.mubr.f32.gmra.mrb[0].mxu0 %v1388
        %v3566 = vpop.f32.mrb[0].mxu0
        %v3567 = vadd.f32 0.0, %v3566
        %v3568 = vpop.f32.mrb[0].mxu0
        %3569 = vmatprep.mubr.f32.mxu0 0.0
        %3570 = vmatmul.mubr.f32.gmra.mrb[0].mxu0 %v1390
        %v3571 = vpop.f32.mrb[0].mxu0
        %v3572 = vpop.f32.mrb[0].mxu0
        %3573 = vmatprep.mubr.f32.mxu0 0.0
        %3574 = vmatmul.mubr.f32.gmra.mrb[0].mxu0 %v1392
        %v3575 = vpop.f32.mrb[0].mxu0
        %v3576 = vadd.f32 0.0, %v3575
        %v3577 = vpop.f32.mrb[0].mxu0
        %3578 = vmatprep.mubr.f32.mxu0 0.0
        %3579 = vmatmul.mubr.f32.gmra.mrb[0].mxu0 %v1394
        %v3580 = vpop.f32.mrb[0].mxu0
        %v3581 = vadd.f32 0.0, %v3580
        %v3582 = vpop.f32.mrb[0].mxu0
        %3583 = vmatprep.mubr.f32.mxu0 0.0
        %3584 = vmatmul.mubr.f32.gmra.mrb[0].mxu0 %v1396
        %v3585 = vpop.f32.mrb[0].mxu0
        %v3586 = vpop.f32.mrb[0].mxu0
        %3587 = vmatprep.mubr.f32.mxu0 0.0
        %3588 = vmatmul.mubr.f32.gmra.mrb[0].mxu0 %v1398
        %v3589 = vpop.f32.mrb[0].mxu0
        %v3590 = vadd.f32 0.0, %v3589
        %v3591 = vpop.f32.mrb[0].mxu0
        %3592 = vmatprep.mubr.f32.mxu0 0.0
        %3593 = vmatmul.mubr.f32.gmra.mrb[0].mxu0 %v1400
        %v3594 = vpop.f32.mrb[0].mxu0
        %v3595 = vadd.f32 0.0, %v3594
        %v3596 = vpop.f32.mrb[0].mxu0
        %3597 = vmatprep.mubr.f32.mxu0 0.0
        %3598 = vmatmul.mubr.f32.gmra.mrb[0].mxu0 %v1402
        %v3599 = vpop.f32.mrb[0].mxu0
        %v3600 = vpop.f32.mrb[0].mxu0
        %3601 = vmatprep.mubr.f32.mxu0 0.0
        %3602 = vmatmul.mubr.f32.gmra.mrb[0].mxu0 %v1404
        %v3603 = vpop.f32.mrb[0].mxu0
        %v3604 = vadd.f32 0.0, %v3603
        %v3605 = vpop.f32.mrb[0].mxu0
        %3606 = vmatprep.mubr.f32.mxu0 0.0
        %3607 = vmatmul.mubr.f32.gmra.mrb[0].mxu0 %v1406
        %v3608 = vpop.f32.mrb[0].mxu0
        %v3609 = vadd.f32 0.0, %v3608
        %v3610 = vpop.f32.mrb[0].mxu0
        %3611 = vmatprep.mubr.f32.mxu0 0.0
        %3612 = vmatmul.mubr.f32.gmra.mrb[0].mxu0 %v1408
        %v3613 = vpop.f32.mrb[0].mxu0
        %v3614 = vpop.f32.mrb[0].mxu0
        %3615 = vmatprep.mubr.f32.mxu0 0.0
        %3616 = vmatmul.mubr.f32.gmra.mrb[0].mxu0 %v1410
        %v3617 = vpop.f32.mrb[0].mxu0
        %v3618 = vadd.f32 0.0, %v3617
        %v3619 = vpop.f32.mrb[0].mxu0
        %3620 = vmatprep.mubr.f32.mxu0 0.0
        %3621 = vmatmul.mubr.f32.gmra.mrb[0].mxu0 %v1412
        %v3622 = vpop.f32.mrb[0].mxu0
        %v3623 = vadd.f32 0.0, %v3622
        %v3624 = vpop.f32.mrb[0].mxu0
        %3625 = vmatprep.mubr.f32.mxu0 0.0
        %3626 = vmatmul.mubr.f32.gmra.mrb[0].mxu0 %v1414
        %v3627 = vpop.f32.mrb[0].mxu0
        %v3628 = vpop.f32.mrb[0].mxu0
        %3629 = vmatprep.mubr.f32.mxu0 0.0
        %3630 = vmatmul.mubr.f32.gmra.mrb[0].mxu0 %v1416
        %v3631 = vpop.f32.mrb[0].mxu0
        %v3632 = vadd.f32 0.0, %v3631
        %v3633 = vpop.f32.mrb[0].mxu0
        %3634 = vmatprep.mubr.f32.mxu0 0.0
        %3635 = vmatmul.mubr.f32.gmra.mrb[0].mxu0 %v1418
        %v3636 = vpop.f32.mrb[0].mxu0
        %v3637 = vadd.f32 0.0, %v3636
        %v3638 = vpop.f32.mrb[0].mxu0
        %3639 = vmatprep.mubr.f32.mxu0 0.0
        %3640 = vmatmul.mubr.f32.gmra.mrb[0].mxu0 %v1420
        %v3641 = vpop.f32.mrb[0].mxu0
        %v3642 = vpop.f32.mrb[0].mxu0
        %3643 = vmatprep.mubr.f32.mxu0 0.0
        %3644 = vmatmul.mubr.f32.gmra.mrb[0].mxu0 %v1422
        %v3645 = vpop.f32.mrb[0].mxu0
        %v3646 = vadd.f32 0.0, %v3645
        %v3647 = vpop.f32.mrb[0].mxu0
        %3648 = vmatprep.mubr.f32.mxu0 0.0
        %3649 = vmatmul.mubr.f32.gmra.mrb[0].mxu0 %v1424
        %v3650 = vpop.f32.mrb[0].mxu0
        %v3651 = vadd.f32 0.0, %v3650
        %v3652 = vpop.f32.mrb[0].mxu0
        %3653 = vmatprep.mubr.f32.mxu0 0.0
        %3654 = vmatmul.mubr.f32.gmra.mrb[0].mxu0 %v1426
        %v3655 = vpop.f32.mrb[0].mxu0
        %v3656 = vpop.f32.mrb[0].mxu0
        %3657 = vmatprep.mubr.f32.mxu0 0.0
        %3658 = vmatmul.mubr.f32.gmra.mrb[0].mxu0 %v1428
        %v3659 = vpop.f32.mrb[0].mxu0
        %v3660 = vadd.f32 0.0, %v3659
        %v3661 = vpop.f32.mrb[0].mxu0
        %3662 = vmatprep.mubr.f32.mxu0 0.0
        %3663 = vmatmul.mubr.f32.gmra.mrb[0].mxu0 %v1430
        %v3664 = vpop.f32.mrb[0].mxu0
        %v3665 = vadd.f32 0.0, %v3664
        %v3666 = vpop.f32.mrb[0].mxu0
        %3667 = vmatprep.mubr.f32.mxu0 0.0
        %3668 = vmatmul.mubr.f32.gmra.mrb[0].mxu0 %v1432
        %v3669 = vpop.f32.mrb[0].mxu0
        %v3670 = vpop.f32.mrb[0].mxu0
        %3671 = vmatprep.mubr.f32.mxu0 0.0
        %3672 = vmatmul.mubr.f32.gmra.mrb[0].mxu0 %v1434
        %v3673 = vpop.f32.mrb[0].mxu0
        %v3674 = vadd.f32 0.0, %v3673
        %v3675 = vpop.f32.mrb[0].mxu0
        %3676 = vmatprep.mubr.f32.mxu0 0.0
        %3677 = vmatmul.mubr.f32.gmra.mrb[0].mxu0 %v1436
        %v3678 = vpop.f32.mrb[0].mxu0
        %v3679 = vadd.f32 0.0, %v3678
        %v3680 = vpop.f32.mrb[0].mxu0
        %3681 = vmatprep.mubr.f32.mxu0 0.0
        %3682 = vmatmul.mubr.f32.gmra.mrb[0].mxu0 %v1438
        %v3683 = vpop.f32.mrb[0].mxu0
        %v3684 = vpop.f32.mrb[0].mxu0
        %3685 = vmatprep.mubr.f32.mxu0 0.0
        %3686 = vmatmul.mubr.f32.gmra.mrb[0].mxu0 %v1440
        %v3687 = vpop.f32.mrb[0].mxu0
        %v3688 = vadd.f32 0.0, %v3687
        %v3689 = vpop.f32.mrb[0].mxu0
        %3690 = vmatprep.mubr.f32.mxu0 0.0
        %3691 = vmatmul.mubr.f32.gmra.mrb[0].mxu0 %v1442
        %v3692 = vpop.f32.mrb[0].mxu0
        %v3693 = vadd.f32 0.0, %v3692
        %v3694 = vpop.f32.mrb[0].mxu0
        %3695 = vmatprep.mubr.f32.mxu0 0.0
        %3696 = vmatmul.mubr.f32.gmra.mrb[0].mxu0 %v1444
        %v3697 = vpop.f32.mrb[0].mxu0
        %v3698 = vpop.f32.mrb[0].mxu0
        %3699 = vmatprep.mubr.f32.mxu0 0.0
        %3700 = vmatmul.mubr.f32.gmra.mrb[0].mxu0 %v1446
        %v3701 = vpop.f32.mrb[0].mxu0
        %v3702 = vadd.f32 0.0, %v3701
        %v3703 = vpop.f32.mrb[0].mxu0
        %3704 = vmatprep.mubr.f32.mxu0 0.0
        %3705 = vmatmul.mubr.f32.gmra.mrb[0].mxu0 %v1448
        %v3706 = vpop.f32.mrb[0].mxu0
        %v3707 = vadd.f32 0.0, %v3706
        %v3708 = vpop.f32.mrb[0].mxu0
        %3709 = vmatprep.mubr.f32.mxu0 0.0
        %3710 = vmatmul.mubr.f32.gmra.mrb[0].mxu0 %v1450
        %v3711 = vpop.f32.mrb[0].mxu0
        %v3712 = vpop.f32.mrb[0].mxu0
        %3713 = vmatprep.mubr.f32.mxu0 0.0
        %3714 = vmatmul.mubr.f32.gmra.mrb[0].mxu0 %v1452
        %v3715 = vpop.f32.mrb[0].mxu0
        %v3716 = vadd.f32 0.0, %v3715
        %v3717 = vpop.f32.mrb[0].mxu0
        %3718 = vmatprep.mubr.f32.mxu0 0.0
        %3719 = vmatmul.mubr.f32.gmra.mrb[0].mxu0 %v1454
        %v3720 = vpop.f32.mrb[0].mxu0
        %v3721 = vadd.f32 0.0, %v3720
        %v3722 = vpop.f32.mrb[0].mxu0
        %3723 = vmatprep.mubr.f32.mxu0 0.0
        %3724 = vmatmul.mubr.f32.gmra.mrb[0].mxu0 %v1456
        %v3725 = vpop.f32.mrb[0].mxu0
        %v3726 = vpop.f32.mrb[0].mxu0
        %3727 = vmatprep.mubr.f32.mxu0 0.0
        %3728 = vmatmul.mubr.f32.gmra.mrb[0].mxu0 %v1458
        %v3729 = vpop.f32.mrb[0].mxu0
        %v3730 = vadd.f32 0.0, %v3729
        %v3731 = vpop.f32.mrb[0].mxu0
        %3732 = vmatprep.mubr.f32.mxu0 0.0
        %3733 = vmatmul.mubr.f32.gmra.mrb[0].mxu0 %v1460
        %v3734 = vpop.f32.mrb[0].mxu0
        %v3735 = vadd.f32 0.0, %v3734
        %v3736 = vpop.f32.mrb[0].mxu0
        %3737 = vmatprep.mubr.f32.mxu0 0.0
        %3738 = vmatmul.mubr.f32.gmra.mrb[0].mxu0 %v1462
        %v3739 = vpop.f32.mrb[0].mxu0
        %v3740 = vpop.f32.mrb[0].mxu0
        %3741 = vmatprep.mubr.f32.mxu0 0.0
        %3742 = vmatmul.mubr.f32.gmra.mrb[0].mxu0 %v1464
        %v3743 = vpop.f32.mrb[0].mxu0
        %v3744 = vadd.f32 0.0, %v3743
        %v3745 = vpop.f32.mrb[0].mxu0
        %3746 = vmatprep.mubr.f32.mxu0 0.0
        %3747 = vmatmul.mubr.f32.gmra.mrb[0].mxu0 %v1466
        %v3748 = vpop.f32.mrb[0].mxu0
        %v3749 = vadd.f32 0.0, %v3748
        %v3750 = vpop.f32.mrb[0].mxu0
        %3751 = vmatprep.mubr.f32.mxu0 0.0
        %3752 = vmatmul.mubr.f32.gmra.mrb[0].mxu0 %v1468
        %v3753 = vpop.f32.mrb[0].mxu0
        %v3754 = vpop.f32.mrb[0].mxu0
        %3755 = vmatprep.mubr.f32.mxu0 0.0
        %3756 = vmatmul.mubr.f32.gmra.mrb[0].mxu0 %v2475
        %v3757 = vpop.f32.mrb[0].mxu0
        %v3758 = vadd.f32 0.0, %v3757
        %v3759 = vpop.f32.mrb[0].mxu0
        %3760 = vmatprep.mubr.f32.mxu0 0.0
        %3761 = vmatmul.mubr.f32.gmra.mrb[0].mxu0 %v2477
        %v3762 = vpop.f32.mrb[0].mxu0
        %v3763 = vadd.f32 0.0, %v3762
        %v3764 = vpop.f32.mrb[0].mxu0
        %3765 = vmatprep.mubr.f32.mxu0 0.0
        %3766 = vmatmul.mubr.f32.gmra.mrb[0].mxu0 %v2479
        %v3767 = vpop.f32.mrb[0].mxu0
        %v3768 = vpop.f32.mrb[0].mxu0
        %3769 = vmatprep.mubr.f32.mxu0 0.0
        %3770 = vmatmul.mubr.f32.gmra.mrb[0].mxu0 %v3486
        %v3771 = vpop.f32.mrb[0].mxu0
        %v3772 = vadd.f32 0.0, %v3771
        %v3773 = vpop.f32.mrb[0].mxu0
        %3774 = vmatprep.mubr.f32.mxu0 0.0
        %3775 = vmatmul.mubr.f32.gmra.mrb[0].mxu0 %v3488
        %v3776 = vpop.f32.mrb[0].mxu0
        %v3777 = vadd.f32 0.0, %v3776
        %v3778 = vpop.f32.mrb[0].mxu0
        %3779 = vmatprep.mubr.f32.mxu0 0.0
        %3780 = vmatmul.mubr.f32.gmra.mrb[0].mxu0 %v3490
        %v3781 = vpop.f32.mrb[0].mxu0
        %v3782 = vpop.f32.mrb[0].mxu0
        %3783 = vdwg.mxu0
        %v3784 = vadd.f32 %v3446, %v3562
        %v3785 = vadd.f32 %v3447, %v3567
        %v3786 = vadd.f32 %v3448, %v3576
        %v3787 = vadd.f32 %v3449, %v3581
        %v3788 = vadd.f32 %v3450, %v3590
        %v3789 = vadd.f32 %v3451, %v3595
        %v3790 = vadd.f32 %v3452, %v3604
        %v3791 = vadd.f32 %v3453, %v3609
        %v3792 = vadd.f32 %v3454, %v3618
        %v3793 = vadd.f32 %v3455, %v3623
        %v3794 = vadd.f32 %v3456, %v3632
        %v3795 = vadd.f32 %v3457, %v3637
        %v3796 = vadd.f32 %v3458, %v3646
        %v3797 = vadd.f32 %v3459, %v3651
        %v3798 = vadd.f32 %v3460, %v3660
        %v3799 = vadd.f32 %v3461, %v3665
        %v3800 = vadd.f32 %v3462, %v3674
        %v3801 = vadd.f32 %v3463, %v3679
        %v3802 = vadd.f32 %v3464, %v3688
        %v3803 = vadd.f32 %v3465, %v3693
        %v3804 = vadd.f32 %v3466, %v3702
        %v3805 = vadd.f32 %v3467, %v3707
        %v3806 = vadd.f32 %v3468, %v3716
        %v3807 = vadd.f32 %v3469, %v3721
        %v3808 = vadd.f32 %v3470, %v3730
        %v3809 = vadd.f32 %v3471, %v3735
        %v3810 = vadd.f32 %v3472, %v3744
        %v3811 = vadd.f32 %v3473, %v3749
        %v3812 = vadd.f32 %v3474, %v3758
        %v3813 = vadd.f32 %v3475, %v3763
        %v3814 = vadd.f32 %v3476, %v3772
        %v3815 = vadd.f32 %v3477, %v3777
        %v3816 = vld [vmem:[%s2] sm:$0x1]
        %v3818 = vlaneseq
        %v3819 = vshrl.u32 %v3818, 7
        %v3820 = vsub.s32 0, %v3819
        %v3821 = vrot.slane %v3816, %v3820
        %v3823 = vadd.f32 %v3784, %v3821
        %v3824 = vadd.f32 %v3785, %v3821
        %v3825 = vadd.f32 %v3786, %v3821
        %v3826 = vadd.f32 %v3787, %v3821
        %v3827 = vadd.f32 %v3788, %v3821
        %v3828 = vadd.f32 %v3789, %v3821
        %v3829 = vadd.f32 %v3790, %v3821
        %v3830 = vadd.f32 %v3791, %v3821
        %v3831 = vadd.f32 %v3792, %v3821
        %v3832 = vadd.f32 %v3793, %v3821
        %v3833 = vadd.f32 %v3794, %v3821
        %v3834 = vadd.f32 %v3795, %v3821
        %v3835 = vadd.f32 %v3796, %v3821
        %v3836 = vadd.f32 %v3797, %v3821
        %v3837 = vadd.f32 %v3798, %v3821
        %v3838 = vadd.f32 %v3799, %v3821
        %v3839 = vadd.f32 %v3800, %v3821
        %v3840 = vadd.f32 %v3801, %v3821
        %v3841 = vadd.f32 %v3802, %v3821
        %v3842 = vadd.f32 %v3803, %v3821
        %v3843 = vadd.f32 %v3804, %v3821
        %v3844 = vadd.f32 %v3805, %v3821
        %v3845 = vadd.f32 %v3806, %v3821
        %v3846 = vadd.f32 %v3807, %v3821
        %v3847 = vadd.f32 %v3808, %v3821
        %v3848 = vadd.f32 %v3809, %v3821
        %v3849 = vadd.f32 %v3810, %v3821
        %v3850 = vadd.f32 %v3811, %v3821
        %v3851 = vadd.f32 %v3812, %v3821
        %v3852 = vadd.f32 %v3813, %v3821
        %v3853 = vadd.f32 %v3814, %v3821
        %v3854 = vadd.f32 %v3815, %v3821
        %v3855 = vmax.f32 %v3823, 0.0
        %v3856 = vmax.f32 %v3824, 0.0
        %v3857 = vmax.f32 %v3825, 0.0
        %v3858 = vmax.f32 %v3826, 0.0
        %v3859 = vmax.f32 %v3827, 0.0
        %v3860 = vmax.f32 %v3828, 0.0
        %v3861 = vmax.f32 %v3829, 0.0
        %v3862 = vmax.f32 %v3830, 0.0
        %v3863 = vmax.f32 %v3831, 0.0
        %v3864 = vmax.f32 %v3832, 0.0
        %v3865 = vmax.f32 %v3833, 0.0
        %v3866 = vmax.f32 %v3834, 0.0
        %v3867 = vmax.f32 %v3835, 0.0
        %v3868 = vmax.f32 %v3836, 0.0
        %v3869 = vmax.f32 %v3837, 0.0
        %v3870 = vmax.f32 %v3838, 0.0
        %v3871 = vmax.f32 %v3839, 0.0
        %v3872 = vmax.f32 %v3840, 0.0
        %v3873 = vmax.f32 %v3841, 0.0
        %v3874 = vmax.f32 %v3842, 0.0
        %v3875 = vmax.f32 %v3843, 0.0
        %v3876 = vmax.f32 %v3844, 0.0
        %v3877 = vmax.f32 %v3845, 0.0
        %v3878 = vmax.f32 %v3846, 0.0
        %v3879 = vmax.f32 %v3847, 0.0
        %v3880 = vmax.f32 %v3848, 0.0
        %v3881 = vmax.f32 %v3849, 0.0
        %v3882 = vmax.f32 %v3850, 0.0
        %v3883 = vmax.f32 %v3851, 0.0
        %v3884 = vmax.f32 %v3852, 0.0
        %v3885 = vmax.f32 %v3853, 0.0
        %v3886 = vmax.f32 %v3854, 0.0
        %vm3887 = vcmask 261120
        %3888 = vst.msk [vmem:[%s163] sm:$0xff] %vm3887, %v3855
        %3889 = vst.msk [vmem:[%s163 + $0x8] sm:$0xff] %vm3887, %v3856
        %3890 = vst.msk [vmem:[%s163 + $0x10] sm:$0xff] %vm3887, %v3857
        %3891 = vst.msk [vmem:[%s163 + $0x18] sm:$0xff] %vm3887, %v3858
        %3892 = vst.msk [vmem:[%s163 + $0x20] sm:$0xff] %vm3887, %v3859
        %3893 = vst.msk [vmem:[%s163 + $0x28] sm:$0xff] %vm3887, %v3860
        %3894 = vst.msk [vmem:[%s163 + $0x30] sm:$0xff] %vm3887, %v3861
        %3895 = vst.msk [vmem:[%s163 + $0x38] sm:$0xff] %vm3887, %v3862
        %3896 = vst.msk [vmem:[%s163 + $0x40] sm:$0xff] %vm3887, %v3863
        %3897 = vst.msk [vmem:[%s163 + $0x48] sm:$0xff] %vm3887, %v3864
        %3898 = vst.msk [vmem:[%s163 + $0x50] sm:$0xff] %vm3887, %v3865
        %3899 = vst.msk [vmem:[%s163 + $0x58] sm:$0xff] %vm3887, %v3866
        %3900 = vst.msk [vmem:[%s163 + $0x60] sm:$0xff] %vm3887, %v3867
        %3901 = vst.msk [vmem:[%s163 + $0x68] sm:$0xff] %vm3887, %v3868
        %3902 = vst.msk [vmem:[%s163 + $0x70] sm:$0xff] %vm3887, %v3869
        %3903 = vst.msk [vmem:[%s163 + $0x78] sm:$0xff] %vm3887, %v3870
        %3904 = vst.msk [vmem:[%s163 + $0x80] sm:$0xff] %vm3887, %v3871
        %3905 = vst.msk [vmem:[%s163 + $0x88] sm:$0xff] %vm3887, %v3872
        %3906 = vst.msk [vmem:[%s163 + $0x90] sm:$0xff] %vm3887, %v3873
        %3907 = vst.msk [vmem:[%s163 + $0x98] sm:$0xff] %vm3887, %v3874
        %3908 = vst.msk [vmem:[%s163 + $0xa0] sm:$0xff] %vm3887, %v3875
        %3909 = vst.msk [vmem:[%s163 + $0xa8] sm:$0xff] %vm3887, %v3876
        %3910 = vst.msk [vmem:[%s163 + $0xb0] sm:$0xff] %vm3887, %v3877
        %3911 = vst.msk [vmem:[%s163 + $0xb8] sm:$0xff] %vm3887, %v3878
        %3912 = vst.msk [vmem:[%s163 + $0xc0] sm:$0xff] %vm3887, %v3879
        %3913 = vst.msk [vmem:[%s163 + $0xc8] sm:$0xff] %vm3887, %v3880
        %3914 = vst.msk [vmem:[%s163 + $0xd0] sm:$0xff] %vm3887, %v3881
        %3915 = vst.msk [vmem:[%s163 + $0xd8] sm:$0xff] %vm3887, %v3882
        %3916 = vst.msk [vmem:[%s163 + $0xe0] sm:$0xff] %vm3887, %v3883
        %3917 = vst.msk [vmem:[%s163 + $0xe8] sm:$0xff] %vm3887, %v3884
        %3918 = vst.msk [vmem:[%s163 + $0xf0] sm:$0xff] %vm3887, %v3885
        %3919 = vst.msk [vmem:[%s163 + $0xf8] sm:$0xff] %vm3887, %v3886
        %s3920 = sand.u32 %s93, 1
        %s3921 = scalar_lea.sflag [#allocation4], %s3920
        %s3922 = sand.u32 %s93, 1
        %s3923 = smul.addr %s3922, 256
        %s3924 = scalar_lea.vmem [#allocation3], %s3923
        // Predicated region
        $region33: #{tpu_custom_call.1} parent=31 // pred_check
          %p3925 = pneg %p103
        $region34: #{tpu_custom_call.1} parent=31 // pred_check_branch
          %3927 = sbr.rel (%p3925) target = $region36
        $region35: #{tpu_custom_call.1} parent=31 // pred_region
          %s3929 = ssub.s32 4096, 4096
          %3930 = vsyncadd %s3921, %s3929
          %s3931 = smul.addr %s17, 32
          %s3932 = smul.addr %s3931, 128
          %s3933 = scalar_lea.hbm %s3, %s3932
          %s3934 = sshll.u32 %s3924, 4
          %s3935 = int_to_ptr.vmem [resolvable:$true] %s3934
          %3940 = dma.vmem_to_hbm [thread:$0]  %s3935, 4096, %s3933, %s3921, 128, 128, 8
        $region36: #{tpu_custom_call.1} parent=31 // pred_fallthru
          _
      $region32: #{tpu_custom_call.1} parent=5 // pred_fallthru
        _
      %p3941 = scmp.le.s32.totalorder 2, %s12
      // Predicated region
      $region37: #{tpu_custom_call.1} parent=5 // pred_check
        %p3942 = pneg %p3941
      $region38: #{tpu_custom_call.1} parent=5 // pred_check_branch
        %3944 = sbr.rel (%p3942) target = $region40
      $region39: #{tpu_custom_call.1} parent=5 // pred_region
        %s3945 = ssub.s32 %s12, 2
        // Predicated region
        $region41: #{tpu_custom_call.1} parent=39 // pred_check
          %p3946 = pneg %p109
        $region42: #{tpu_custom_call.1} parent=39 // pred_check_branch
          %3948 = sbr.rel (%p3946) target = $region44
        $region43: #{tpu_custom_call.1} parent=39 // pred_region
          %s3949 = sand.u32 %s94, 1
          %s3950 = scalar_lea.sflag [#allocation4], %s3949
          %s3951 = sand.u32 %s94, 1
          %s3952 = smul.addr %s3951, 256
          %s3953 = scalar_lea.vmem [#allocation3], %s3952
          %3954 = dma.done %s3950, 4096
        $region44: #{tpu_custom_call.1} parent=39 // pred_fallthru
          _
      $region40: #{tpu_custom_call.1} parent=5 // pred_fallthru
        _
    $region6: #{tpu_custom_call.1} parent=1 // loop_footer
      %s16 = sadd.s32 1, %s12
    $region7: #{tpu_custom_call.1} parent=1 // loop_footer_branch
      %11 = sbr.rel target = $region3
    $region8: #{tpu_custom_call.1} parent=1 // loop_exit
      _
    %3955 = vsyncpa [#allocation4], 1
    %s3956 = scalar_lea.sflag [#allocation4], 1
    %3957 = vsyncpa %s3956, 1

</llo_original>
